<compile_context>
chip_gen: v5e
topology: v5e:2x2
jax: 0.10.0
libtpu: 0.0.40
codegen_flags: <defaults>
</compile_context>

<pallas_src>
from functools import partial

import jax
import jax.numpy as jnp
from jax.experimental import pallas as pl
from jax.experimental.pallas import tpu as pltpu

LEAKY_SLOPE = 0.01
BN_EPS = 1e-5
_LANE = 128
_SUB = 16                         # row alignment (bf16 sublane packing)
_VMEM_LIMIT = 32 * 1024 * 1024    # explicit scoped-VMEM limit (v5e default=16M)


def _round_up(x, m):
    return -(-x // m) * m


# ----------------------------------------------------------------------------
# activations (applied inside kernels)
# ----------------------------------------------------------------------------
def _apply_act(y, act):
    if act == "none":
        return y
    if act == "relu":
        return jnp.maximum(y, 0.0)
    if act == "leaky_relu":
        return jnp.where(y >= 0, y, LEAKY_SLOPE * y)
    if act == "sigmoid":
        return jax.nn.sigmoid(y)
    raise ValueError(act)


# ----------------------------------------------------------------------------
# Kernel 1: matmul (bf16 in, f32 accumulate) + folded BN + activation.
#   single-K path: grid = (out-channel blocks,)              [parallel]
#   multi-K  path: grid = (out-channel blocks, K blocks)     [parallel, arb]
# ----------------------------------------------------------------------------
def _matmul_bn_act_kernel_single(x_ref, w_ref, scale_ref, shift_ref, o_ref, *,
                                 act):
    y = jnp.dot(x_ref[...], w_ref[...], preferred_element_type=jnp.float32)
    y = y * scale_ref[...] + shift_ref[...]
    o_ref[...] = _apply_act(y, act).astype(o_ref.dtype)


def _matmul_bn_act_kernel_multi(x_ref, w_ref, scale_ref, shift_ref, o_ref,
                                acc_ref, *, act):
    k = pl.program_id(1)

    @pl.when(k == 0)
    def _():
        acc_ref[...] = jnp.zeros_like(acc_ref)

    acc_ref[...] += jnp.dot(x_ref[...], w_ref[...],
                            preferred_element_type=jnp.float32)

    @pl.when(k == pl.num_programs(1) - 1)
    def _():
        y = acc_ref[...] * scale_ref[...] + shift_ref[...]
        o_ref[...] = _apply_act(y, act).astype(o_ref.dtype)


def _choose_bn(nc_pad):
    """Largest 128-multiple divisor of nc_pad keeping >=2 j-blocks (<=640)."""
    if nc_pad <= _LANE:
        return nc_pad
    cap = min(nc_pad // 2, 640)
    best = _LANE
    cand = _LANE
    while cand <= cap:
        if nc_pad % cand == 0:
            best = cand
        cand += _LANE
    return best


def _choose_tk(K, m_pad, bn):
    # Double-buffered bf16 x + w tiles per grid step.  Biased toward tk == K
    # (single-K fast path); still comfortably under scoped VMEM on all
    # generations (v7x: 64 MiB physical).
    budget = 12 * 1024 * 1024

    def tile_bytes(tk):
        return 2 * 2 * tk * (m_pad + bn)

    if tile_bytes(K) <= budget:
        return K
    for cand in (8192, 4096, 2048, 1024, 512, 256, 128):
        if tile_bytes(cand) <= budget:
            return cand
    return 128


def matmul_bn_act(x, w, scale=None, shift=None, act="none",
                  out_dtype=jnp.float32):
    """act((x @ w) * scale + shift); x:(M,K), w:(K,Nc) -> (M,Nc) out_dtype."""
    M, K = x.shape
    Kw, Nc = w.shape
    assert K == Kw
    if scale is None:
        scale = jnp.ones((Nc,), jnp.float32)
    if shift is None:
        shift = jnp.zeros((Nc,), jnp.float32)

    m_pad = max(_SUB, _round_up(M, _SUB))
    nc_pad = _round_up(Nc, _LANE)
    k_pad = _round_up(K, _LANE)          # lane-dense K tiles (fuse: 65 -> 128)

    x = x.astype(jnp.bfloat16)
    w = w.astype(jnp.bfloat16)
    scale = scale.astype(jnp.float32)
    shift = shift.astype(jnp.float32)
    if m_pad != M or k_pad != K:
        x = jnp.pad(x, ((0, m_pad - M), (0, k_pad - K)))
    if k_pad != K or nc_pad != Nc:
        w = jnp.pad(w, ((0, k_pad - K), (0, nc_pad - Nc)))
    if nc_pad != Nc:
        scale = jnp.pad(scale, (0, nc_pad - Nc), constant_values=1.0)
        shift = jnp.pad(shift, (0, nc_pad - Nc))
    scale = scale.reshape(1, nc_pad)
    shift = shift.reshape(1, nc_pad)
    K = k_pad

    bn = _choose_bn(nc_pad)
    tk = _choose_tk(K, m_pad, bn)
    if K % tk != 0:
        kp2 = _round_up(K, tk)
        x = jnp.pad(x, ((0, 0), (0, kp2 - K)))
        w = jnp.pad(w, ((0, kp2 - K), (0, 0)))
        K = kp2
    nk = K // tk

    if nk == 1:
        out = pl.pallas_call(
            partial(_matmul_bn_act_kernel_single, act=act),
            out_shape=jax.ShapeDtypeStruct((m_pad, nc_pad), out_dtype),
            grid_spec=pltpu.PrefetchScalarGridSpec(
                num_scalar_prefetch=0,
                grid=(nc_pad // bn,),
                in_specs=[
                    pl.BlockSpec((m_pad, K), lambda j: (0, 0)),
                    pl.BlockSpec((K, bn), lambda j: (0, j)),
                    pl.BlockSpec((1, bn), lambda j: (0, j)),
                    pl.BlockSpec((1, bn), lambda j: (0, j)),
                ],
                out_specs=pl.BlockSpec((m_pad, bn), lambda j: (0, j)),
            ),
            compiler_params=pltpu.CompilerParams(
                dimension_semantics=("parallel",),
                vmem_limit_bytes=_VMEM_LIMIT,
            ),
        )(x, w, scale, shift)
    else:
        out = pl.pallas_call(
            partial(_matmul_bn_act_kernel_multi, act=act),
            out_shape=jax.ShapeDtypeStruct((m_pad, nc_pad), out_dtype),
            grid_spec=pltpu.PrefetchScalarGridSpec(
                num_scalar_prefetch=0,
                grid=(nc_pad // bn, nk),
                in_specs=[
                    pl.BlockSpec((m_pad, tk), lambda j, k: (0, k)),
                    pl.BlockSpec((tk, bn), lambda j, k: (k, j)),
                    pl.BlockSpec((1, bn), lambda j, k: (0, j)),
                    pl.BlockSpec((1, bn), lambda j, k: (0, j)),
                ],
                out_specs=pl.BlockSpec((m_pad, bn), lambda j, k: (0, j)),
                scratch_shapes=[pltpu.VMEM((m_pad, bn), jnp.float32)],
            ),
            compiler_params=pltpu.CompilerParams(
                dimension_semantics=("parallel", "arbitrary"),
                vmem_limit_bytes=_VMEM_LIMIT,
            ),
        )(x, w, scale, shift)
    return out[:M, :Nc]


# ----------------------------------------------------------------------------
# Kernel 2: fused pooled branch of ASPP in ONE pallas_call:
#   global mean over H*W  ->  gp_conv  ->  gp_bn + leaky  ->  pool_red_conv
# ----------------------------------------------------------------------------
def _pooled_branch_kernel(x_ref, gpw_ref, gsc_ref, gsh_ref, prw_ref, o_ref, *,
                          inv_hw):
    # x_ref: (Np, hwp, Cp) bf16, zero-padded rows/batches.
    xm = jnp.sum(x_ref[...].astype(jnp.float32), axis=1) * inv_hw   # (Np, Cp)
    gp = jnp.dot(xm.astype(jnp.bfloat16), gpw_ref[...],
                 preferred_element_type=jnp.float32)                 # (Np, H)
    gp = gp * gsc_ref[...] + gsh_ref[...]
    gp = jnp.where(gp >= 0, gp, LEAKY_SLOPE * gp)
    o_ref[...] = jnp.dot(gp.astype(jnp.bfloat16), prw_ref[...],
                         preferred_element_type=jnp.float32)


def pooled_branch(x_cl, hw, gp_w, gp_scale, gp_shift, pr_w):
    """x_cl: (N, hw, C) channels-last bf16 -> pool_red (N, hidden) f32."""
    N, hw_, C = x_cl.shape
    assert hw_ == hw
    np_ = max(8, _round_up(N, 8))
    hwp = max(_SUB, _round_up(hw, _SUB))
    cp = _round_up(C, _LANE)
    hid = gp_w.shape[1]
    assert hid % _LANE == 0 and pr_w.shape == (hid, hid)

    x = x_cl.astype(jnp.bfloat16)
    if (np_, hwp, cp) != (N, hw, C):
        x = jnp.pad(x, ((0, np_ - N), (0, hwp - hw), (0, cp - C)))
    gpw = gp_w.astype(jnp.bfloat16)
    if cp != C:
        gpw = jnp.pad(gpw, ((0, cp - C), (0, 0)))
    prw = pr_w.astype(jnp.bfloat16)
    gsc = gp_scale.reshape(1, hid).astype(jnp.float32)
    gsh = gp_shift.reshape(1, hid).astype(jnp.float32)

    out = pl.pallas_call(
        partial(_pooled_branch_kernel, inv_hw=1.0 / float(hw)),
        out_shape=jax.ShapeDtypeStruct((np_, hid), jnp.float32),
        grid_spec=pltpu.PrefetchScalarGridSpec(
            num_scalar_prefetch=0,
            grid=(1,),
            in_specs=[
                pl.BlockSpec((np_, hwp, cp), lambda i: (0, 0, 0)),
                pl.BlockSpec((cp, hid), lambda i: (0, 0)),
                pl.BlockSpec((1, hid), lambda i: (0, 0)),
                pl.BlockSpec((1, hid), lambda i: (0, 0)),
                pl.BlockSpec((hid, hid), lambda i: (0, 0)),
            ],
            out_specs=pl.BlockSpec((np_, hid), lambda i: (0, 0)),
        ),
        compiler_params=pltpu.CompilerParams(
            dimension_semantics=("arbitrary",),
            vmem_limit_bytes=_VMEM_LIMIT,
        ),
    )(x, gpw, gsc, gsh, prw)
    return out[:N]


# ----------------------------------------------------------------------------
# Kernel 3: red_conv matmul + per-batch pooled-branch add + red_bn + leaky.
#   Whole Nc in one lane block, grid over batches only (weight fetched once;
#   N parallel programs keep both v7x TensorCores busy).
# ----------------------------------------------------------------------------
def _red_fused_kernel(m_ref, w_ref, pool_ref, scale_ref, shift_ref, o_ref):
    y = jnp.dot(m_ref[...], w_ref[...], preferred_element_type=jnp.float32)
    y = (y + pool_ref[0]) * scale_ref[...] + shift_ref[...]
    o_ref[...] = jnp.where(y >= 0, y, LEAKY_SLOPE * y).astype(o_ref.dtype)


def red_conv_pool_bn_leaky(mapped, red_w, pool_red, scale, shift, N, hw,
                           out_dtype=jnp.bfloat16):
    """leaky(red_bn(mapped @ red_w + broadcast_per_batch(pool_red)))."""
    M, K = mapped.shape                     # M = N*hw, K multiple of 128
    Nc = red_w.shape[1]
    assert M == N * hw and Nc % _LANE == 0

    hwp = max(_SUB, _round_up(hw, _SUB))
    m3 = mapped.astype(jnp.bfloat16).reshape(N, hw, K)
    if hwp != hw:
        m3 = jnp.pad(m3, ((0, 0), (0, hwp - hw), (0, 0)))
    m2 = m3.reshape(N * hwp, K)

    w = red_w.astype(jnp.bfloat16)
    pool3 = pool_red.astype(jnp.float32).reshape(N, 1, Nc)
    scale = scale.reshape(1, Nc).astype(jnp.float32)
    shift = shift.reshape(1, Nc).astype(jnp.float32)

    out = pl.pallas_call(
        _red_fused_kernel,
        out_shape=jax.ShapeDtypeStruct((N * hwp, Nc), out_dtype),
        grid_spec=pltpu.PrefetchScalarGridSpec(
            num_scalar_prefetch=0,
            grid=(N,),
            in_specs=[
                pl.BlockSpec((hwp, K), lambda n: (n, 0)),
                pl.BlockSpec((K, Nc), lambda n: (0, 0)),
                pl.BlockSpec((1, 1, Nc), lambda n: (n, 0, 0)),
                pl.BlockSpec((1, Nc), lambda n: (0, 0)),
                pl.BlockSpec((1, Nc), lambda n: (0, 0)),
            ],
            out_specs=pl.BlockSpec((hwp, Nc), lambda n: (n, 0)),
        ),
        compiler_params=pltpu.CompilerParams(
            dimension_semantics=("parallel",),
            vmem_limit_bytes=_VMEM_LIMIT,
        ),
    )(m2, w, pool3, scale, shift)
    if hwp != hw:
        out = out.reshape(N, hwp, Nc)[:, :hw, :].reshape(N * hw, Nc)
    return out


# ----------------------------------------------------------------------------
# plain-JAX glue: layout, im2col (with dead-tap elimination), bilinear
# upsample, BN folding
# ----------------------------------------------------------------------------
def nchw_to_flat(x):  # (N,C,H,W) -> (N*H*W, C)
    N, C, H, W = x.shape
    return x.transpose(0, 2, 3, 1).reshape(N * H * W, C)


def flat_to_nchw(x2d, N, H, W):
    C = x2d.shape[-1]
    return x2d.reshape(N, H, W, C).transpose(0, 3, 1, 2)


def _active_taps(H, W, d):
    """Taps of a 3x3 conv (padding == dilation == d) that can touch the image."""
    return [(kh, kw) for kh in range(3) for kw in range(3)
            if (kh == 1 or d < H) and (kw == 1 or d < W)]


def _select_tap_rows(w, cin, taps):
    """w: (cin*9, cout) with row order (ci, kh, kw); keep only `taps` rows."""
    if len(taps) == 9:
        return w
    idx = jnp.array([kh * 3 + kw for kh, kw in taps], dtype=jnp.int32)
    cout = w.shape[1]
    return w.reshape(cin, 9, cout)[:, idx, :].reshape(cin * len(taps), cout)


def im2col_3x3(x_nchw, dilation, taps=None):
    """Patches for a 3x3 'same' conv (zero padding == dilation), restricted to
    the given (kh, kw) taps.  Output (N*H*W, Cin*len(taps)) with last-axis
    order (ci, tap) matching _select_tap_rows."""
    # TODO(synk): for large spatial sizes gather the tap slabs in-kernel via
    # pl.ds offsets instead of materializing the expanded patch matrix in HBM.
    N, C, H, W = x_nchw.shape
    d = dilation
    if taps is None:
        taps = [(kh, kw) for kh in range(3) for kw in range(3)]
    if taps == [(1, 1)]:                     # degenerates to a 1x1 conv
        return nchw_to_flat(x_nchw)
    xp = jnp.pad(x_nchw, ((0, 0), (0, 0), (d, d), (d, d)))
    cols = [xp[:, :, kh * d: kh * d + H, kw * d: kw * d + W] for kh, kw in taps]
    p = jnp.stack(cols, axis=2)              # (N, C, T, H, W)
    p = p.transpose(0, 3, 4, 1, 2)           # (N, H, W, C, T)
    return p.reshape(N * H * W, C * len(taps))


def bilinear_resize_align_corners(x_nchw, out_h, out_w):
    # TODO(synk): upsampling index/weight gather kept in plain JAX (resampling glue).
    N, C, H, W = x_nchw.shape

    def axis_coeffs(size_in, size_out):
        src = jnp.arange(size_out, dtype=jnp.float32) * (
            (size_in - 1) / (size_out - 1) if size_out > 1 else 0.0
        )
        i0 = jnp.clip(jnp.floor(src).astype(jnp.int32), 0, max(size_in - 2, 0))
        frac = src - i0.astype(jnp.float32)
        i1 = jnp.minimum(i0 + 1, size_in - 1)
        return i0, i1, frac

    h0, h1, fh = axis_coeffs(H, out_h)
    w0, w1, fw = axis_coeffs(W, out_w)
    xh = (
        x_nchw[:, :, h0, :] * (1.0 - fh)[None, None, :, None]
        + x_nchw[:, :, h1, :] * fh[None, None, :, None]
    )
    out = xh[:, :, :, w0] * (1.0 - fw) + xh[:, :, :, w1] * fw
    return out


def bn_fold(gamma, beta, mean, var, eps=BN_EPS):
    scale = gamma / jnp.sqrt(var + eps)
    shift = beta - mean * scale
    return scale, shift


# ----------------------------------------------------------------------------
# ASPP forward (in_channels=2048, hidden=256, out=256, dilations (6,12,18))
# ----------------------------------------------------------------------------
def aspp_forward(x_nchw, p):
    N, Cin, H, W = x_nchw.shape
    hidden = 256
    dilations = (6, 12, 18)

    map_scale, map_shift = bn_fold(*p["map_bn"])

    # One channels-last transpose + bf16 cast, reused by the ASPP matmul and
    # the fused pooled branch (no duplicate transpose of the 2048-ch map).
    x_cl = x_nchw.transpose(0, 2, 3, 1).astype(jnp.bfloat16)     # (N,H,W,C)
    x_flat = x_cl.reshape(N * H * W, Cin)
    x_pool = x_cl.reshape(N, H * W, Cin)

    # Dead-tap elimination is valid because the reference ASPP uses
    # padding == dilation for every dilated 3x3 conv.
    branch_taps = [_active_taps(H, W, d) for d in dilations]
    if all(t == [(1, 1)] for t in branch_taps):
        # All non-center taps of every dilated conv read only zero padding:
        # each branch is an exact 1x1 conv, so cat(4 branches) + map_bn + leaky
        # is a single fused matmul against the concatenated weight.
        w_cat = jnp.concatenate(
            [p["map_conv0_w"]]
            + [_select_tap_rows(p[f"map_conv{i + 1}_w"], Cin, [(1, 1)])
               for i in range(3)],
            axis=1,
        )                                                        # (Cin, 1024)
        mapped = matmul_bn_act(x_flat, w_cat, map_scale, map_shift,
                               act="leaky_relu",
                               out_dtype=jnp.bfloat16)           # (M, 1024)
    else:
        outs = [matmul_bn_act(x_flat, p["map_conv0_w"],
                              map_scale[:hidden], map_shift[:hidden],
                              act="leaky_relu", out_dtype=jnp.bfloat16)]
        for i, d in enumerate(dilations):
            taps = branch_taps[i]
            patches = im2col_3x3(x_nchw.astype(jnp.bfloat16), d, taps)
            w_i = _select_tap_rows(p[f"map_conv{i + 1}_w"], Cin, taps)
            sl = slice((i + 1) * hidden, (i + 2) * hidden)
            outs.append(matmul_bn_act(patches, w_i, map_scale[sl],
                                      map_shift[sl], act="leaky_relu",
                                      out_dtype=jnp.bfloat16))
        mapped = jnp.concatenate(outs, axis=1)                   # (M, 1024)

    # fused pooled branch: mean + gp_conv + gp_bn + leaky + pool_red_conv
    gp_scale, gp_shift = bn_fold(*p["gp_bn"])
    pool_red = pooled_branch(x_pool, H * W, p["gp_conv_w"], gp_scale, gp_shift,
                             p["pool_red_conv_w"])               # (N, 256) f32

    # red_conv + pooled-branch add + red_bn + leaky, fused (no jnp.repeat)
    red_scale, red_shift = bn_fold(*p["red_bn"])
    out = red_conv_pool_bn_leaky(mapped, p["red_conv_w"], pool_red,
                                 red_scale, red_shift, N, H * W,
                                 out_dtype=jnp.bfloat16)
    return out                                                   # (N*H*W, 256)


# ----------------------------------------------------------------------------
# Head forward
# ----------------------------------------------------------------------------
def head_forward(f_list, shape, canny, newshape, params):
    low, high = f_list[0], f_list[-1]
    N, _, Hh, Wh = high.shape
    _, _, low_h, low_w = low.shape

    # ASPP on the high-level feature map
    f_flat = aspp_forward(high, params["aspp"])
    f_nchw = flat_to_nchw(f_flat, N, Hh, Wh)                     # (N,256,Hh,Wh)

    # reduce() on the low-level features: 1x1 conv + BN + ReLU
    red_scale, red_shift = bn_fold(*params["reduce_bn"])
    low_red = matmul_bn_act(
        nchw_to_flat(low), params["reduce_conv_w"], red_scale, red_shift,
        act="relu", out_dtype=jnp.bfloat16,
    )                                                            # (M_low, 48)

    # bilinear upsample (align_corners=True) to low-level resolution (f32 math)
    f_up = bilinear_resize_align_corners(f_nchw, low_h, low_w)   # (N,256,lh,lw)

    # cat(f, low_level, shape) along channels -> 256+48+64 = 368 (bf16)
    cat = jnp.concatenate(
        [nchw_to_flat(f_up).astype(jnp.bfloat16),
         low_red,
         nchw_to_flat(shape).astype(jnp.bfloat16)], axis=1,
    )
    cat_nchw = flat_to_nchw(cat, N, low_h, low_w)

    # last_conv: two 3x3 convs (pad=1) each with BN + ReLU (bf16 im2col)
    b1s, b1h = bn_fold(*params["last_bn1"])
    y1 = matmul_bn_act(im2col_3x3(cat_nchw, 1), params["last_conv1_w"],
                       b1s, b1h, act="relu", out_dtype=jnp.bfloat16)
    b2s, b2h = bn_fold(*params["last_bn2"])
    y2 = matmul_bn_act(im2col_3x3(flat_to_nchw(y1, N, low_h, low_w), 1),
                       params["last_conv2_w"], b2s, b2h, act="relu",
                       out_dtype=jnp.float32)
    f_out = flat_to_nchw(y2, N, low_h, low_w)                    # (N,256,lh,lw)

    # fuse(cat(canny, newshape)) 1x1 conv -> sigmoid (fused in kernel);
    # K=65 is padded up to 128 lane-dense inside matmul_bn_act.
    edge_in = jnp.concatenate([canny, newshape], axis=1)         # (N,65,He,We)
    _, _, He, We = edge_in.shape
    edge = matmul_bn_act(nchw_to_flat(edge_in), params["fuse_w"], act="sigmoid")
    edgeout = flat_to_nchw(edge, N, He, We)                      # (N,1,He,We)

    return f_out, edgeout


# ----------------------------------------------------------------------------
# deterministic parameter init (synthetic; BN uses eval-mode running stats)
# weights stored in bf16 (halves HBM weight traffic), BN params in f32
# ----------------------------------------------------------------------------
def init_params(key):
    keys = iter(jax.random.split(key, 64))

    def conv_w(cout, cin, kh=1, kw=1):
        fan_in = cin * kh * kw
        w = jax.random.normal(next(keys), (cout, cin, kh, kw), jnp.float32)
        w = w * (1.0 / float(fan_in) ** 0.5)
        # torch layout (Cout,Cin,kh,kw) -> matmul layout (Cin*kh*kw, Cout)
        return w.reshape(cout, cin * kh * kw).T.astype(jnp.bfloat16)

    def bn_p(c):
        k1, k2, k3, k4 = jax.random.split(next(keys), 4)
        gamma = 1.0 + 0.1 * jax.random.normal(k1, (c,), jnp.float32)
        beta = 0.1 * jax.random.normal(k2, (c,), jnp.float32)
        mean = 0.1 * jax.random.normal(k3, (c,), jnp.float32)
        var = 1.0 + 0.1 * jnp.abs(jax.random.normal(k4, (c,), jnp.float32))
        return (gamma, beta, mean, var)

    aspp = {
        "map_conv0_w": conv_w(256, 2048, 1, 1),
        "map_conv1_w": conv_w(256, 2048, 3, 3),
        "map_conv2_w": conv_w(256, 2048, 3, 3),
        "map_conv3_w": conv_w(256, 2048, 3, 3),
        "map_bn": bn_p(1024),
        "gp_conv_w": conv_w(256, 2048, 1, 1),
        "gp_bn": bn_p(256),
        "red_conv_w": conv_w(256, 1024, 1, 1),
        "pool_red_conv_w": conv_w(256, 256, 1, 1),
        "red_bn": bn_p(256),
    }
    params = {
        "aspp": aspp,
        "reduce_conv_w": conv_w(48, 256, 1, 1),
        "reduce_bn": bn_p(48),
        "last_conv1_w": conv_w(256, 368, 3, 3),
        "last_bn1": bn_p(256),
        "last_conv2_w": conv_w(256, 256, 3, 3),
        "last_bn2": bn_p(256),
        "fuse_w": conv_w(1, 65, 1, 1),
    }
    return params


if __name__ == "__main__":
    key = jax.random.PRNGKey(0)
    kp, k1, k2, k3, k4, k5 = jax.random.split(key, 6)
    params = init_params(kp)

    N = 2
    low = jax.random.normal(k1, (N, 256, 8, 8), jnp.float32)       # f_list[0]
    high = jax.random.normal(k2, (N, 2048, 4, 4), jnp.float32)     # f_list[-1]
    shape_t = jax.random.normal(k3, (N, 64, 8, 8), jnp.float32)
    canny = jax.random.normal(k4, (N, 1, 8, 8), jnp.float32)
    newshape = jax.random.normal(k5, (N, 64, 8, 8), jnp.float32)

    f_out, edgeout = head_forward([low, high], shape_t, canny, newshape, params)
    jax.block_until_ready((f_out, edgeout))

    assert f_out.shape == (N, 256, 8, 8), f_out.shape
    assert edgeout.shape == (N, 1, 8, 8), edgeout.shape
    assert bool(jnp.all(jnp.isfinite(f_out))) and bool(jnp.all(jnp.isfinite(edgeout)))
    print("KERNEL_OK")
</pallas_src>

<mosaic_0001>
module attributes {stable_mosaic.version = 11 : i64} {
  func.func @_matmul_bn_act_kernel_single(%arg0: i32, %arg1: memref<32x2048xbf16, #tpu.memory_space<vmem>>, %arg2: memref<2048x512xbf16, #tpu.memory_space<vmem>>, %arg3: memref<1x512xf32, #tpu.memory_space<vmem>>, %arg4: memref<1x512xf32, #tpu.memory_space<vmem>>, %arg5: memref<32x512xbf16, #tpu.memory_space<vmem>>) attributes {dimension_semantics = [#tpu.dimension_semantics<parallel>], iteration_bounds = array<i64: 2>, scalar_prefetch = 0 : i64, scratch_operands = 0 : i64, tpu.core_type = #tpu.core_type<tc>, window_params = [{pipeline_mode = #tpu.pipeline_mode<synchronous>, transform_indices = @transform_0, window_bounds = array<i64: 32, 2048>}, {transform_indices = @transform_1, window_bounds = array<i64: 2048, 512>}, {transform_indices = @transform_2, window_bounds = array<i64: 1, 512>}, {transform_indices = @transform_3, window_bounds = array<i64: 1, 512>}, {transform_indices = @transform_4, window_bounds = array<i64: 32, 512>}]} {
    %c0 = arith.constant 0 : index
    %c0_0 = arith.constant 0 : index
    %0 = vector.load %arg1[%c0, %c0_0] : memref<32x2048xbf16, #tpu.memory_space<vmem>>, vector<32x2048xbf16>
    %c0_1 = arith.constant 0 : index
    %c0_2 = arith.constant 0 : index
    %1 = vector.load %arg2[%c0_1, %c0_2] : memref<2048x512xbf16, #tpu.memory_space<vmem>>, vector<2048x512xbf16>
    %cst = arith.constant dense<0.000000e+00> : vector<32x512xf32>
    %2 = tpu.matmul %0, %1, %cst {dimension_numbers = #tpu.dot_dimension_numbers<[1], [0], [0], [1], [0, 0, 1, 1], [], []>} : vector<32x2048xbf16>, vector<2048x512xbf16>, vector<32x512xf32> -> vector<32x512xf32>
    %c0_3 = arith.constant 0 : index
    %c0_4 = arith.constant 0 : index
    %3 = vector.load %arg3[%c0_3, %c0_4] : memref<1x512xf32, #tpu.memory_space<vmem>>, vector<1x512xf32>
    %4 = vector.broadcast %3 : vector<1x512xf32> to vector<32x512xf32>
    %5 = arith.mulf %2, %4 : vector<32x512xf32>
    %c0_5 = arith.constant 0 : index
    %c0_6 = arith.constant 0 : index
    %6 = vector.load %arg4[%c0_5, %c0_6] : memref<1x512xf32, #tpu.memory_space<vmem>>, vector<1x512xf32>
    %7 = vector.broadcast %6 : vector<1x512xf32> to vector<32x512xf32>
    %8 = arith.addf %5, %7 : vector<32x512xf32>
    %cst_7 = arith.constant 0.000000e+00 : f32
    %9 = vector.broadcast %cst_7 : f32 to vector<32x512xf32>
    %10 = arith.cmpf oge, %8, %9 : vector<32x512xf32>
    %cst_8 = arith.constant 0.00999999977 : f32
    %11 = vector.broadcast %cst_8 : f32 to vector<32x512xf32>
    %12 = arith.mulf %11, %8 : vector<32x512xf32>
    %13 = arith.select %10, %8, %12 : vector<32x512xi1>, vector<32x512xf32>
    %14 = arith.truncf %13 : vector<32x512xf32> to vector<32x512xbf16>
    %c0_9 = arith.constant 0 : index
    %c0_10 = arith.constant 0 : index
    %15 = vector.load %arg5[%c0_9, %c0_10] : memref<32x512xbf16, #tpu.memory_space<vmem>>, vector<32x512xbf16>
    tpu.vector_store %arg5[%c0_9, %c0_10], %14 {strides = array<i32>} : memref<32x512xbf16, #tpu.memory_space<vmem>>, vector<32x512xbf16>,
    return
  }
  func.func @transform_0(%arg0: i32) -> (i32, i32) {
    %c0_i32 = arith.constant 0 : i32
    %c0_i32_0 = arith.constant 0 : i32
    %c0_i32_1 = arith.constant 0 : i32
    return %c0_i32, %c0_i32_0 : i32, i32
  }
  func.func @transform_1(%arg0: i32) -> (i32, i32) {
    %c0_i32 = arith.constant 0 : i32
    %c0_i32_0 = arith.constant 0 : i32
    return %c0_i32, %arg0 : i32, i32
  }
  func.func @transform_2(%arg0: i32) -> (i32, i32) {
    %c0_i32 = arith.constant 0 : i32
    %c0_i32_0 = arith.constant 0 : i32
    return %c0_i32, %arg0 : i32, i32
  }
  func.func @transform_3(%arg0: i32) -> (i32, i32) {
    %c0_i32 = arith.constant 0 : i32
    %c0_i32_0 = arith.constant 0 : i32
    return %c0_i32, %arg0 : i32, i32
  }
  func.func @transform_4(%arg0: i32) -> (i32, i32) {
    %c0_i32 = arith.constant 0 : i32
    %c0_i32_0 = arith.constant 0 : i32
    return %c0_i32, %arg0 : i32, i32
  }
}

</mosaic_0001>

<llo_original>
// kernel: tpu_custom_call.1
$region0: #{tpu_custom_call.1}
  #allocation0 [shape = 'u32[]', space=smem, size = 0x4, offset = 0x4, fixed_abs, tag = 'smem constant byte address 0x4 - core index']
  #allocation1 [shape = 'u32[72,128]{1,0:T(1,128)}', space=vmem, size = 0x9000, scoped, tag = 'internal scratch']
  %s0 = inlined_call_operand.hbm [shape: bf16[32,2048], index: 0, kind: input, shape index: {}]
  %s1 = inlined_call_operand.hbm [shape: bf16[2048,1024], index: 1, kind: input, shape index: {}]
  %s2 = inlined_call_operand.hbm [shape: f32[1,1024], index: 2, kind: input, shape index: {}]
  %s3 = inlined_call_operand.hbm [shape: f32[1,1024], index: 3, kind: input, shape index: {}]
  %s4 = inlined_call_operand.hbm [shape: bf16[32,1024], index: 4, kind: output, shape index: {}]
  %s5 = sld [smem:[#allocation0]]
  $region65: #{tpu_custom_call.1} parent=0
    _
  %s7 = ssub.s32 1, %s5
  %s8 = scalar_select 0, %s7, %s5
  $region1: #{tpu_custom_call.1} parent=0
    #allocation2 [shape = 'u8[131072]{0}', space=vmem, size = 0x20000, scoped, tag = 'input window, operand 0, single buffered']
    #allocation3 [shape = 's32[2]{0}', space=sflag, size = 0x8, scoped, tag = 'scoped memory for tpu_custom_call.1']
    #allocation4 [shape = 's32[2]{0}', space=sflag, size = 0x8, scoped, tag = 'scoped memory for tpu_custom_call.1']
    #allocation5 [shape = 'u8[4194304]{0}', space=vmem, size = 0x400000, scoped, tag = 'input window, operand 1']
    #allocation6 [shape = 's32[2]{0}', space=sflag, size = 0x8, scoped, tag = 'scoped memory for tpu_custom_call.1']
    #allocation7 [shape = 'u8[4096]{0}', space=vmem, size = 0x1000, scoped, tag = 'input window, operand 2']
    #allocation8 [shape = 'u8[4096]{0}', space=vmem, size = 0x1000, scoped, tag = 'input window, operand 3']
    #allocation9 [shape = 's32[2]{0}', space=sflag, size = 0x8, scoped, tag = 'scoped memory for tpu_custom_call.1']
    #allocation10 [shape = 'u8[65536]{0}', space=vmem, size = 0x10000, scoped, tag = 'output window, operand 0']
    %9 = vsyncpa [#allocation3], 0
    %10 = vsyncpa [#allocation6], 0
    %s11 = scalar_lea.sflag [#allocation6], 1
    %12 = vsyncpa %s11, 0
    %13 = vsyncpa [#allocation9], 0
    %s14 = scalar_lea.sflag [#allocation9], 1
    %15 = vsyncpa %s14, 0
    %16 = vsyncpa [#allocation4], 0
    %s17 = scalar_lea.sflag [#allocation4], 1
    %18 = vsyncpa %s17, 0
    loop: start=0, step=1, limit=4
    $region2: #{tpu_custom_call.1} parent=1 // loop_pre_header
      _
    $region3: #{tpu_custom_call.1} parent=1 // loop_header
      %s20 = sphi 0, %s24
      %p21 = scmp.ge.s32.totalorder %s20, 4
      %s28 = sphi 0, %s28
      %s30 = sphi 0, %s28
      %s31 = sphi 0, %s30
      %s45 = sphi 0, %s31
      %s51 = sphi 0, %s53
      %s54 = sphi 0, %s51
      %s55 = sphi 0, %s54
      %s71 = sphi 0, %s55
      %s77 = sphi 0, %s79
      %s80 = sphi 0, %s77
      %s81 = sphi 0, %s80
      %s97 = sphi 0, %s81
      %s103 = sphi 0, %s105
      %s106 = sphi 0, %s103
      %s107 = sphi 0, %s106
      %s123 = sphi 0, %s107
      %s129 = sphi 0, %s131
      %s132 = sphi 0, %s129
      %s133 = sphi 0, %s132
      %s149 = sphi 0, %s133
    $region4: #{tpu_custom_call.1} parent=1 // loop_header_branch
      %23 = sbr.rel (%p21) target = $region8
    $region5: #{tpu_custom_call.1} parent=1 // loop_body
      %s25 = ssub.s32 %s20, 1
      %s26 = ssub.s32 %s20, 2
      %s27 = sadd.s32 %s20, 1
      %s29 = sadd.s32 %s28, 1
      %p32 = scmp.eq.s32.totalorder %s20, 1
      %p33 = scmp.ne.s32.totalorder %s28, %s30
      %p34 = scmp.eq.s32.totalorder %s20, 0
      %p35 = por %p33, %p34
      %p36 = scmp.ne.s32.totalorder %s28, %s30
      %p37 = scmp.eq.s32.totalorder %s25, 1
      %p38 = por %p36, %p37
      %p39 = scmp.ne.s32.totalorder %s30, %s31
      %p40 = scmp.eq.s32.totalorder %s25, 0
      %p41 = por %p39, %p40
      %p42 = scmp.ne.s32.totalorder %s30, %s31
      %p43 = scmp.eq.s32.totalorder %s26, 1
      %p44 = por %p42, %p43
      %p46 = scmp.ne.s32.totalorder %s31, %s45
      %p47 = scmp.eq.s32.totalorder %s26, 0
      %p48 = por %p46, %p47
      %s49 = ssub.s32 %s20, %s27
      %p50 = scmp.eq.s32.totalorder %s49, 0
      %s52 = sadd.s32 %s51, 1
      %s53 = scalar_select %p50, %s51, %s52
      %p56 = pneg %p50
      %p57 = scmp.eq.s32.totalorder %s20, 1
      %p58 = por %p56, %p57
      %p59 = scmp.ne.s32.totalorder %s51, %s54
      %p60 = scmp.eq.s32.totalorder %s20, 0
      %p61 = por %p59, %p60
      %p62 = scmp.ne.s32.totalorder %s51, %s54
      %p63 = scmp.eq.s32.totalorder %s25, 1
      %p64 = por %p62, %p63
      %p65 = scmp.ne.s32.totalorder %s54, %s55
      %p66 = scmp.eq.s32.totalorder %s25, 0
      %p67 = por %p65, %p66
      %p68 = scmp.ne.s32.totalorder %s54, %s55
      %p69 = scmp.eq.s32.totalorder %s26, 1
      %p70 = por %p68, %p69
      %p72 = scmp.ne.s32.totalorder %s55, %s71
      %p73 = scmp.eq.s32.totalorder %s26, 0
      %p74 = por %p72, %p73
      %s75 = ssub.s32 %s20, %s27
      %p76 = scmp.eq.s32.totalorder %s75, 0
      %s78 = sadd.s32 %s77, 1
      %s79 = scalar_select %p76, %s77, %s78
      %p82 = pneg %p76
      %p83 = scmp.eq.s32.totalorder %s20, 1
      %p84 = por %p82, %p83
      %p85 = scmp.ne.s32.totalorder %s77, %s80
      %p86 = scmp.eq.s32.totalorder %s20, 0
      %p87 = por %p85, %p86
      %p88 = scmp.ne.s32.totalorder %s77, %s80
      %p89 = scmp.eq.s32.totalorder %s25, 1
      %p90 = por %p88, %p89
      %p91 = scmp.ne.s32.totalorder %s80, %s81
      %p92 = scmp.eq.s32.totalorder %s25, 0
      %p93 = por %p91, %p92
      %p94 = scmp.ne.s32.totalorder %s80, %s81
      %p95 = scmp.eq.s32.totalorder %s26, 1
      %p96 = por %p94, %p95
      %p98 = scmp.ne.s32.totalorder %s81, %s97
      %p99 = scmp.eq.s32.totalorder %s26, 0
      %p100 = por %p98, %p99
      %s101 = ssub.s32 %s20, %s27
      %p102 = scmp.eq.s32.totalorder %s101, 0
      %s104 = sadd.s32 %s103, 1
      %s105 = scalar_select %p102, %s103, %s104
      %p108 = pneg %p102
      %p109 = scmp.eq.s32.totalorder %s20, 1
      %p110 = por %p108, %p109
      %p111 = scmp.ne.s32.totalorder %s103, %s106
      %p112 = scmp.eq.s32.totalorder %s20, 0
      %p113 = por %p111, %p112
      %p114 = scmp.ne.s32.totalorder %s103, %s106
      %p115 = scmp.eq.s32.totalorder %s25, 1
      %p116 = por %p114, %p115
      %p117 = scmp.ne.s32.totalorder %s106, %s107
      %p118 = scmp.eq.s32.totalorder %s25, 0
      %p119 = por %p117, %p118
      %p120 = scmp.ne.s32.totalorder %s106, %s107
      %p121 = scmp.eq.s32.totalorder %s26, 1
      %p122 = por %p120, %p121
      %p124 = scmp.ne.s32.totalorder %s107, %s123
      %p125 = scmp.eq.s32.totalorder %s26, 0
      %p126 = por %p124, %p125
      %s127 = ssub.s32 %s20, %s27
      %p128 = scmp.eq.s32.totalorder %s127, 0
      %s130 = sadd.s32 %s129, 1
      %s131 = scalar_select %p128, %s129, %s130
      %p134 = pneg %p128
      %p135 = scmp.eq.s32.totalorder %s20, 1
      %p136 = por %p134, %p135
      %p137 = scmp.ne.s32.totalorder %s129, %s132
      %p138 = scmp.eq.s32.totalorder %s20, 0
      %p139 = por %p137, %p138
      %p140 = scmp.ne.s32.totalorder %s129, %s132
      %p141 = scmp.eq.s32.totalorder %s25, 1
      %p142 = por %p140, %p141
      %p143 = scmp.ne.s32.totalorder %s132, %s133
      %p144 = scmp.eq.s32.totalorder %s25, 0
      %p145 = por %p143, %p144
      %p146 = scmp.ne.s32.totalorder %s132, %s133
      %p147 = scmp.eq.s32.totalorder %s26, 1
      %p148 = por %p146, %p147
      %p150 = scmp.ne.s32.totalorder %s133, %s149
      %p151 = scmp.eq.s32.totalorder %s26, 0
      %p152 = por %p150, %p151
      %p153 = scmp.le.s32.totalorder 1, %s20
      %p154 = scmp.lt.s32.totalorder %s20, 3
      %p155 = pnand %p153, %p154
      %p156 = pneg %p155
      // Predicated region
      $region9: #{tpu_custom_call.1} parent=5 // pred_check
        _
      $region10: #{tpu_custom_call.1} parent=5 // pred_check_branch
        %158 = sbr.rel (%p155) target = $region12
      $region11: #{tpu_custom_call.1} parent=5 // pred_region
        %s159 = ssub.s32 %s20, 1
        // Predicated region
        $region13: #{tpu_custom_call.1} parent=11 // pred_check
          %p160 = pneg %p41
        $region14: #{tpu_custom_call.1} parent=11 // pred_check_branch
          %162 = sbr.rel (%p160) target = $region16
        $region15: #{tpu_custom_call.1} parent=11 // pred_region
          %164 = vsyncadd [#allocation3], 0
          %s165 = sshll.u32 %s0, 4
          %s166 = int_to_ptr.hbm [resolvable:$true] %s165
          %s167 = sshll.u32 [#allocation2], 4
          %s168 = int_to_ptr.vmem [resolvable:$true] %s167
          %173 = dma.hbm_to_vmem [thread:$0]  %s166, 4096, %s168, [#allocation3], 1024, 1024, 64
        $region16: #{tpu_custom_call.1} parent=11 // pred_fallthru
          _
      $region12: #{tpu_custom_call.1} parent=5 // pred_fallthru
        _
      %p174 = scmp.lt.s32.totalorder %s20, 2
      // Predicated region
      $region17: #{tpu_custom_call.1} parent=5 // pred_check
        %p175 = pneg %p174
      $region18: #{tpu_custom_call.1} parent=5 // pred_check_branch
        %177 = sbr.rel (%p175) target = $region20
      $region19: #{tpu_custom_call.1} parent=5 // pred_region
        // Predicated region
        $region21: #{tpu_custom_call.1} parent=19 // pred_check
          %p178 = pneg %p61
        $region22: #{tpu_custom_call.1} parent=19 // pred_check_branch
          %180 = sbr.rel (%p178) target = $region24
        $region23: #{tpu_custom_call.1} parent=19 // pred_region
          %s181 = sand.u32 %s20, 1
          %s182 = scalar_lea.sflag [#allocation6], %s181
          %s183 = sand.u32 %s51, 1
          %s184 = smul.addr %s183, 4096
          %s185 = scalar_lea.vmem [#allocation5], %s184
          %s186 = smul.u32 4, %s20
          %188 = vsyncadd %s182, 0
          %s189 = smul.addr %s186, 4
          %s190 = scalar_lea.hbm %s1, %s189
          %s191 = sshll.u32 %s190, 4
          %s192 = int_to_ptr.hbm [resolvable:$true] %s191
          %s193 = sshll.u32 %s185, 4
          %s194 = int_to_ptr.vmem [resolvable:$true] %s193
          %199 = dma.hbm_to_vmem [thread:$0]  %s192, 65536, %s194, %s182, 512, 256, 16
        $region24: #{tpu_custom_call.1} parent=19 // pred_fallthru
          _
        // Predicated region
        $region25: #{tpu_custom_call.1} parent=19 // pred_check
          %p200 = pneg %p87
        $region26: #{tpu_custom_call.1} parent=19 // pred_check_branch
          %202 = sbr.rel (%p200) target = $region28
        $region27: #{tpu_custom_call.1} parent=19 // pred_region
          %s203 = sand.u32 %s20, 1
          %s204 = scalar_lea.sflag [#allocation6], %s203
          %s205 = sand.u32 %s77, 1
          %s206 = smul.addr %s205, 4
          %s207 = scalar_lea.vmem [#allocation7], %s206
          %s208 = smul.u32 4, %s20
          %210 = vsyncadd %s204, 0
          %s211 = scalar_lea.hbm %s2, %s208
          %s213 = sshll.u32 %s211, 4
          %s214 = int_to_ptr.hbm [resolvable:$true] %s213
          %s215 = sshll.u32 %s207, 4
          %s216 = int_to_ptr.vmem [resolvable:$true] %s215
          %218 = dma.hbm_to_vmem [thread:$0]  %s214, 64, %s216, %s204
        $region28: #{tpu_custom_call.1} parent=19 // pred_fallthru
          _
        // Predicated region
        $region29: #{tpu_custom_call.1} parent=19 // pred_check
          %p219 = pneg %p113
        $region30: #{tpu_custom_call.1} parent=19 // pred_check_branch
          %221 = sbr.rel (%p219) target = $region32
        $region31: #{tpu_custom_call.1} parent=19 // pred_region
          %s222 = sand.u32 %s103, 1
          %s223 = scalar_lea.sflag [#allocation9], %s222
          %s224 = sand.u32 %s103, 1
          %s225 = smul.addr %s224, 4
          %s226 = scalar_lea.vmem [#allocation8], %s225
          %s227 = smul.u32 4, %s20
          %229 = vsyncadd %s223, 0
          %s230 = scalar_lea.hbm %s3, %s227
          %s232 = sshll.u32 %s230, 4
          %s233 = int_to_ptr.hbm [resolvable:$true] %s232
          %s234 = sshll.u32 %s226, 4
          %s235 = int_to_ptr.vmem [resolvable:$true] %s234
          %237 = dma.hbm_to_vmem [thread:$0]  %s233, 64, %s235, %s223
        $region32: #{tpu_custom_call.1} parent=19 // pred_fallthru
          _
      $region20: #{tpu_custom_call.1} parent=5 // pred_fallthru
        _
      %p238 = scmp.le.s32.totalorder 1, %s20
      %p239 = scmp.lt.s32.totalorder %s20, 3
      %p240 = pnand %p238, %p239
      %p241 = pneg %p240
      // Predicated region
      $region33: #{tpu_custom_call.1} parent=5 // pred_check
        _
      $region34: #{tpu_custom_call.1} parent=5 // pred_check_branch
        %243 = sbr.rel (%p240) target = $region36
      $region35: #{tpu_custom_call.1} parent=5 // pred_region
        %s244 = ssub.s32 %s20, 1
        // Predicated region
        $region37: #{tpu_custom_call.1} parent=35 // pred_check
          %p245 = pneg %p41
        $region38: #{tpu_custom_call.1} parent=35 // pred_check_branch
          %247 = sbr.rel (%p245) target = $region40
        $region39: #{tpu_custom_call.1} parent=35 // pred_region
          %249 = dma.done [#allocation3], 4096
        $region40: #{tpu_custom_call.1} parent=35 // pred_fallthru
          _
        %s250 = sand.u32 %s25, 1
        %s251 = scalar_lea.sflag [#allocation6], %s250
        %s252 = sand.u32 %s54, 1
        %s253 = smul.addr %s252, 4096
        %s254 = scalar_lea.vmem [#allocation5], %s253
        // Predicated region
        $region41: #{tpu_custom_call.1} parent=35 // pred_check
          %p255 = pneg %p67
        $region42: #{tpu_custom_call.1} parent=35 // pred_check_branch
          %257 = sbr.rel (%p255) target = $region44
        $region43: #{tpu_custom_call.1} parent=35 // pred_region
          %259 = dma.done %s251, 65536
        $region44: #{tpu_custom_call.1} parent=35 // pred_fallthru
          _
        %s260 = sand.u32 %s25, 1
        %s261 = scalar_lea.sflag [#allocation6], %s260
        %s262 = sand.u32 %s80, 1
        %s263 = smul.addr %s262, 4
        %s264 = scalar_lea.vmem [#allocation7], %s263
        // Predicated region
        $region45: #{tpu_custom_call.1} parent=35 // pred_check
          %p265 = pneg %p93
        $region46: #{tpu_custom_call.1} parent=35 // pred_check_branch
          %267 = sbr.rel (%p265) target = $region48
        $region47: #{tpu_custom_call.1} parent=35 // pred_region
          %269 = dma.done %s261, 64
        $region48: #{tpu_custom_call.1} parent=35 // pred_fallthru
          _
        %s270 = sand.u32 %s106, 1
        %s271 = scalar_lea.sflag [#allocation9], %s270
        %s272 = sand.u32 %s106, 1
        %s273 = smul.addr %s272, 4
        %s274 = scalar_lea.vmem [#allocation8], %s273
        // Predicated region
        $region49: #{tpu_custom_call.1} parent=35 // pred_check
          %p275 = pneg %p119
        $region50: #{tpu_custom_call.1} parent=35 // pred_check_branch
          %277 = sbr.rel (%p275) target = $region52
        $region51: #{tpu_custom_call.1} parent=35 // pred_region
          %279 = dma.done %s271, 64
        $region52: #{tpu_custom_call.1} parent=35 // pred_fallthru
          _
        %p280 = pneg %p41
        %p281 = pneg %p38
        %s282 = sand.u32 %s25, 1
        %s283 = scalar_lea.sflag [#allocation6], %s282
        %s284 = sand.u32 %s54, 1
        %s285 = smul.addr %s284, 4096
        %s286 = scalar_lea.vmem [#allocation5], %s285
        %p287 = pneg %p67
        %p288 = pneg %p64
        %s289 = sand.u32 %s25, 1
        %s290 = scalar_lea.sflag [#allocation6], %s289
        %s291 = sand.u32 %s80, 1
        %s292 = smul.addr %s291, 4
        %s293 = scalar_lea.vmem [#allocation7], %s292
        %p294 = pneg %p93
        %p295 = pneg %p90
        %s296 = sand.u32 %s106, 1
        %s297 = scalar_lea.sflag [#allocation9], %s296
        %s298 = sand.u32 %s106, 1
        %s299 = smul.addr %s298, 4
        %s300 = scalar_lea.vmem [#allocation8], %s299
        %p301 = pneg %p119
        %p302 = pneg %p116
        %p303 = pneg %p145
        %p304 = pneg %p142
        %s305 = sand.u32 %s132, 1
        %s306 = scalar_lea.sflag [#allocation4], %s305
        %s307 = sand.u32 %s132, 1
        %s308 = smul.addr %s307, 64
        %s309 = scalar_lea.vmem [#allocation10], %s308
        %s310 = smul.u32 4, %s25
        %s311 = smul.u32 4, %s25
        %s312 = smul.u32 4, %s25
        %s313 = smul.u32 4, %s25
        %v314 = vld [vmem:[#allocation2] sm:$0xff]
        %v315 = vld [vmem:[#allocation2 + $0x8] sm:$0xff]
        %v316 = vld [vmem:[#allocation2 + $0x10] sm:$0xff]
        %v317 = vld [vmem:[#allocation2 + $0x18] sm:$0xff]
        %v318 = vld [vmem:[#allocation2 + $0x20] sm:$0xff]
        %v319 = vld [vmem:[#allocation2 + $0x28] sm:$0xff]
        %v320 = vld [vmem:[#allocation2 + $0x30] sm:$0xff]
        %v321 = vld [vmem:[#allocation2 + $0x38] sm:$0xff]
        %v322 = vld [vmem:[#allocation2 + $0x40] sm:$0xff]
        %v323 = vld [vmem:[#allocation2 + $0x48] sm:$0xff]
        %v324 = vld [vmem:[#allocation2 + $0x50] sm:$0xff]
        %v325 = vld [vmem:[#allocation2 + $0x58] sm:$0xff]
        %v326 = vld [vmem:[#allocation2 + $0x60] sm:$0xff]
        %v327 = vld [vmem:[#allocation2 + $0x68] sm:$0xff]
        %v328 = vld [vmem:[#allocation2 + $0x70] sm:$0xff]
        %v329 = vld [vmem:[#allocation2 + $0x78] sm:$0xff]
        %v330 = vld [vmem:[#allocation2 + $0x80] sm:$0xff]
        %v331 = vld [vmem:[#allocation2 + $0x88] sm:$0xff]
        %v332 = vld [vmem:[#allocation2 + $0x90] sm:$0xff]
        %v333 = vld [vmem:[#allocation2 + $0x98] sm:$0xff]
        %v334 = vld [vmem:[#allocation2 + $0xa0] sm:$0xff]
        %v335 = vld [vmem:[#allocation2 + $0xa8] sm:$0xff]
        %v336 = vld [vmem:[#allocation2 + $0xb0] sm:$0xff]
        %v337 = vld [vmem:[#allocation2 + $0xb8] sm:$0xff]
        %v338 = vld [vmem:[#allocation2 + $0xc0] sm:$0xff]
        %v339 = vld [vmem:[#allocation2 + $0xc8] sm:$0xff]
        %v340 = vld [vmem:[#allocation2 + $0xd0] sm:$0xff]
        %v341 = vld [vmem:[#allocation2 + $0xd8] sm:$0xff]
        %v342 = vld [vmem:[#allocation2 + $0xe0] sm:$0xff]
        %v343 = vld [vmem:[#allocation2 + $0xe8] sm:$0xff]
        %v344 = vld [vmem:[#allocation2 + $0xf0] sm:$0xff]
        %v345 = vld [vmem:[#allocation2 + $0xf8] sm:$0xff]
        %v346 = vld [vmem:[%s254] sm:$0xff]
        %v347 = vld [vmem:[%s254 + $0x8] sm:$0xff]
        %v348 = vld [vmem:[%s254 + $0x10] sm:$0xff]
        %v349 = vld [vmem:[%s254 + $0x18] sm:$0xff]
        %v350 = vld [vmem:[%s254 + $0x20] sm:$0xff]
        %v351 = vld [vmem:[%s254 + $0x28] sm:$0xff]
        %v352 = vld [vmem:[%s254 + $0x30] sm:$0xff]
        %v353 = vld [vmem:[%s254 + $0x38] sm:$0xff]
        %v354 = vld [vmem:[%s254 + $0x40] sm:$0xff]
        %v355 = vld [vmem:[%s254 + $0x48] sm:$0xff]
        %v356 = vld [vmem:[%s254 + $0x50] sm:$0xff]
        %v357 = vld [vmem:[%s254 + $0x58] sm:$0xff]
        %v358 = vld [vmem:[%s254 + $0x60] sm:$0xff]
        %v359 = vld [vmem:[%s254 + $0x68] sm:$0xff]
        %v360 = vld [vmem:[%s254 + $0x70] sm:$0xff]
        %v361 = vld [vmem:[%s254 + $0x78] sm:$0xff]
        %v362 = vld [vmem:[%s254 + $0x80] sm:$0xff]
        %v363 = vld [vmem:[%s254 + $0x88] sm:$0xff]
        %v364 = vld [vmem:[%s254 + $0x90] sm:$0xff]
        %v365 = vld [vmem:[%s254 + $0x98] sm:$0xff]
        %v366 = vld [vmem:[%s254 + $0xa0] sm:$0xff]
        %v367 = vld [vmem:[%s254 + $0xa8] sm:$0xff]
        %v368 = vld [vmem:[%s254 + $0xb0] sm:$0xff]
        %v369 = vld [vmem:[%s254 + $0xb8] sm:$0xff]
        %v370 = vld [vmem:[%s254 + $0xc0] sm:$0xff]
        %v371 = vld [vmem:[%s254 + $0xc8] sm:$0xff]
        %v372 = vld [vmem:[%s254 + $0xd0] sm:$0xff]
        %v373 = vld [vmem:[%s254 + $0xd8] sm:$0xff]
        %v374 = vld [vmem:[%s254 + $0xe0] sm:$0xff]
        %v375 = vld [vmem:[%s254 + $0xe8] sm:$0xff]
        %v376 = vld [vmem:[%s254 + $0xf0] sm:$0xff]
        %v377 = vld [vmem:[%s254 + $0xf8] sm:$0xff]
        %v378 = vld [vmem:[%s254 + $0x100] sm:$0xff]
        %v379 = vld [vmem:[%s254 + $0x108] sm:$0xff]
        %v380 = vld [vmem:[%s254 + $0x110] sm:$0xff]
        %v381 = vld [vmem:[%s254 + $0x118] sm:$0xff]
        %v382 = vld [vmem:[%s254 + $0x120] sm:$0xff]
        %v383 = vld [vmem:[%s254 + $0x128] sm:$0xff]
        %v384 = vld [vmem:[%s254 + $0x130] sm:$0xff]
        %v385 = vld [vmem:[%s254 + $0x138] sm:$0xff]
        %v386 = vld [vmem:[%s254 + $0x140] sm:$0xff]
        %v387 = vld [vmem:[%s254 + $0x148] sm:$0xff]
        %v388 = vld [vmem:[%s254 + $0x150] sm:$0xff]
        %v389 = vld [vmem:[%s254 + $0x158] sm:$0xff]
        %v390 = vld [vmem:[%s254 + $0x160] sm:$0xff]
        %v391 = vld [vmem:[%s254 + $0x168] sm:$0xff]
        %v392 = vld [vmem:[%s254 + $0x170] sm:$0xff]
        %v393 = vld [vmem:[%s254 + $0x178] sm:$0xff]
        %v394 = vld [vmem:[%s254 + $0x180] sm:$0xff]
        %v395 = vld [vmem:[%s254 + $0x188] sm:$0xff]
        %v396 = vld [vmem:[%s254 + $0x190] sm:$0xff]
        %v397 = vld [vmem:[%s254 + $0x198] sm:$0xff]
        %v398 = vld [vmem:[%s254 + $0x1a0] sm:$0xff]
        %v399 = vld [vmem:[%s254 + $0x1a8] sm:$0xff]
        %v400 = vld [vmem:[%s254 + $0x1b0] sm:$0xff]
        %v401 = vld [vmem:[%s254 + $0x1b8] sm:$0xff]
        %v402 = vld [vmem:[%s254 + $0x1c0] sm:$0xff]
        %v403 = vld [vmem:[%s254 + $0x1c8] sm:$0xff]
        %v404 = vld [vmem:[%s254 + $0x1d0] sm:$0xff]
        %v405 = vld [vmem:[%s254 + $0x1d8] sm:$0xff]
        %v406 = vld [vmem:[%s254 + $0x1e0] sm:$0xff]
        %v407 = vld [vmem:[%s254 + $0x1e8] sm:$0xff]
        %v408 = vld [vmem:[%s254 + $0x1f0] sm:$0xff]
        %v409 = vld [vmem:[%s254 + $0x1f8] sm:$0xff]
        %v410 = vld [vmem:[%s254 + $0x200] sm:$0xff]
        %v411 = vld [vmem:[%s254 + $0x208] sm:$0xff]
        %v412 = vld [vmem:[%s254 + $0x210] sm:$0xff]
        %v413 = vld [vmem:[%s254 + $0x218] sm:$0xff]
        %v414 = vld [vmem:[%s254 + $0x220] sm:$0xff]
        %v415 = vld [vmem:[%s254 + $0x228] sm:$0xff]
        %v416 = vld [vmem:[%s254 + $0x230] sm:$0xff]
        %v417 = vld [vmem:[%s254 + $0x238] sm:$0xff]
        %v418 = vld [vmem:[%s254 + $0x240] sm:$0xff]
        %v419 = vld [vmem:[%s254 + $0x248] sm:$0xff]
        %v420 = vld [vmem:[%s254 + $0x250] sm:$0xff]
        %v421 = vld [vmem:[%s254 + $0x258] sm:$0xff]
        %v422 = vld [vmem:[%s254 + $0x260] sm:$0xff]
        %v423 = vld [vmem:[%s254 + $0x268] sm:$0xff]
        %v424 = vld [vmem:[%s254 + $0x270] sm:$0xff]
        %v425 = vld [vmem:[%s254 + $0x278] sm:$0xff]
        %v426 = vld [vmem:[%s254 + $0x280] sm:$0xff]
        %v427 = vld [vmem:[%s254 + $0x288] sm:$0xff]
        %v428 = vld [vmem:[%s254 + $0x290] sm:$0xff]
        %v429 = vld [vmem:[%s254 + $0x298] sm:$0xff]
        %v430 = vld [vmem:[%s254 + $0x2a0] sm:$0xff]
        %v431 = vld [vmem:[%s254 + $0x2a8] sm:$0xff]
        %v432 = vld [vmem:[%s254 + $0x2b0] sm:$0xff]
        %v433 = vld [vmem:[%s254 + $0x2b8] sm:$0xff]
        %v434 = vld [vmem:[%s254 + $0x2c0] sm:$0xff]
        %v435 = vld [vmem:[%s254 + $0x2c8] sm:$0xff]
        %v436 = vld [vmem:[%s254 + $0x2d0] sm:$0xff]
        %v437 = vld [vmem:[%s254 + $0x2d8] sm:$0xff]
        %v438 = vld [vmem:[%s254 + $0x2e0] sm:$0xff]
        %v439 = vld [vmem:[%s254 + $0x2e8] sm:$0xff]
        %v440 = vld [vmem:[%s254 + $0x2f0] sm:$0xff]
        %v441 = vld [vmem:[%s254 + $0x2f8] sm:$0xff]
        %v442 = vld [vmem:[%s254 + $0x300] sm:$0xff]
        %v443 = vld [vmem:[%s254 + $0x308] sm:$0xff]
        %v444 = vld [vmem:[%s254 + $0x310] sm:$0xff]
        %v445 = vld [vmem:[%s254 + $0x318] sm:$0xff]
        %v446 = vld [vmem:[%s254 + $0x320] sm:$0xff]
        %v447 = vld [vmem:[%s254 + $0x328] sm:$0xff]
        %v448 = vld [vmem:[%s254 + $0x330] sm:$0xff]
        %v449 = vld [vmem:[%s254 + $0x338] sm:$0xff]
        %v450 = vld [vmem:[%s254 + $0x340] sm:$0xff]
        %v451 = vld [vmem:[%s254 + $0x348] sm:$0xff]
        %v452 = vld [vmem:[%s254 + $0x350] sm:$0xff]
        %v453 = vld [vmem:[%s254 + $0x358] sm:$0xff]
        %v454 = vld [vmem:[%s254 + $0x360] sm:$0xff]
        %v455 = vld [vmem:[%s254 + $0x368] sm:$0xff]
        %v456 = vld [vmem:[%s254 + $0x370] sm:$0xff]
        %v457 = vld [vmem:[%s254 + $0x378] sm:$0xff]
        %v458 = vld [vmem:[%s254 + $0x380] sm:$0xff]
        %v459 = vld [vmem:[%s254 + $0x388] sm:$0xff]
        %v460 = vld [vmem:[%s254 + $0x390] sm:$0xff]
        %v461 = vld [vmem:[%s254 + $0x398] sm:$0xff]
        %v462 = vld [vmem:[%s254 + $0x3a0] sm:$0xff]
        %v463 = vld [vmem:[%s254 + $0x3a8] sm:$0xff]
        %v464 = vld [vmem:[%s254 + $0x3b0] sm:$0xff]
        %v465 = vld [vmem:[%s254 + $0x3b8] sm:$0xff]
        %v466 = vld [vmem:[%s254 + $0x3c0] sm:$0xff]
        %v467 = vld [vmem:[%s254 + $0x3c8] sm:$0xff]
        %v468 = vld [vmem:[%s254 + $0x3d0] sm:$0xff]
        %v469 = vld [vmem:[%s254 + $0x3d8] sm:$0xff]
        %v470 = vld [vmem:[%s254 + $0x3e0] sm:$0xff]
        %v471 = vld [vmem:[%s254 + $0x3e8] sm:$0xff]
        %v472 = vld [vmem:[%s254 + $0x3f0] sm:$0xff]
        %v473 = vld [vmem:[%s254 + $0x3f8] sm:$0xff]
        %v474 = vld [vmem:[%s254 + $0x400] sm:$0xff]
        %v475 = vld [vmem:[%s254 + $0x408] sm:$0xff]
        %v476 = vld [vmem:[%s254 + $0x410] sm:$0xff]
        %v477 = vld [vmem:[%s254 + $0x418] sm:$0xff]
        %v478 = vld [vmem:[%s254 + $0x420] sm:$0xff]
        %v479 = vld [vmem:[%s254 + $0x428] sm:$0xff]
        %v480 = vld [vmem:[%s254 + $0x430] sm:$0xff]
        %v481 = vld [vmem:[%s254 + $0x438] sm:$0xff]
        %v482 = vld [vmem:[%s254 + $0x440] sm:$0xff]
        %v483 = vld [vmem:[%s254 + $0x448] sm:$0xff]
        %v484 = vld [vmem:[%s254 + $0x450] sm:$0xff]
        %v485 = vld [vmem:[%s254 + $0x458] sm:$0xff]
        %v486 = vld [vmem:[%s254 + $0x460] sm:$0xff]
        %v487 = vld [vmem:[%s254 + $0x468] sm:$0xff]
        %v488 = vld [vmem:[%s254 + $0x470] sm:$0xff]
        %v489 = vld [vmem:[%s254 + $0x478] sm:$0xff]
        %v490 = vld [vmem:[%s254 + $0x480] sm:$0xff]
        %v491 = vld [vmem:[%s254 + $0x488] sm:$0xff]
        %v492 = vld [vmem:[%s254 + $0x490] sm:$0xff]
        %v493 = vld [vmem:[%s254 + $0x498] sm:$0xff]
        %v494 = vld [vmem:[%s254 + $0x4a0] sm:$0xff]
        %v495 = vld [vmem:[%s254 + $0x4a8] sm:$0xff]
        %v496 = vld [vmem:[%s254 + $0x4b0] sm:$0xff]
        %v497 = vld [vmem:[%s254 + $0x4b8] sm:$0xff]
        %v498 = vld [vmem:[%s254 + $0x4c0] sm:$0xff]
        %v499 = vld [vmem:[%s254 + $0x4c8] sm:$0xff]
        %v500 = vld [vmem:[%s254 + $0x4d0] sm:$0xff]
        %v501 = vld [vmem:[%s254 + $0x4d8] sm:$0xff]
        %v502 = vld [vmem:[%s254 + $0x4e0] sm:$0xff]
        %v503 = vld [vmem:[%s254 + $0x4e8] sm:$0xff]
        %v504 = vld [vmem:[%s254 + $0x4f0] sm:$0xff]
        %v505 = vld [vmem:[%s254 + $0x4f8] sm:$0xff]
        %v506 = vld [vmem:[%s254 + $0x500] sm:$0xff]
        %v507 = vld [vmem:[%s254 + $0x508] sm:$0xff]
        %v508 = vld [vmem:[%s254 + $0x510] sm:$0xff]
        %v509 = vld [vmem:[%s254 + $0x518] sm:$0xff]
        %v510 = vld [vmem:[%s254 + $0x520] sm:$0xff]
        %v511 = vld [vmem:[%s254 + $0x528] sm:$0xff]
        %v512 = vld [vmem:[%s254 + $0x530] sm:$0xff]
        %v513 = vld [vmem:[%s254 + $0x538] sm:$0xff]
        %v514 = vld [vmem:[%s254 + $0x540] sm:$0xff]
        %v515 = vld [vmem:[%s254 + $0x548] sm:$0xff]
        %v516 = vld [vmem:[%s254 + $0x550] sm:$0xff]
        %v517 = vld [vmem:[%s254 + $0x558] sm:$0xff]
        %v518 = vld [vmem:[%s254 + $0x560] sm:$0xff]
        %v519 = vld [vmem:[%s254 + $0x568] sm:$0xff]
        %v520 = vld [vmem:[%s254 + $0x570] sm:$0xff]
        %v521 = vld [vmem:[%s254 + $0x578] sm:$0xff]
        %v522 = vld [vmem:[%s254 + $0x580] sm:$0xff]
        %v523 = vld [vmem:[%s254 + $0x588] sm:$0xff]
        %v524 = vld [vmem:[%s254 + $0x590] sm:$0xff]
        %v525 = vld [vmem:[%s254 + $0x598] sm:$0xff]
        %v526 = vld [vmem:[%s254 + $0x5a0] sm:$0xff]
        %v527 = vld [vmem:[%s254 + $0x5a8] sm:$0xff]
        %v528 = vld [vmem:[%s254 + $0x5b0] sm:$0xff]
        %v529 = vld [vmem:[%s254 + $0x5b8] sm:$0xff]
        %v530 = vld [vmem:[%s254 + $0x5c0] sm:$0xff]
        %v531 = vld [vmem:[%s254 + $0x5c8] sm:$0xff]
        %v532 = vld [vmem:[%s254 + $0x5d0] sm:$0xff]
        %v533 = vld [vmem:[%s254 + $0x5d8] sm:$0xff]
        %v534 = vld [vmem:[%s254 + $0x5e0] sm:$0xff]
        %v535 = vld [vmem:[%s254 + $0x5e8] sm:$0xff]
        %v536 = vld [vmem:[%s254 + $0x5f0] sm:$0xff]
        %v537 = vld [vmem:[%s254 + $0x5f8] sm:$0xff]
        %v538 = vld [vmem:[%s254 + $0x600] sm:$0xff]
        %v539 = vld [vmem:[%s254 + $0x608] sm:$0xff]
        %v540 = vld [vmem:[%s254 + $0x610] sm:$0xff]
        %v541 = vld [vmem:[%s254 + $0x618] sm:$0xff]
        %v542 = vld [vmem:[%s254 + $0x620] sm:$0xff]
        %v543 = vld [vmem:[%s254 + $0x628] sm:$0xff]
        %v544 = vld [vmem:[%s254 + $0x630] sm:$0xff]
        %v545 = vld [vmem:[%s254 + $0x638] sm:$0xff]
        %v546 = vld [vmem:[%s254 + $0x640] sm:$0xff]
        %v547 = vld [vmem:[%s254 + $0x648] sm:$0xff]
        %v548 = vld [vmem:[%s254 + $0x650] sm:$0xff]
        %v549 = vld [vmem:[%s254 + $0x658] sm:$0xff]
        %v550 = vld [vmem:[%s254 + $0x660] sm:$0xff]
        %v551 = vld [vmem:[%s254 + $0x668] sm:$0xff]
        %v552 = vld [vmem:[%s254 + $0x670] sm:$0xff]
        %v553 = vld [vmem:[%s254 + $0x678] sm:$0xff]
        %v554 = vld [vmem:[%s254 + $0x680] sm:$0xff]
        %v555 = vld [vmem:[%s254 + $0x688] sm:$0xff]
        %v556 = vld [vmem:[%s254 + $0x690] sm:$0xff]
        %v557 = vld [vmem:[%s254 + $0x698] sm:$0xff]
        %v558 = vld [vmem:[%s254 + $0x6a0] sm:$0xff]
        %v559 = vld [vmem:[%s254 + $0x6a8] sm:$0xff]
        %v560 = vld [vmem:[%s254 + $0x6b0] sm:$0xff]
        %v561 = vld [vmem:[%s254 + $0x6b8] sm:$0xff]
        %v562 = vld [vmem:[%s254 + $0x6c0] sm:$0xff]
        %v563 = vld [vmem:[%s254 + $0x6c8] sm:$0xff]
        %v564 = vld [vmem:[%s254 + $0x6d0] sm:$0xff]
        %v565 = vld [vmem:[%s254 + $0x6d8] sm:$0xff]
        %v566 = vld [vmem:[%s254 + $0x6e0] sm:$0xff]
        %v567 = vld [vmem:[%s254 + $0x6e8] sm:$0xff]
        %v568 = vld [vmem:[%s254 + $0x6f0] sm:$0xff]
        %v569 = vld [vmem:[%s254 + $0x6f8] sm:$0xff]
        %v570 = vld [vmem:[%s254 + $0x700] sm:$0xff]
        %v571 = vld [vmem:[%s254 + $0x708] sm:$0xff]
        %v572 = vld [vmem:[%s254 + $0x710] sm:$0xff]
        %v573 = vld [vmem:[%s254 + $0x718] sm:$0xff]
        %v574 = vld [vmem:[%s254 + $0x720] sm:$0xff]
        %v575 = vld [vmem:[%s254 + $0x728] sm:$0xff]
        %v576 = vld [vmem:[%s254 + $0x730] sm:$0xff]
        %v577 = vld [vmem:[%s254 + $0x738] sm:$0xff]
        %v578 = vld [vmem:[%s254 + $0x740] sm:$0xff]
        %v579 = vld [vmem:[%s254 + $0x748] sm:$0xff]
        %v580 = vld [vmem:[%s254 + $0x750] sm:$0xff]
        %v581 = vld [vmem:[%s254 + $0x758] sm:$0xff]
        %v582 = vld [vmem:[%s254 + $0x760] sm:$0xff]
        %v583 = vld [vmem:[%s254 + $0x768] sm:$0xff]
        %v584 = vld [vmem:[%s254 + $0x770] sm:$0xff]
        %v585 = vld [vmem:[%s254 + $0x778] sm:$0xff]
        %v586 = vld [vmem:[%s254 + $0x780] sm:$0xff]
        %v587 = vld [vmem:[%s254 + $0x788] sm:$0xff]
        %v588 = vld [vmem:[%s254 + $0x790] sm:$0xff]
        %v589 = vld [vmem:[%s254 + $0x798] sm:$0xff]
        %v590 = vld [vmem:[%s254 + $0x7a0] sm:$0xff]
        %v591 = vld [vmem:[%s254 + $0x7a8] sm:$0xff]
        %v592 = vld [vmem:[%s254 + $0x7b0] sm:$0xff]
        %v593 = vld [vmem:[%s254 + $0x7b8] sm:$0xff]
        %v594 = vld [vmem:[%s254 + $0x7c0] sm:$0xff]
        %v595 = vld [vmem:[%s254 + $0x7c8] sm:$0xff]
        %v596 = vld [vmem:[%s254 + $0x7d0] sm:$0xff]
        %v597 = vld [vmem:[%s254 + $0x7d8] sm:$0xff]
        %v598 = vld [vmem:[%s254 + $0x7e0] sm:$0xff]
        %v599 = vld [vmem:[%s254 + $0x7e8] sm:$0xff]
        %v600 = vld [vmem:[%s254 + $0x7f0] sm:$0xff]
        %v601 = vld [vmem:[%s254 + $0x7f8] sm:$0xff]
        %v602 = vld [vmem:[%s254 + $0x800] sm:$0xff]
        %v603 = vld [vmem:[%s254 + $0x808] sm:$0xff]
        %v604 = vld [vmem:[%s254 + $0x810] sm:$0xff]
        %v605 = vld [vmem:[%s254 + $0x818] sm:$0xff]
        %v606 = vld [vmem:[%s254 + $0x820] sm:$0xff]
        %v607 = vld [vmem:[%s254 + $0x828] sm:$0xff]
        %v608 = vld [vmem:[%s254 + $0x830] sm:$0xff]
        %v609 = vld [vmem:[%s254 + $0x838] sm:$0xff]
        %v610 = vld [vmem:[%s254 + $0x840] sm:$0xff]
        %v611 = vld [vmem:[%s254 + $0x848] sm:$0xff]
        %v612 = vld [vmem:[%s254 + $0x850] sm:$0xff]
        %v613 = vld [vmem:[%s254 + $0x858] sm:$0xff]
        %v614 = vld [vmem:[%s254 + $0x860] sm:$0xff]
        %v615 = vld [vmem:[%s254 + $0x868] sm:$0xff]
        %v616 = vld [vmem:[%s254 + $0x870] sm:$0xff]
        %v617 = vld [vmem:[%s254 + $0x878] sm:$0xff]
        %v618 = vld [vmem:[%s254 + $0x880] sm:$0xff]
        %v619 = vld [vmem:[%s254 + $0x888] sm:$0xff]
        %v620 = vld [vmem:[%s254 + $0x890] sm:$0xff]
        %v621 = vld [vmem:[%s254 + $0x898] sm:$0xff]
        %v622 = vld [vmem:[%s254 + $0x8a0] sm:$0xff]
        %v623 = vld [vmem:[%s254 + $0x8a8] sm:$0xff]
        %v624 = vld [vmem:[%s254 + $0x8b0] sm:$0xff]
        %v625 = vld [vmem:[%s254 + $0x8b8] sm:$0xff]
        %v626 = vld [vmem:[%s254 + $0x8c0] sm:$0xff]
        %v627 = vld [vmem:[%s254 + $0x8c8] sm:$0xff]
        %v628 = vld [vmem:[%s254 + $0x8d0] sm:$0xff]
        %v629 = vld [vmem:[%s254 + $0x8d8] sm:$0xff]
        %v630 = vld [vmem:[%s254 + $0x8e0] sm:$0xff]
        %v631 = vld [vmem:[%s254 + $0x8e8] sm:$0xff]
        %v632 = vld [vmem:[%s254 + $0x8f0] sm:$0xff]
        %v633 = vld [vmem:[%s254 + $0x8f8] sm:$0xff]
        %v634 = vld [vmem:[%s254 + $0x900] sm:$0xff]
        %v635 = vld [vmem:[%s254 + $0x908] sm:$0xff]
        %v636 = vld [vmem:[%s254 + $0x910] sm:$0xff]
        %v637 = vld [vmem:[%s254 + $0x918] sm:$0xff]
        %v638 = vld [vmem:[%s254 + $0x920] sm:$0xff]
        %v639 = vld [vmem:[%s254 + $0x928] sm:$0xff]
        %v640 = vld [vmem:[%s254 + $0x930] sm:$0xff]
        %v641 = vld [vmem:[%s254 + $0x938] sm:$0xff]
        %v642 = vld [vmem:[%s254 + $0x940] sm:$0xff]
        %v643 = vld [vmem:[%s254 + $0x948] sm:$0xff]
        %v644 = vld [vmem:[%s254 + $0x950] sm:$0xff]
        %v645 = vld [vmem:[%s254 + $0x958] sm:$0xff]
        %v646 = vld [vmem:[%s254 + $0x960] sm:$0xff]
        %v647 = vld [vmem:[%s254 + $0x968] sm:$0xff]
        %v648 = vld [vmem:[%s254 + $0x970] sm:$0xff]
        %v649 = vld [vmem:[%s254 + $0x978] sm:$0xff]
        %v650 = vld [vmem:[%s254 + $0x980] sm:$0xff]
        %v651 = vld [vmem:[%s254 + $0x988] sm:$0xff]
        %v652 = vld [vmem:[%s254 + $0x990] sm:$0xff]
        %v653 = vld [vmem:[%s254 + $0x998] sm:$0xff]
        %v654 = vld [vmem:[%s254 + $0x9a0] sm:$0xff]
        %v655 = vld [vmem:[%s254 + $0x9a8] sm:$0xff]
        %v656 = vld [vmem:[%s254 + $0x9b0] sm:$0xff]
        %v657 = vld [vmem:[%s254 + $0x9b8] sm:$0xff]
        %v658 = vld [vmem:[%s254 + $0x9c0] sm:$0xff]
        %v659 = vld [vmem:[%s254 + $0x9c8] sm:$0xff]
        %v660 = vld [vmem:[%s254 + $0x9d0] sm:$0xff]
        %v661 = vld [vmem:[%s254 + $0x9d8] sm:$0xff]
        %v662 = vld [vmem:[%s254 + $0x9e0] sm:$0xff]
        %v663 = vld [vmem:[%s254 + $0x9e8] sm:$0xff]
        %v664 = vld [vmem:[%s254 + $0x9f0] sm:$0xff]
        %v665 = vld [vmem:[%s254 + $0x9f8] sm:$0xff]
        %v666 = vld [vmem:[%s254 + $0xa00] sm:$0xff]
        %v667 = vld [vmem:[%s254 + $0xa08] sm:$0xff]
        %v668 = vld [vmem:[%s254 + $0xa10] sm:$0xff]
        %v669 = vld [vmem:[%s254 + $0xa18] sm:$0xff]
        %v670 = vld [vmem:[%s254 + $0xa20] sm:$0xff]
        %v671 = vld [vmem:[%s254 + $0xa28] sm:$0xff]
        %v672 = vld [vmem:[%s254 + $0xa30] sm:$0xff]
        %v673 = vld [vmem:[%s254 + $0xa38] sm:$0xff]
        %v674 = vld [vmem:[%s254 + $0xa40] sm:$0xff]
        %v675 = vld [vmem:[%s254 + $0xa48] sm:$0xff]
        %v676 = vld [vmem:[%s254 + $0xa50] sm:$0xff]
        %v677 = vld [vmem:[%s254 + $0xa58] sm:$0xff]
        %v678 = vld [vmem:[%s254 + $0xa60] sm:$0xff]
        %v679 = vld [vmem:[%s254 + $0xa68] sm:$0xff]
        %v680 = vld [vmem:[%s254 + $0xa70] sm:$0xff]
        %v681 = vld [vmem:[%s254 + $0xa78] sm:$0xff]
        %v682 = vld [vmem:[%s254 + $0xa80] sm:$0xff]
        %v683 = vld [vmem:[%s254 + $0xa88] sm:$0xff]
        %v684 = vld [vmem:[%s254 + $0xa90] sm:$0xff]
        %v685 = vld [vmem:[%s254 + $0xa98] sm:$0xff]
        %v686 = vld [vmem:[%s254 + $0xaa0] sm:$0xff]
        %v687 = vld [vmem:[%s254 + $0xaa8] sm:$0xff]
        %v688 = vld [vmem:[%s254 + $0xab0] sm:$0xff]
        %v689 = vld [vmem:[%s254 + $0xab8] sm:$0xff]
        %v690 = vld [vmem:[%s254 + $0xac0] sm:$0xff]
        %v691 = vld [vmem:[%s254 + $0xac8] sm:$0xff]
        %v692 = vld [vmem:[%s254 + $0xad0] sm:$0xff]
        %v693 = vld [vmem:[%s254 + $0xad8] sm:$0xff]
        %v694 = vld [vmem:[%s254 + $0xae0] sm:$0xff]
        %v695 = vld [vmem:[%s254 + $0xae8] sm:$0xff]
        %v696 = vld [vmem:[%s254 + $0xaf0] sm:$0xff]
        %v697 = vld [vmem:[%s254 + $0xaf8] sm:$0xff]
        %v698 = vld [vmem:[%s254 + $0xb00] sm:$0xff]
        %v699 = vld [vmem:[%s254 + $0xb08] sm:$0xff]
        %v700 = vld [vmem:[%s254 + $0xb10] sm:$0xff]
        %v701 = vld [vmem:[%s254 + $0xb18] sm:$0xff]
        %v702 = vld [vmem:[%s254 + $0xb20] sm:$0xff]
        %v703 = vld [vmem:[%s254 + $0xb28] sm:$0xff]
        %v704 = vld [vmem:[%s254 + $0xb30] sm:$0xff]
        %v705 = vld [vmem:[%s254 + $0xb38] sm:$0xff]
        %v706 = vld [vmem:[%s254 + $0xb40] sm:$0xff]
        %v707 = vld [vmem:[%s254 + $0xb48] sm:$0xff]
        %v708 = vld [vmem:[%s254 + $0xb50] sm:$0xff]
        %v709 = vld [vmem:[%s254 + $0xb58] sm:$0xff]
        %v710 = vld [vmem:[%s254 + $0xb60] sm:$0xff]
        %v711 = vld [vmem:[%s254 + $0xb68] sm:$0xff]
        %v712 = vld [vmem:[%s254 + $0xb70] sm:$0xff]
        %v713 = vld [vmem:[%s254 + $0xb78] sm:$0xff]
        %v714 = vld [vmem:[%s254 + $0xb80] sm:$0xff]
        %v715 = vld [vmem:[%s254 + $0xb88] sm:$0xff]
        %v716 = vld [vmem:[%s254 + $0xb90] sm:$0xff]
        %v717 = vld [vmem:[%s254 + $0xb98] sm:$0xff]
        %v718 = vld [vmem:[%s254 + $0xba0] sm:$0xff]
        %v719 = vld [vmem:[%s254 + $0xba8] sm:$0xff]
        %v720 = vld [vmem:[%s254 + $0xbb0] sm:$0xff]
        %v721 = vld [vmem:[%s254 + $0xbb8] sm:$0xff]
        %v722 = vld [vmem:[%s254 + $0xbc0] sm:$0xff]
        %v723 = vld [vmem:[%s254 + $0xbc8] sm:$0xff]
        %v724 = vld [vmem:[%s254 + $0xbd0] sm:$0xff]
        %v725 = vld [vmem:[%s254 + $0xbd8] sm:$0xff]
        %v726 = vld [vmem:[%s254 + $0xbe0] sm:$0xff]
        %v727 = vld [vmem:[%s254 + $0xbe8] sm:$0xff]
        %v728 = vld [vmem:[%s254 + $0xbf0] sm:$0xff]
        %v729 = vld [vmem:[%s254 + $0xbf8] sm:$0xff]
        %v730 = vld [vmem:[%s254 + $0xc00] sm:$0xff]
        %v731 = vld [vmem:[%s254 + $0xc08] sm:$0xff]
        %v732 = vld [vmem:[%s254 + $0xc10] sm:$0xff]
        %v733 = vld [vmem:[%s254 + $0xc18] sm:$0xff]
        %v734 = vld [vmem:[%s254 + $0xc20] sm:$0xff]
        %v735 = vld [vmem:[%s254 + $0xc28] sm:$0xff]
        %v736 = vld [vmem:[%s254 + $0xc30] sm:$0xff]
        %v737 = vld [vmem:[%s254 + $0xc38] sm:$0xff]
        %v738 = vld [vmem:[%s254 + $0xc40] sm:$0xff]
        %v739 = vld [vmem:[%s254 + $0xc48] sm:$0xff]
        %v740 = vld [vmem:[%s254 + $0xc50] sm:$0xff]
        %v741 = vld [vmem:[%s254 + $0xc58] sm:$0xff]
        %v742 = vld [vmem:[%s254 + $0xc60] sm:$0xff]
        %v743 = vld [vmem:[%s254 + $0xc68] sm:$0xff]
        %v744 = vld [vmem:[%s254 + $0xc70] sm:$0xff]
        %v745 = vld [vmem:[%s254 + $0xc78] sm:$0xff]
        %v746 = vld [vmem:[%s254 + $0xc80] sm:$0xff]
        %v747 = vld [vmem:[%s254 + $0xc88] sm:$0xff]
        %v748 = vld [vmem:[%s254 + $0xc90] sm:$0xff]
        %v749 = vld [vmem:[%s254 + $0xc98] sm:$0xff]
        %v750 = vld [vmem:[%s254 + $0xca0] sm:$0xff]
        %v751 = vld [vmem:[%s254 + $0xca8] sm:$0xff]
        %v752 = vld [vmem:[%s254 + $0xcb0] sm:$0xff]
        %v753 = vld [vmem:[%s254 + $0xcb8] sm:$0xff]
        %v754 = vld [vmem:[%s254 + $0xcc0] sm:$0xff]
        %v755 = vld [vmem:[%s254 + $0xcc8] sm:$0xff]
        %v756 = vld [vmem:[%s254 + $0xcd0] sm:$0xff]
        %v757 = vld [vmem:[%s254 + $0xcd8] sm:$0xff]
        %v758 = vld [vmem:[%s254 + $0xce0] sm:$0xff]
        %v759 = vld [vmem:[%s254 + $0xce8] sm:$0xff]
        %v760 = vld [vmem:[%s254 + $0xcf0] sm:$0xff]
        %v761 = vld [vmem:[%s254 + $0xcf8] sm:$0xff]
        %v762 = vld [vmem:[%s254 + $0xd00] sm:$0xff]
        %v763 = vld [vmem:[%s254 + $0xd08] sm:$0xff]
        %v764 = vld [vmem:[%s254 + $0xd10] sm:$0xff]
        %v765 = vld [vmem:[%s254 + $0xd18] sm:$0xff]
        %v766 = vld [vmem:[%s254 + $0xd20] sm:$0xff]
        %v767 = vld [vmem:[%s254 + $0xd28] sm:$0xff]
        %v768 = vld [vmem:[%s254 + $0xd30] sm:$0xff]
        %v769 = vld [vmem:[%s254 + $0xd38] sm:$0xff]
        %v770 = vld [vmem:[%s254 + $0xd40] sm:$0xff]
        %v771 = vld [vmem:[%s254 + $0xd48] sm:$0xff]
        %v772 = vld [vmem:[%s254 + $0xd50] sm:$0xff]
        %v773 = vld [vmem:[%s254 + $0xd58] sm:$0xff]
        %v774 = vld [vmem:[%s254 + $0xd60] sm:$0xff]
        %v775 = vld [vmem:[%s254 + $0xd68] sm:$0xff]
        %v776 = vld [vmem:[%s254 + $0xd70] sm:$0xff]
        %v777 = vld [vmem:[%s254 + $0xd78] sm:$0xff]
        %v778 = vld [vmem:[%s254 + $0xd80] sm:$0xff]
        %v779 = vld [vmem:[%s254 + $0xd88] sm:$0xff]
        %v780 = vld [vmem:[%s254 + $0xd90] sm:$0xff]
        %v781 = vld [vmem:[%s254 + $0xd98] sm:$0xff]
        %v782 = vld [vmem:[%s254 + $0xda0] sm:$0xff]
        %v783 = vld [vmem:[%s254 + $0xda8] sm:$0xff]
        %v784 = vld [vmem:[%s254 + $0xdb0] sm:$0xff]
        %v785 = vld [vmem:[%s254 + $0xdb8] sm:$0xff]
        %v786 = vld [vmem:[%s254 + $0xdc0] sm:$0xff]
        %v787 = vld [vmem:[%s254 + $0xdc8] sm:$0xff]
        %v788 = vld [vmem:[%s254 + $0xdd0] sm:$0xff]
        %v789 = vld [vmem:[%s254 + $0xdd8] sm:$0xff]
        %v790 = vld [vmem:[%s254 + $0xde0] sm:$0xff]
        %v791 = vld [vmem:[%s254 + $0xde8] sm:$0xff]
        %v792 = vld [vmem:[%s254 + $0xdf0] sm:$0xff]
        %v793 = vld [vmem:[%s254 + $0xdf8] sm:$0xff]
        %v794 = vld [vmem:[%s254 + $0xe00] sm:$0xff]
        %v795 = vld [vmem:[%s254 + $0xe08] sm:$0xff]
        %v796 = vld [vmem:[%s254 + $0xe10] sm:$0xff]
        %v797 = vld [vmem:[%s254 + $0xe18] sm:$0xff]
        %v798 = vld [vmem:[%s254 + $0xe20] sm:$0xff]
        %v799 = vld [vmem:[%s254 + $0xe28] sm:$0xff]
        %v800 = vld [vmem:[%s254 + $0xe30] sm:$0xff]
        %v801 = vld [vmem:[%s254 + $0xe38] sm:$0xff]
        %v802 = vld [vmem:[%s254 + $0xe40] sm:$0xff]
        %v803 = vld [vmem:[%s254 + $0xe48] sm:$0xff]
        %v804 = vld [vmem:[%s254 + $0xe50] sm:$0xff]
        %v805 = vld [vmem:[%s254 + $0xe58] sm:$0xff]
        %v806 = vld [vmem:[%s254 + $0xe60] sm:$0xff]
        %v807 = vld [vmem:[%s254 + $0xe68] sm:$0xff]
        %v808 = vld [vmem:[%s254 + $0xe70] sm:$0xff]
        %v809 = vld [vmem:[%s254 + $0xe78] sm:$0xff]
        %v810 = vld [vmem:[%s254 + $0xe80] sm:$0xff]
        %v811 = vld [vmem:[%s254 + $0xe88] sm:$0xff]
        %v812 = vld [vmem:[%s254 + $0xe90] sm:$0xff]
        %v813 = vld [vmem:[%s254 + $0xe98] sm:$0xff]
        %v814 = vld [vmem:[%s254 + $0xea0] sm:$0xff]
        %v815 = vld [vmem:[%s254 + $0xea8] sm:$0xff]
        %v816 = vld [vmem:[%s254 + $0xeb0] sm:$0xff]
        %v817 = vld [vmem:[%s254 + $0xeb8] sm:$0xff]
        %v818 = vld [vmem:[%s254 + $0xec0] sm:$0xff]
        %v819 = vld [vmem:[%s254 + $0xec8] sm:$0xff]
        %v820 = vld [vmem:[%s254 + $0xed0] sm:$0xff]
        %v821 = vld [vmem:[%s254 + $0xed8] sm:$0xff]
        %v822 = vld [vmem:[%s254 + $0xee0] sm:$0xff]
        %v823 = vld [vmem:[%s254 + $0xee8] sm:$0xff]
        %v824 = vld [vmem:[%s254 + $0xef0] sm:$0xff]
        %v825 = vld [vmem:[%s254 + $0xef8] sm:$0xff]
        %v826 = vld [vmem:[%s254 + $0xf00] sm:$0xff]
        %v827 = vld [vmem:[%s254 + $0xf08] sm:$0xff]
        %v828 = vld [vmem:[%s254 + $0xf10] sm:$0xff]
        %v829 = vld [vmem:[%s254 + $0xf18] sm:$0xff]
        %v830 = vld [vmem:[%s254 + $0xf20] sm:$0xff]
        %v831 = vld [vmem:[%s254 + $0xf28] sm:$0xff]
        %v832 = vld [vmem:[%s254 + $0xf30] sm:$0xff]
        %v833 = vld [vmem:[%s254 + $0xf38] sm:$0xff]
        %v834 = vld [vmem:[%s254 + $0xf40] sm:$0xff]
        %v835 = vld [vmem:[%s254 + $0xf48] sm:$0xff]
        %v836 = vld [vmem:[%s254 + $0xf50] sm:$0xff]
        %v837 = vld [vmem:[%s254 + $0xf58] sm:$0xff]
        %v838 = vld [vmem:[%s254 + $0xf60] sm:$0xff]
        %v839 = vld [vmem:[%s254 + $0xf68] sm:$0xff]
        %v840 = vld [vmem:[%s254 + $0xf70] sm:$0xff]
        %v841 = vld [vmem:[%s254 + $0xf78] sm:$0xff]
        %v842 = vld [vmem:[%s254 + $0xf80] sm:$0xff]
        %v843 = vld [vmem:[%s254 + $0xf88] sm:$0xff]
        %v844 = vld [vmem:[%s254 + $0xf90] sm:$0xff]
        %v845 = vld [vmem:[%s254 + $0xf98] sm:$0xff]
        %v846 = vld [vmem:[%s254 + $0xfa0] sm:$0xff]
        %v847 = vld [vmem:[%s254 + $0xfa8] sm:$0xff]
        %v848 = vld [vmem:[%s254 + $0xfb0] sm:$0xff]
        %v849 = vld [vmem:[%s254 + $0xfb8] sm:$0xff]
        %v850 = vld [vmem:[%s254 + $0xfc0] sm:$0xff]
        %v851 = vld [vmem:[%s254 + $0xfc8] sm:$0xff]
        %v852 = vld [vmem:[%s254 + $0xfd0] sm:$0xff]
        %v853 = vld [vmem:[%s254 + $0xfd8] sm:$0xff]
        %v854 = vld [vmem:[%s254 + $0xfe0] sm:$0xff]
        %v855 = vld [vmem:[%s254 + $0xfe8] sm:$0xff]
        %v856 = vld [vmem:[%s254 + $0xff0] sm:$0xff]
        %v857 = vld [vmem:[%s254 + $0xff8] sm:$0xff]
        %v890 = vunpack.c.l.b16 %v314
        %v891 = vunpack.c.h.b16 %v314
        %v892 = vunpack.c.l.b16 %v315
        %v893 = vunpack.c.h.b16 %v315
        %v894 = vunpack.c.l.b16 %v316
        %v895 = vunpack.c.h.b16 %v316
        %v896 = vunpack.c.l.b16 %v317
        %v897 = vunpack.c.h.b16 %v317
        %v898 = vunpack.c.l.b16 %v318
        %v899 = vunpack.c.h.b16 %v318
        %v900 = vunpack.c.l.b16 %v319
        %v901 = vunpack.c.h.b16 %v319
        %v902 = vunpack.c.l.b16 %v320
        %v903 = vunpack.c.h.b16 %v320
        %v904 = vunpack.c.l.b16 %v321
        %v905 = vunpack.c.h.b16 %v321
        %v906 = vunpack.c.l.b16 %v322
        %v907 = vunpack.c.h.b16 %v322
        %v908 = vunpack.c.l.b16 %v323
        %v909 = vunpack.c.h.b16 %v323
        %v910 = vunpack.c.l.b16 %v324
        %v911 = vunpack.c.h.b16 %v324
        %v912 = vunpack.c.l.b16 %v325
        %v913 = vunpack.c.h.b16 %v325
        %v914 = vunpack.c.l.b16 %v326
        %v915 = vunpack.c.h.b16 %v326
        %v916 = vunpack.c.l.b16 %v327
        %v917 = vunpack.c.h.b16 %v327
        %v918 = vunpack.c.l.b16 %v328
        %v919 = vunpack.c.h.b16 %v328
        %v920 = vunpack.c.l.b16 %v329
        %v921 = vunpack.c.h.b16 %v329
        %v922 = vunpack.c.l.b16 %v330
        %v923 = vunpack.c.h.b16 %v330
        %v924 = vunpack.c.l.b16 %v331
        %v925 = vunpack.c.h.b16 %v331
        %v926 = vunpack.c.l.b16 %v332
        %v927 = vunpack.c.h.b16 %v332
        %v928 = vunpack.c.l.b16 %v333
        %v929 = vunpack.c.h.b16 %v333
        %v930 = vunpack.c.l.b16 %v334
        %v931 = vunpack.c.h.b16 %v334
        %v932 = vunpack.c.l.b16 %v335
        %v933 = vunpack.c.h.b16 %v335
        %v934 = vunpack.c.l.b16 %v336
        %v935 = vunpack.c.h.b16 %v336
        %v936 = vunpack.c.l.b16 %v337
        %v937 = vunpack.c.h.b16 %v337
        %v938 = vunpack.c.l.b16 %v338
        %v939 = vunpack.c.h.b16 %v338
        %v940 = vunpack.c.l.b16 %v339
        %v941 = vunpack.c.h.b16 %v339
        %v942 = vunpack.c.l.b16 %v340
        %v943 = vunpack.c.h.b16 %v340
        %v944 = vunpack.c.l.b16 %v341
        %v945 = vunpack.c.h.b16 %v341
        %v946 = vunpack.c.l.b16 %v342
        %v947 = vunpack.c.h.b16 %v342
        %v948 = vunpack.c.l.b16 %v343
        %v949 = vunpack.c.h.b16 %v343
        %v950 = vunpack.c.l.b16 %v344
        %v951 = vunpack.c.h.b16 %v344
        %v952 = vunpack.c.l.b16 %v345
        %v953 = vunpack.c.h.b16 %v345
        %v954 = vpack.c.b16 %v906, %v890
        %v955 = vpack.c.b16 %v907, %v891
        %v956 = vpack.c.b16 %v908, %v892
        %v957 = vpack.c.b16 %v909, %v893
        %v958 = vpack.c.b16 %v910, %v894
        %v959 = vpack.c.b16 %v911, %v895
        %v960 = vpack.c.b16 %v912, %v896
        %v961 = vpack.c.b16 %v913, %v897
        %v962 = vpack.c.b16 %v914, %v898
        %v963 = vpack.c.b16 %v915, %v899
        %v964 = vpack.c.b16 %v916, %v900
        %v965 = vpack.c.b16 %v917, %v901
        %v966 = vpack.c.b16 %v918, %v902
        %v967 = vpack.c.b16 %v919, %v903
        %v968 = vpack.c.b16 %v920, %v904
        %v969 = vpack.c.b16 %v921, %v905
        %v970 = vpack.c.b16 %v938, %v922
        %v971 = vpack.c.b16 %v939, %v923
        %v972 = vpack.c.b16 %v940, %v924
        %v973 = vpack.c.b16 %v941, %v925
        %v974 = vpack.c.b16 %v942, %v926
        %v975 = vpack.c.b16 %v943, %v927
        %v976 = vpack.c.b16 %v944, %v928
        %v977 = vpack.c.b16 %v945, %v929
        %v978 = vpack.c.b16 %v946, %v930
        %v979 = vpack.c.b16 %v947, %v931
        %v980 = vpack.c.b16 %v948, %v932
        %v981 = vpack.c.b16 %v949, %v933
        %v982 = vpack.c.b16 %v950, %v934
        %v983 = vpack.c.b16 %v951, %v935
        %v984 = vpack.c.b16 %v952, %v936
        %v985 = vpack.c.b16 %v953, %v937
        %v1530 = vunpack.c.l.b16 %v346
        %v1531 = vunpack.c.h.b16 %v346
        %v1532 = vunpack.c.l.b16 %v347
        %v1533 = vunpack.c.h.b16 %v347
        %v1534 = vunpack.c.l.b16 %v348
        %v1535 = vunpack.c.h.b16 %v348
        %v1536 = vunpack.c.l.b16 %v349
        %v1537 = vunpack.c.h.b16 %v349
        %v1538 = vunpack.c.l.b16 %v350
        %v1539 = vunpack.c.h.b16 %v350
        %v1540 = vunpack.c.l.b16 %v351
        %v1541 = vunpack.c.h.b16 %v351
        %v1542 = vunpack.c.l.b16 %v352
        %v1543 = vunpack.c.h.b16 %v352
        %v1544 = vunpack.c.l.b16 %v353
        %v1545 = vunpack.c.h.b16 %v353
        %v1546 = vunpack.c.l.b16 %v354
        %v1547 = vunpack.c.h.b16 %v354
        %v1548 = vunpack.c.l.b16 %v355
        %v1549 = vunpack.c.h.b16 %v355
        %v1550 = vunpack.c.l.b16 %v356
        %v1551 = vunpack.c.h.b16 %v356
        %v1552 = vunpack.c.l.b16 %v357
        %v1553 = vunpack.c.h.b16 %v357
        %v1554 = vunpack.c.l.b16 %v358
        %v1555 = vunpack.c.h.b16 %v358
        %v1556 = vunpack.c.l.b16 %v359
        %v1557 = vunpack.c.h.b16 %v359
        %v1558 = vunpack.c.l.b16 %v360
        %v1559 = vunpack.c.h.b16 %v360
        %v1560 = vunpack.c.l.b16 %v361
        %v1561 = vunpack.c.h.b16 %v361
        %v1562 = vunpack.c.l.b16 %v362
        %v1563 = vunpack.c.h.b16 %v362
        %v1564 = vunpack.c.l.b16 %v363
        %v1565 = vunpack.c.h.b16 %v363
        %v1566 = vunpack.c.l.b16 %v364
        %v1567 = vunpack.c.h.b16 %v364
        %v1568 = vunpack.c.l.b16 %v365
        %v1569 = vunpack.c.h.b16 %v365
        %v1570 = vunpack.c.l.b16 %v366
        %v1571 = vunpack.c.h.b16 %v366
        %v1572 = vunpack.c.l.b16 %v367
        %v1573 = vunpack.c.h.b16 %v367
        %v1574 = vunpack.c.l.b16 %v368
        %v1575 = vunpack.c.h.b16 %v368
        %v1576 = vunpack.c.l.b16 %v369
        %v1577 = vunpack.c.h.b16 %v369
        %v1578 = vunpack.c.l.b16 %v370
        %v1579 = vunpack.c.h.b16 %v370
        %v1580 = vunpack.c.l.b16 %v371
        %v1581 = vunpack.c.h.b16 %v371
        %v1582 = vunpack.c.l.b16 %v372
        %v1583 = vunpack.c.h.b16 %v372
        %v1584 = vunpack.c.l.b16 %v373
        %v1585 = vunpack.c.h.b16 %v373
        %v1586 = vunpack.c.l.b16 %v374
        %v1587 = vunpack.c.h.b16 %v374
        %v1588 = vunpack.c.l.b16 %v375
        %v1589 = vunpack.c.h.b16 %v375
        %v1590 = vunpack.c.l.b16 %v376
        %v1591 = vunpack.c.h.b16 %v376
        %v1592 = vunpack.c.l.b16 %v377
        %v1593 = vunpack.c.h.b16 %v377
        %v1594 = vunpack.c.l.b16 %v378
        %v1595 = vunpack.c.h.b16 %v378
        %v1596 = vunpack.c.l.b16 %v379
        %v1597 = vunpack.c.h.b16 %v379
        %v1598 = vunpack.c.l.b16 %v380
        %v1599 = vunpack.c.h.b16 %v380
        %v1600 = vunpack.c.l.b16 %v381
        %v1601 = vunpack.c.h.b16 %v381
        %v1602 = vunpack.c.l.b16 %v382
        %v1603 = vunpack.c.h.b16 %v382
        %v1604 = vunpack.c.l.b16 %v383
        %v1605 = vunpack.c.h.b16 %v383
        %v1606 = vunpack.c.l.b16 %v384
        %v1607 = vunpack.c.h.b16 %v384
        %v1608 = vunpack.c.l.b16 %v385
        %v1609 = vunpack.c.h.b16 %v385
        %v1610 = vunpack.c.l.b16 %v386
        %v1611 = vunpack.c.h.b16 %v386
        %v1612 = vunpack.c.l.b16 %v387
        %v1613 = vunpack.c.h.b16 %v387
        %v1614 = vunpack.c.l.b16 %v388
        %v1615 = vunpack.c.h.b16 %v388
        %v1616 = vunpack.c.l.b16 %v389
        %v1617 = vunpack.c.h.b16 %v389
        %v1618 = vunpack.c.l.b16 %v390
        %v1619 = vunpack.c.h.b16 %v390
        %v1620 = vunpack.c.l.b16 %v391
        %v1621 = vunpack.c.h.b16 %v391
        %v1622 = vunpack.c.l.b16 %v392
        %v1623 = vunpack.c.h.b16 %v392
        %v1624 = vunpack.c.l.b16 %v393
        %v1625 = vunpack.c.h.b16 %v393
        %v1626 = vunpack.c.l.b16 %v394
        %v1627 = vunpack.c.h.b16 %v394
        %v1628 = vunpack.c.l.b16 %v395
        %v1629 = vunpack.c.h.b16 %v395
        %v1630 = vunpack.c.l.b16 %v396
        %v1631 = vunpack.c.h.b16 %v396
        %v1632 = vunpack.c.l.b16 %v397
        %v1633 = vunpack.c.h.b16 %v397
        %v1634 = vunpack.c.l.b16 %v398
        %v1635 = vunpack.c.h.b16 %v398
        %v1636 = vunpack.c.l.b16 %v399
        %v1637 = vunpack.c.h.b16 %v399
        %v1638 = vunpack.c.l.b16 %v400
        %v1639 = vunpack.c.h.b16 %v400
        %v1640 = vunpack.c.l.b16 %v401
        %v1641 = vunpack.c.h.b16 %v401
        %v1642 = vunpack.c.l.b16 %v402
        %v1643 = vunpack.c.h.b16 %v402
        %v1644 = vunpack.c.l.b16 %v403
        %v1645 = vunpack.c.h.b16 %v403
        %v1646 = vunpack.c.l.b16 %v404
        %v1647 = vunpack.c.h.b16 %v404
        %v1648 = vunpack.c.l.b16 %v405
        %v1649 = vunpack.c.h.b16 %v405
        %v1650 = vunpack.c.l.b16 %v406
        %v1651 = vunpack.c.h.b16 %v406
        %v1652 = vunpack.c.l.b16 %v407
        %v1653 = vunpack.c.h.b16 %v407
        %v1654 = vunpack.c.l.b16 %v408
        %v1655 = vunpack.c.h.b16 %v408
        %v1656 = vunpack.c.l.b16 %v409
        %v1657 = vunpack.c.h.b16 %v409
        %v1658 = vunpack.c.l.b16 %v410
        %v1659 = vunpack.c.h.b16 %v410
        %v1660 = vunpack.c.l.b16 %v411
        %v1661 = vunpack.c.h.b16 %v411
        %v1662 = vunpack.c.l.b16 %v412
        %v1663 = vunpack.c.h.b16 %v412
        %v1664 = vunpack.c.l.b16 %v413
        %v1665 = vunpack.c.h.b16 %v413
        %v1666 = vunpack.c.l.b16 %v414
        %v1667 = vunpack.c.h.b16 %v414
        %v1668 = vunpack.c.l.b16 %v415
        %v1669 = vunpack.c.h.b16 %v415
        %v1670 = vunpack.c.l.b16 %v416
        %v1671 = vunpack.c.h.b16 %v416
        %v1672 = vunpack.c.l.b16 %v417
        %v1673 = vunpack.c.h.b16 %v417
        %v1674 = vunpack.c.l.b16 %v418
        %v1675 = vunpack.c.h.b16 %v418
        %v1676 = vunpack.c.l.b16 %v419
        %v1677 = vunpack.c.h.b16 %v419
        %v1678 = vunpack.c.l.b16 %v420
        %v1679 = vunpack.c.h.b16 %v420
        %v1680 = vunpack.c.l.b16 %v421
        %v1681 = vunpack.c.h.b16 %v421
        %v1682 = vunpack.c.l.b16 %v422
        %v1683 = vunpack.c.h.b16 %v422
        %v1684 = vunpack.c.l.b16 %v423
        %v1685 = vunpack.c.h.b16 %v423
        %v1686 = vunpack.c.l.b16 %v424
        %v1687 = vunpack.c.h.b16 %v424
        %v1688 = vunpack.c.l.b16 %v425
        %v1689 = vunpack.c.h.b16 %v425
        %v1690 = vunpack.c.l.b16 %v426
        %v1691 = vunpack.c.h.b16 %v426
        %v1692 = vunpack.c.l.b16 %v427
        %v1693 = vunpack.c.h.b16 %v427
        %v1694 = vunpack.c.l.b16 %v428
        %v1695 = vunpack.c.h.b16 %v428
        %v1696 = vunpack.c.l.b16 %v429
        %v1697 = vunpack.c.h.b16 %v429
        %v1698 = vunpack.c.l.b16 %v430
        %v1699 = vunpack.c.h.b16 %v430
        %v1700 = vunpack.c.l.b16 %v431
        %v1701 = vunpack.c.h.b16 %v431
        %v1702 = vunpack.c.l.b16 %v432
        %v1703 = vunpack.c.h.b16 %v432
        %v1704 = vunpack.c.l.b16 %v433
        %v1705 = vunpack.c.h.b16 %v433
        %v1706 = vunpack.c.l.b16 %v434
        %v1707 = vunpack.c.h.b16 %v434
        %v1708 = vunpack.c.l.b16 %v435
        %v1709 = vunpack.c.h.b16 %v435
        %v1710 = vunpack.c.l.b16 %v436
        %v1711 = vunpack.c.h.b16 %v436
        %v1712 = vunpack.c.l.b16 %v437
        %v1713 = vunpack.c.h.b16 %v437
        %v1714 = vunpack.c.l.b16 %v438
        %v1715 = vunpack.c.h.b16 %v438
        %v1716 = vunpack.c.l.b16 %v439
        %v1717 = vunpack.c.h.b16 %v439
        %v1718 = vunpack.c.l.b16 %v440
        %v1719 = vunpack.c.h.b16 %v440
        %v1720 = vunpack.c.l.b16 %v441
        %v1721 = vunpack.c.h.b16 %v441
        %v1722 = vunpack.c.l.b16 %v442
        %v1723 = vunpack.c.h.b16 %v442
        %v1724 = vunpack.c.l.b16 %v443
        %v1725 = vunpack.c.h.b16 %v443
        %v1726 = vunpack.c.l.b16 %v444
        %v1727 = vunpack.c.h.b16 %v444
        %v1728 = vunpack.c.l.b16 %v445
        %v1729 = vunpack.c.h.b16 %v445
        %v1730 = vunpack.c.l.b16 %v446
        %v1731 = vunpack.c.h.b16 %v446
        %v1732 = vunpack.c.l.b16 %v447
        %v1733 = vunpack.c.h.b16 %v447
        %v1734 = vunpack.c.l.b16 %v448
        %v1735 = vunpack.c.h.b16 %v448
        %v1736 = vunpack.c.l.b16 %v449
        %v1737 = vunpack.c.h.b16 %v449
        %v1738 = vunpack.c.l.b16 %v450
        %v1739 = vunpack.c.h.b16 %v450
        %v1740 = vunpack.c.l.b16 %v451
        %v1741 = vunpack.c.h.b16 %v451
        %v1742 = vunpack.c.l.b16 %v452
        %v1743 = vunpack.c.h.b16 %v452
        %v1744 = vunpack.c.l.b16 %v453
        %v1745 = vunpack.c.h.b16 %v453
        %v1746 = vunpack.c.l.b16 %v454
        %v1747 = vunpack.c.h.b16 %v454
        %v1748 = vunpack.c.l.b16 %v455
        %v1749 = vunpack.c.h.b16 %v455
        %v1750 = vunpack.c.l.b16 %v456
        %v1751 = vunpack.c.h.b16 %v456
        %v1752 = vunpack.c.l.b16 %v457
        %v1753 = vunpack.c.h.b16 %v457
        %v1754 = vunpack.c.l.b16 %v458
        %v1755 = vunpack.c.h.b16 %v458
        %v1756 = vunpack.c.l.b16 %v459
        %v1757 = vunpack.c.h.b16 %v459
        %v1758 = vunpack.c.l.b16 %v460
        %v1759 = vunpack.c.h.b16 %v460
        %v1760 = vunpack.c.l.b16 %v461
        %v1761 = vunpack.c.h.b16 %v461
        %v1762 = vunpack.c.l.b16 %v462
        %v1763 = vunpack.c.h.b16 %v462
        %v1764 = vunpack.c.l.b16 %v463
        %v1765 = vunpack.c.h.b16 %v463
        %v1766 = vunpack.c.l.b16 %v464
        %v1767 = vunpack.c.h.b16 %v464
        %v1768 = vunpack.c.l.b16 %v465
        %v1769 = vunpack.c.h.b16 %v465
        %v1770 = vunpack.c.l.b16 %v466
        %v1771 = vunpack.c.h.b16 %v466
        %v1772 = vunpack.c.l.b16 %v467
        %v1773 = vunpack.c.h.b16 %v467
        %v1774 = vunpack.c.l.b16 %v468
        %v1775 = vunpack.c.h.b16 %v468
        %v1776 = vunpack.c.l.b16 %v469
        %v1777 = vunpack.c.h.b16 %v469
        %v1778 = vunpack.c.l.b16 %v470
        %v1779 = vunpack.c.h.b16 %v470
        %v1780 = vunpack.c.l.b16 %v471
        %v1781 = vunpack.c.h.b16 %v471
        %v1782 = vunpack.c.l.b16 %v472
        %v1783 = vunpack.c.h.b16 %v472
        %v1784 = vunpack.c.l.b16 %v473
        %v1785 = vunpack.c.h.b16 %v473
        %v1786 = vunpack.c.l.b16 %v474
        %v1787 = vunpack.c.h.b16 %v474
        %v1788 = vunpack.c.l.b16 %v475
        %v1789 = vunpack.c.h.b16 %v475
        %v1790 = vunpack.c.l.b16 %v476
        %v1791 = vunpack.c.h.b16 %v476
        %v1792 = vunpack.c.l.b16 %v477
        %v1793 = vunpack.c.h.b16 %v477
        %v1794 = vunpack.c.l.b16 %v478
        %v1795 = vunpack.c.h.b16 %v478
        %v1796 = vunpack.c.l.b16 %v479
        %v1797 = vunpack.c.h.b16 %v479
        %v1798 = vunpack.c.l.b16 %v480
        %v1799 = vunpack.c.h.b16 %v480
        %v1800 = vunpack.c.l.b16 %v481
        %v1801 = vunpack.c.h.b16 %v481
        %v1802 = vunpack.c.l.b16 %v482
        %v1803 = vunpack.c.h.b16 %v482
        %v1804 = vunpack.c.l.b16 %v483
        %v1805 = vunpack.c.h.b16 %v483
        %v1806 = vunpack.c.l.b16 %v484
        %v1807 = vunpack.c.h.b16 %v484
        %v1808 = vunpack.c.l.b16 %v485
        %v1809 = vunpack.c.h.b16 %v485
        %v1810 = vunpack.c.l.b16 %v486
        %v1811 = vunpack.c.h.b16 %v486
        %v1812 = vunpack.c.l.b16 %v487
        %v1813 = vunpack.c.h.b16 %v487
        %v1814 = vunpack.c.l.b16 %v488
        %v1815 = vunpack.c.h.b16 %v488
        %v1816 = vunpack.c.l.b16 %v489
        %v1817 = vunpack.c.h.b16 %v489
        %v1818 = vunpack.c.l.b16 %v490
        %v1819 = vunpack.c.h.b16 %v490
        %v1820 = vunpack.c.l.b16 %v491
        %v1821 = vunpack.c.h.b16 %v491
        %v1822 = vunpack.c.l.b16 %v492
        %v1823 = vunpack.c.h.b16 %v492
        %v1824 = vunpack.c.l.b16 %v493
        %v1825 = vunpack.c.h.b16 %v493
        %v1826 = vunpack.c.l.b16 %v494
        %v1827 = vunpack.c.h.b16 %v494
        %v1828 = vunpack.c.l.b16 %v495
        %v1829 = vunpack.c.h.b16 %v495
        %v1830 = vunpack.c.l.b16 %v496
        %v1831 = vunpack.c.h.b16 %v496
        %v1832 = vunpack.c.l.b16 %v497
        %v1833 = vunpack.c.h.b16 %v497
        %v1834 = vunpack.c.l.b16 %v498
        %v1835 = vunpack.c.h.b16 %v498
        %v1836 = vunpack.c.l.b16 %v499
        %v1837 = vunpack.c.h.b16 %v499
        %v1838 = vunpack.c.l.b16 %v500
        %v1839 = vunpack.c.h.b16 %v500
        %v1840 = vunpack.c.l.b16 %v501
        %v1841 = vunpack.c.h.b16 %v501
        %v1842 = vunpack.c.l.b16 %v502
        %v1843 = vunpack.c.h.b16 %v502
        %v1844 = vunpack.c.l.b16 %v503
        %v1845 = vunpack.c.h.b16 %v503
        %v1846 = vunpack.c.l.b16 %v504
        %v1847 = vunpack.c.h.b16 %v504
        %v1848 = vunpack.c.l.b16 %v505
        %v1849 = vunpack.c.h.b16 %v505
        %v1850 = vunpack.c.l.b16 %v506
        %v1851 = vunpack.c.h.b16 %v506
        %v1852 = vunpack.c.l.b16 %v507
        %v1853 = vunpack.c.h.b16 %v507
        %v1854 = vunpack.c.l.b16 %v508
        %v1855 = vunpack.c.h.b16 %v508
        %v1856 = vunpack.c.l.b16 %v509
        %v1857 = vunpack.c.h.b16 %v509
        %v1858 = vunpack.c.l.b16 %v510
        %v1859 = vunpack.c.h.b16 %v510
        %v1860 = vunpack.c.l.b16 %v511
        %v1861 = vunpack.c.h.b16 %v511
        %v1862 = vunpack.c.l.b16 %v512
        %v1863 = vunpack.c.h.b16 %v512
        %v1864 = vunpack.c.l.b16 %v513
        %v1865 = vunpack.c.h.b16 %v513
        %v1866 = vunpack.c.l.b16 %v514
        %v1867 = vunpack.c.h.b16 %v514
        %v1868 = vunpack.c.l.b16 %v515
        %v1869 = vunpack.c.h.b16 %v515
        %v1870 = vunpack.c.l.b16 %v516
        %v1871 = vunpack.c.h.b16 %v516
        %v1872 = vunpack.c.l.b16 %v517
        %v1873 = vunpack.c.h.b16 %v517
        %v1874 = vunpack.c.l.b16 %v518
        %v1875 = vunpack.c.h.b16 %v518
        %v1876 = vunpack.c.l.b16 %v519
        %v1877 = vunpack.c.h.b16 %v519
        %v1878 = vunpack.c.l.b16 %v520
        %v1879 = vunpack.c.h.b16 %v520
        %v1880 = vunpack.c.l.b16 %v521
        %v1881 = vunpack.c.h.b16 %v521
        %v1882 = vunpack.c.l.b16 %v522
        %v1883 = vunpack.c.h.b16 %v522
        %v1884 = vunpack.c.l.b16 %v523
        %v1885 = vunpack.c.h.b16 %v523
        %v1886 = vunpack.c.l.b16 %v524
        %v1887 = vunpack.c.h.b16 %v524
        %v1888 = vunpack.c.l.b16 %v525
        %v1889 = vunpack.c.h.b16 %v525
        %v1890 = vunpack.c.l.b16 %v526
        %v1891 = vunpack.c.h.b16 %v526
        %v1892 = vunpack.c.l.b16 %v527
        %v1893 = vunpack.c.h.b16 %v527
        %v1894 = vunpack.c.l.b16 %v528
        %v1895 = vunpack.c.h.b16 %v528
        %v1896 = vunpack.c.l.b16 %v529
        %v1897 = vunpack.c.h.b16 %v529
        %v1898 = vunpack.c.l.b16 %v530
        %v1899 = vunpack.c.h.b16 %v530
        %v1900 = vunpack.c.l.b16 %v531
        %v1901 = vunpack.c.h.b16 %v531
        %v1902 = vunpack.c.l.b16 %v532
        %v1903 = vunpack.c.h.b16 %v532
        %v1904 = vunpack.c.l.b16 %v533
        %v1905 = vunpack.c.h.b16 %v533
        %v1906 = vunpack.c.l.b16 %v534
        %v1907 = vunpack.c.h.b16 %v534
        %v1908 = vunpack.c.l.b16 %v535
        %v1909 = vunpack.c.h.b16 %v535
        %v1910 = vunpack.c.l.b16 %v536
        %v1911 = vunpack.c.h.b16 %v536
        %v1912 = vunpack.c.l.b16 %v537
        %v1913 = vunpack.c.h.b16 %v537
        %v1914 = vunpack.c.l.b16 %v538
        %v1915 = vunpack.c.h.b16 %v538
        %v1916 = vunpack.c.l.b16 %v539
        %v1917 = vunpack.c.h.b16 %v539
        %v1918 = vunpack.c.l.b16 %v540
        %v1919 = vunpack.c.h.b16 %v540
        %v1920 = vunpack.c.l.b16 %v541
        %v1921 = vunpack.c.h.b16 %v541
        %v1922 = vunpack.c.l.b16 %v542
        %v1923 = vunpack.c.h.b16 %v542
        %v1924 = vunpack.c.l.b16 %v543
        %v1925 = vunpack.c.h.b16 %v543
        %v1926 = vunpack.c.l.b16 %v544
        %v1927 = vunpack.c.h.b16 %v544
        %v1928 = vunpack.c.l.b16 %v545
        %v1929 = vunpack.c.h.b16 %v545
        %v1930 = vunpack.c.l.b16 %v546
        %v1931 = vunpack.c.h.b16 %v546
        %v1932 = vunpack.c.l.b16 %v547
        %v1933 = vunpack.c.h.b16 %v547
        %v1934 = vunpack.c.l.b16 %v548
        %v1935 = vunpack.c.h.b16 %v548
        %v1936 = vunpack.c.l.b16 %v549
        %v1937 = vunpack.c.h.b16 %v549
        %v1938 = vunpack.c.l.b16 %v550
        %v1939 = vunpack.c.h.b16 %v550
        %v1940 = vunpack.c.l.b16 %v551
        %v1941 = vunpack.c.h.b16 %v551
        %v1942 = vunpack.c.l.b16 %v552
        %v1943 = vunpack.c.h.b16 %v552
        %v1944 = vunpack.c.l.b16 %v553
        %v1945 = vunpack.c.h.b16 %v553
        %v1946 = vunpack.c.l.b16 %v554
        %v1947 = vunpack.c.h.b16 %v554
        %v1948 = vunpack.c.l.b16 %v555
        %v1949 = vunpack.c.h.b16 %v555
        %v1950 = vunpack.c.l.b16 %v556
        %v1951 = vunpack.c.h.b16 %v556
        %v1952 = vunpack.c.l.b16 %v557
        %v1953 = vunpack.c.h.b16 %v557
        %v1954 = vunpack.c.l.b16 %v558
        %v1955 = vunpack.c.h.b16 %v558
        %v1956 = vunpack.c.l.b16 %v559
        %v1957 = vunpack.c.h.b16 %v559
        %v1958 = vunpack.c.l.b16 %v560
        %v1959 = vunpack.c.h.b16 %v560
        %v1960 = vunpack.c.l.b16 %v561
        %v1961 = vunpack.c.h.b16 %v561
        %v1962 = vunpack.c.l.b16 %v562
        %v1963 = vunpack.c.h.b16 %v562
        %v1964 = vunpack.c.l.b16 %v563
        %v1965 = vunpack.c.h.b16 %v563
        %v1966 = vunpack.c.l.b16 %v564
        %v1967 = vunpack.c.h.b16 %v564
        %v1968 = vunpack.c.l.b16 %v565
        %v1969 = vunpack.c.h.b16 %v565
        %v1970 = vunpack.c.l.b16 %v566
        %v1971 = vunpack.c.h.b16 %v566
        %v1972 = vunpack.c.l.b16 %v567
        %v1973 = vunpack.c.h.b16 %v567
        %v1974 = vunpack.c.l.b16 %v568
        %v1975 = vunpack.c.h.b16 %v568
        %v1976 = vunpack.c.l.b16 %v569
        %v1977 = vunpack.c.h.b16 %v569
        %v1978 = vunpack.c.l.b16 %v570
        %v1979 = vunpack.c.h.b16 %v570
        %v1980 = vunpack.c.l.b16 %v571
        %v1981 = vunpack.c.h.b16 %v571
        %v1982 = vunpack.c.l.b16 %v572
        %v1983 = vunpack.c.h.b16 %v572
        %v1984 = vunpack.c.l.b16 %v573
        %v1985 = vunpack.c.h.b16 %v573
        %v1986 = vunpack.c.l.b16 %v574
        %v1987 = vunpack.c.h.b16 %v574
        %v1988 = vunpack.c.l.b16 %v575
        %v1989 = vunpack.c.h.b16 %v575
        %v1990 = vunpack.c.l.b16 %v576
        %v1991 = vunpack.c.h.b16 %v576
        %v1992 = vunpack.c.l.b16 %v577
        %v1993 = vunpack.c.h.b16 %v577
        %v1994 = vunpack.c.l.b16 %v578
        %v1995 = vunpack.c.h.b16 %v578
        %v1996 = vunpack.c.l.b16 %v579
        %v1997 = vunpack.c.h.b16 %v579
        %v1998 = vunpack.c.l.b16 %v580
        %v1999 = vunpack.c.h.b16 %v580
        %v2000 = vunpack.c.l.b16 %v581
        %v2001 = vunpack.c.h.b16 %v581
        %v2002 = vunpack.c.l.b16 %v582
        %v2003 = vunpack.c.h.b16 %v582
        %v2004 = vunpack.c.l.b16 %v583
        %v2005 = vunpack.c.h.b16 %v583
        %v2006 = vunpack.c.l.b16 %v584
        %v2007 = vunpack.c.h.b16 %v584
        %v2008 = vunpack.c.l.b16 %v585
        %v2009 = vunpack.c.h.b16 %v585
        %v2010 = vunpack.c.l.b16 %v586
        %v2011 = vunpack.c.h.b16 %v586
        %v2012 = vunpack.c.l.b16 %v587
        %v2013 = vunpack.c.h.b16 %v587
        %v2014 = vunpack.c.l.b16 %v588
        %v2015 = vunpack.c.h.b16 %v588
        %v2016 = vunpack.c.l.b16 %v589
        %v2017 = vunpack.c.h.b16 %v589
        %v2018 = vunpack.c.l.b16 %v590
        %v2019 = vunpack.c.h.b16 %v590
        %v2020 = vunpack.c.l.b16 %v591
        %v2021 = vunpack.c.h.b16 %v591
        %v2022 = vunpack.c.l.b16 %v592
        %v2023 = vunpack.c.h.b16 %v592
        %v2024 = vunpack.c.l.b16 %v593
        %v2025 = vunpack.c.h.b16 %v593
        %v2026 = vunpack.c.l.b16 %v594
        %v2027 = vunpack.c.h.b16 %v594
        %v2028 = vunpack.c.l.b16 %v595
        %v2029 = vunpack.c.h.b16 %v595
        %v2030 = vunpack.c.l.b16 %v596
        %v2031 = vunpack.c.h.b16 %v596
        %v2032 = vunpack.c.l.b16 %v597
        %v2033 = vunpack.c.h.b16 %v597
        %v2034 = vunpack.c.l.b16 %v598
        %v2035 = vunpack.c.h.b16 %v598
        %v2036 = vunpack.c.l.b16 %v599
        %v2037 = vunpack.c.h.b16 %v599
        %v2038 = vunpack.c.l.b16 %v600
        %v2039 = vunpack.c.h.b16 %v600
        %v2040 = vunpack.c.l.b16 %v601
        %v2041 = vunpack.c.h.b16 %v601
        %v2042 = vunpack.c.l.b16 %v602
        %v2043 = vunpack.c.h.b16 %v602
        %v2044 = vunpack.c.l.b16 %v603
        %v2045 = vunpack.c.h.b16 %v603
        %v2046 = vunpack.c.l.b16 %v604
        %v2047 = vunpack.c.h.b16 %v604
        %v2048 = vunpack.c.l.b16 %v605
        %v2049 = vunpack.c.h.b16 %v605
        %v2050 = vunpack.c.l.b16 %v606
        %v2051 = vunpack.c.h.b16 %v606
        %v2052 = vunpack.c.l.b16 %v607
        %v2053 = vunpack.c.h.b16 %v607
        %v2054 = vunpack.c.l.b16 %v608
        %v2055 = vunpack.c.h.b16 %v608
        %v2056 = vunpack.c.l.b16 %v609
        %v2057 = vunpack.c.h.b16 %v609
        %v2058 = vunpack.c.l.b16 %v610
        %v2059 = vunpack.c.h.b16 %v610
        %v2060 = vunpack.c.l.b16 %v611
        %v2061 = vunpack.c.h.b16 %v611
        %v2062 = vunpack.c.l.b16 %v612
        %v2063 = vunpack.c.h.b16 %v612
        %v2064 = vunpack.c.l.b16 %v613
        %v2065 = vunpack.c.h.b16 %v613
        %v2066 = vunpack.c.l.b16 %v614
        %v2067 = vunpack.c.h.b16 %v614
        %v2068 = vunpack.c.l.b16 %v615
        %v2069 = vunpack.c.h.b16 %v615
        %v2070 = vunpack.c.l.b16 %v616
        %v2071 = vunpack.c.h.b16 %v616
        %v2072 = vunpack.c.l.b16 %v617
        %v2073 = vunpack.c.h.b16 %v617
        %v2074 = vunpack.c.l.b16 %v618
        %v2075 = vunpack.c.h.b16 %v618
        %v2076 = vunpack.c.l.b16 %v619
        %v2077 = vunpack.c.h.b16 %v619
        %v2078 = vunpack.c.l.b16 %v620
        %v2079 = vunpack.c.h.b16 %v620
        %v2080 = vunpack.c.l.b16 %v621
        %v2081 = vunpack.c.h.b16 %v621
        %v2082 = vunpack.c.l.b16 %v622
        %v2083 = vunpack.c.h.b16 %v622
        %v2084 = vunpack.c.l.b16 %v623
        %v2085 = vunpack.c.h.b16 %v623
        %v2086 = vunpack.c.l.b16 %v624
        %v2087 = vunpack.c.h.b16 %v624
        %v2088 = vunpack.c.l.b16 %v625
        %v2089 = vunpack.c.h.b16 %v625
        %v2090 = vunpack.c.l.b16 %v626
        %v2091 = vunpack.c.h.b16 %v626
        %v2092 = vunpack.c.l.b16 %v627
        %v2093 = vunpack.c.h.b16 %v627
        %v2094 = vunpack.c.l.b16 %v628
        %v2095 = vunpack.c.h.b16 %v628
        %v2096 = vunpack.c.l.b16 %v629
        %v2097 = vunpack.c.h.b16 %v629
        %v2098 = vunpack.c.l.b16 %v630
        %v2099 = vunpack.c.h.b16 %v630
        %v2100 = vunpack.c.l.b16 %v631
        %v2101 = vunpack.c.h.b16 %v631
        %v2102 = vunpack.c.l.b16 %v632
        %v2103 = vunpack.c.h.b16 %v632
        %v2104 = vunpack.c.l.b16 %v633
        %v2105 = vunpack.c.h.b16 %v633
        %v2106 = vunpack.c.l.b16 %v634
        %v2107 = vunpack.c.h.b16 %v634
        %v2108 = vunpack.c.l.b16 %v635
        %v2109 = vunpack.c.h.b16 %v635
        %v2110 = vunpack.c.l.b16 %v636
        %v2111 = vunpack.c.h.b16 %v636
        %v2112 = vunpack.c.l.b16 %v637
        %v2113 = vunpack.c.h.b16 %v637
        %v2114 = vunpack.c.l.b16 %v638
        %v2115 = vunpack.c.h.b16 %v638
        %v2116 = vunpack.c.l.b16 %v639
        %v2117 = vunpack.c.h.b16 %v639
        %v2118 = vunpack.c.l.b16 %v640
        %v2119 = vunpack.c.h.b16 %v640
        %v2120 = vunpack.c.l.b16 %v641
        %v2121 = vunpack.c.h.b16 %v641
        %v2122 = vunpack.c.l.b16 %v642
        %v2123 = vunpack.c.h.b16 %v642
        %v2124 = vunpack.c.l.b16 %v643
        %v2125 = vunpack.c.h.b16 %v643
        %v2126 = vunpack.c.l.b16 %v644
        %v2127 = vunpack.c.h.b16 %v644
        %v2128 = vunpack.c.l.b16 %v645
        %v2129 = vunpack.c.h.b16 %v645
        %v2130 = vunpack.c.l.b16 %v646
        %v2131 = vunpack.c.h.b16 %v646
        %v2132 = vunpack.c.l.b16 %v647
        %v2133 = vunpack.c.h.b16 %v647
        %v2134 = vunpack.c.l.b16 %v648
        %v2135 = vunpack.c.h.b16 %v648
        %v2136 = vunpack.c.l.b16 %v649
        %v2137 = vunpack.c.h.b16 %v649
        %v2138 = vunpack.c.l.b16 %v650
        %v2139 = vunpack.c.h.b16 %v650
        %v2140 = vunpack.c.l.b16 %v651
        %v2141 = vunpack.c.h.b16 %v651
        %v2142 = vunpack.c.l.b16 %v652
        %v2143 = vunpack.c.h.b16 %v652
        %v2144 = vunpack.c.l.b16 %v653
        %v2145 = vunpack.c.h.b16 %v653
        %v2146 = vunpack.c.l.b16 %v654
        %v2147 = vunpack.c.h.b16 %v654
        %v2148 = vunpack.c.l.b16 %v655
        %v2149 = vunpack.c.h.b16 %v655
        %v2150 = vunpack.c.l.b16 %v656
        %v2151 = vunpack.c.h.b16 %v656
        %v2152 = vunpack.c.l.b16 %v657
        %v2153 = vunpack.c.h.b16 %v657
        %v2154 = vunpack.c.l.b16 %v658
        %v2155 = vunpack.c.h.b16 %v658
        %v2156 = vunpack.c.l.b16 %v659
        %v2157 = vunpack.c.h.b16 %v659
        %v2158 = vunpack.c.l.b16 %v660
        %v2159 = vunpack.c.h.b16 %v660
        %v2160 = vunpack.c.l.b16 %v661
        %v2161 = vunpack.c.h.b16 %v661
        %v2162 = vunpack.c.l.b16 %v662
        %v2163 = vunpack.c.h.b16 %v662
        %v2164 = vunpack.c.l.b16 %v663
        %v2165 = vunpack.c.h.b16 %v663
        %v2166 = vunpack.c.l.b16 %v664
        %v2167 = vunpack.c.h.b16 %v664
        %v2168 = vunpack.c.l.b16 %v665
        %v2169 = vunpack.c.h.b16 %v665
        %v2170 = vunpack.c.l.b16 %v666
        %v2171 = vunpack.c.h.b16 %v666
        %v2172 = vunpack.c.l.b16 %v667
        %v2173 = vunpack.c.h.b16 %v667
        %v2174 = vunpack.c.l.b16 %v668
        %v2175 = vunpack.c.h.b16 %v668
        %v2176 = vunpack.c.l.b16 %v669
        %v2177 = vunpack.c.h.b16 %v669
        %v2178 = vunpack.c.l.b16 %v670
        %v2179 = vunpack.c.h.b16 %v670
        %v2180 = vunpack.c.l.b16 %v671
        %v2181 = vunpack.c.h.b16 %v671
        %v2182 = vunpack.c.l.b16 %v672
        %v2183 = vunpack.c.h.b16 %v672
        %v2184 = vunpack.c.l.b16 %v673
        %v2185 = vunpack.c.h.b16 %v673
        %v2186 = vunpack.c.l.b16 %v674
        %v2187 = vunpack.c.h.b16 %v674
        %v2188 = vunpack.c.l.b16 %v675
        %v2189 = vunpack.c.h.b16 %v675
        %v2190 = vunpack.c.l.b16 %v676
        %v2191 = vunpack.c.h.b16 %v676
        %v2192 = vunpack.c.l.b16 %v677
        %v2193 = vunpack.c.h.b16 %v677
        %v2194 = vunpack.c.l.b16 %v678
        %v2195 = vunpack.c.h.b16 %v678
        %v2196 = vunpack.c.l.b16 %v679
        %v2197 = vunpack.c.h.b16 %v679
        %v2198 = vunpack.c.l.b16 %v680
        %v2199 = vunpack.c.h.b16 %v680
        %v2200 = vunpack.c.l.b16 %v681
        %v2201 = vunpack.c.h.b16 %v681
        %v2202 = vunpack.c.l.b16 %v682
        %v2203 = vunpack.c.h.b16 %v682
        %v2204 = vunpack.c.l.b16 %v683
        %v2205 = vunpack.c.h.b16 %v683
        %v2206 = vunpack.c.l.b16 %v684
        %v2207 = vunpack.c.h.b16 %v684
        %v2208 = vunpack.c.l.b16 %v685
        %v2209 = vunpack.c.h.b16 %v685
        %v2210 = vunpack.c.l.b16 %v686
        %v2211 = vunpack.c.h.b16 %v686
        %v2212 = vunpack.c.l.b16 %v687
        %v2213 = vunpack.c.h.b16 %v687
        %v2214 = vunpack.c.l.b16 %v688
        %v2215 = vunpack.c.h.b16 %v688
        %v2216 = vunpack.c.l.b16 %v689
        %v2217 = vunpack.c.h.b16 %v689
        %v2218 = vunpack.c.l.b16 %v690
        %v2219 = vunpack.c.h.b16 %v690
        %v2220 = vunpack.c.l.b16 %v691
        %v2221 = vunpack.c.h.b16 %v691
        %v2222 = vunpack.c.l.b16 %v692
        %v2223 = vunpack.c.h.b16 %v692
        %v2224 = vunpack.c.l.b16 %v693
        %v2225 = vunpack.c.h.b16 %v693
        %v2226 = vunpack.c.l.b16 %v694
        %v2227 = vunpack.c.h.b16 %v694
        %v2228 = vunpack.c.l.b16 %v695
        %v2229 = vunpack.c.h.b16 %v695
        %v2230 = vunpack.c.l.b16 %v696
        %v2231 = vunpack.c.h.b16 %v696
        %v2232 = vunpack.c.l.b16 %v697
        %v2233 = vunpack.c.h.b16 %v697
        %v2234 = vunpack.c.l.b16 %v698
        %v2235 = vunpack.c.h.b16 %v698
        %v2236 = vunpack.c.l.b16 %v699
        %v2237 = vunpack.c.h.b16 %v699
        %v2238 = vunpack.c.l.b16 %v700
        %v2239 = vunpack.c.h.b16 %v700
        %v2240 = vunpack.c.l.b16 %v701
        %v2241 = vunpack.c.h.b16 %v701
        %v2242 = vunpack.c.l.b16 %v702
        %v2243 = vunpack.c.h.b16 %v702
        %v2244 = vunpack.c.l.b16 %v703
        %v2245 = vunpack.c.h.b16 %v703
        %v2246 = vunpack.c.l.b16 %v704
        %v2247 = vunpack.c.h.b16 %v704
        %v2248 = vunpack.c.l.b16 %v705
        %v2249 = vunpack.c.h.b16 %v705
        %v2250 = vunpack.c.l.b16 %v706
        %v2251 = vunpack.c.h.b16 %v706
        %v2252 = vunpack.c.l.b16 %v707
        %v2253 = vunpack.c.h.b16 %v707
        %v2254 = vunpack.c.l.b16 %v708
        %v2255 = vunpack.c.h.b16 %v708
        %v2256 = vunpack.c.l.b16 %v709
        %v2257 = vunpack.c.h.b16 %v709
        %v2258 = vunpack.c.l.b16 %v710
        %v2259 = vunpack.c.h.b16 %v710
        %v2260 = vunpack.c.l.b16 %v711
        %v2261 = vunpack.c.h.b16 %v711
        %v2262 = vunpack.c.l.b16 %v712
        %v2263 = vunpack.c.h.b16 %v712
        %v2264 = vunpack.c.l.b16 %v713
        %v2265 = vunpack.c.h.b16 %v713
        %v2266 = vunpack.c.l.b16 %v714
        %v2267 = vunpack.c.h.b16 %v714
        %v2268 = vunpack.c.l.b16 %v715
        %v2269 = vunpack.c.h.b16 %v715
        %v2270 = vunpack.c.l.b16 %v716
        %v2271 = vunpack.c.h.b16 %v716
        %v2272 = vunpack.c.l.b16 %v717
        %v2273 = vunpack.c.h.b16 %v717
        %v2274 = vunpack.c.l.b16 %v718
        %v2275 = vunpack.c.h.b16 %v718
        %v2276 = vunpack.c.l.b16 %v719
        %v2277 = vunpack.c.h.b16 %v719
        %v2278 = vunpack.c.l.b16 %v720
        %v2279 = vunpack.c.h.b16 %v720
        %v2280 = vunpack.c.l.b16 %v721
        %v2281 = vunpack.c.h.b16 %v721
        %v2282 = vunpack.c.l.b16 %v722
        %v2283 = vunpack.c.h.b16 %v722
        %v2284 = vunpack.c.l.b16 %v723
        %v2285 = vunpack.c.h.b16 %v723
        %v2286 = vunpack.c.l.b16 %v724
        %v2287 = vunpack.c.h.b16 %v724
        %v2288 = vunpack.c.l.b16 %v725
        %v2289 = vunpack.c.h.b16 %v725
        %v2290 = vunpack.c.l.b16 %v726
        %v2291 = vunpack.c.h.b16 %v726
        %v2292 = vunpack.c.l.b16 %v727
        %v2293 = vunpack.c.h.b16 %v727
        %v2294 = vunpack.c.l.b16 %v728
        %v2295 = vunpack.c.h.b16 %v728
        %v2296 = vunpack.c.l.b16 %v729
        %v2297 = vunpack.c.h.b16 %v729
        %v2298 = vunpack.c.l.b16 %v730
        %v2299 = vunpack.c.h.b16 %v730
        %v2300 = vunpack.c.l.b16 %v731
        %v2301 = vunpack.c.h.b16 %v731
        %v2302 = vunpack.c.l.b16 %v732
        %v2303 = vunpack.c.h.b16 %v732
        %v2304 = vunpack.c.l.b16 %v733
        %v2305 = vunpack.c.h.b16 %v733
        %v2306 = vunpack.c.l.b16 %v734
        %v2307 = vunpack.c.h.b16 %v734
        %v2308 = vunpack.c.l.b16 %v735
        %v2309 = vunpack.c.h.b16 %v735
        %v2310 = vunpack.c.l.b16 %v736
        %v2311 = vunpack.c.h.b16 %v736
        %v2312 = vunpack.c.l.b16 %v737
        %v2313 = vunpack.c.h.b16 %v737
        %v2314 = vunpack.c.l.b16 %v738
        %v2315 = vunpack.c.h.b16 %v738
        %v2316 = vunpack.c.l.b16 %v739
        %v2317 = vunpack.c.h.b16 %v739
        %v2318 = vunpack.c.l.b16 %v740
        %v2319 = vunpack.c.h.b16 %v740
        %v2320 = vunpack.c.l.b16 %v741
        %v2321 = vunpack.c.h.b16 %v741
        %v2322 = vunpack.c.l.b16 %v742
        %v2323 = vunpack.c.h.b16 %v742
        %v2324 = vunpack.c.l.b16 %v743
        %v2325 = vunpack.c.h.b16 %v743
        %v2326 = vunpack.c.l.b16 %v744
        %v2327 = vunpack.c.h.b16 %v744
        %v2328 = vunpack.c.l.b16 %v745
        %v2329 = vunpack.c.h.b16 %v745
        %v2330 = vunpack.c.l.b16 %v746
        %v2331 = vunpack.c.h.b16 %v746
        %v2332 = vunpack.c.l.b16 %v747
        %v2333 = vunpack.c.h.b16 %v747
        %v2334 = vunpack.c.l.b16 %v748
        %v2335 = vunpack.c.h.b16 %v748
        %v2336 = vunpack.c.l.b16 %v749
        %v2337 = vunpack.c.h.b16 %v749
        %v2338 = vunpack.c.l.b16 %v750
        %v2339 = vunpack.c.h.b16 %v750
        %v2340 = vunpack.c.l.b16 %v751
        %v2341 = vunpack.c.h.b16 %v751
        %v2342 = vunpack.c.l.b16 %v752
        %v2343 = vunpack.c.h.b16 %v752
        %v2344 = vunpack.c.l.b16 %v753
        %v2345 = vunpack.c.h.b16 %v753
        %v2346 = vunpack.c.l.b16 %v754
        %v2347 = vunpack.c.h.b16 %v754
        %v2348 = vunpack.c.l.b16 %v755
        %v2349 = vunpack.c.h.b16 %v755
        %v2350 = vunpack.c.l.b16 %v756
        %v2351 = vunpack.c.h.b16 %v756
        %v2352 = vunpack.c.l.b16 %v757
        %v2353 = vunpack.c.h.b16 %v757
        %v2354 = vunpack.c.l.b16 %v758
        %v2355 = vunpack.c.h.b16 %v758
        %v2356 = vunpack.c.l.b16 %v759
        %v2357 = vunpack.c.h.b16 %v759
        %v2358 = vunpack.c.l.b16 %v760
        %v2359 = vunpack.c.h.b16 %v760
        %v2360 = vunpack.c.l.b16 %v761
        %v2361 = vunpack.c.h.b16 %v761
        %v2362 = vunpack.c.l.b16 %v762
        %v2363 = vunpack.c.h.b16 %v762
        %v2364 = vunpack.c.l.b16 %v763
        %v2365 = vunpack.c.h.b16 %v763
        %v2366 = vunpack.c.l.b16 %v764
        %v2367 = vunpack.c.h.b16 %v764
        %v2368 = vunpack.c.l.b16 %v765
        %v2369 = vunpack.c.h.b16 %v765
        %v2370 = vunpack.c.l.b16 %v766
        %v2371 = vunpack.c.h.b16 %v766
        %v2372 = vunpack.c.l.b16 %v767
        %v2373 = vunpack.c.h.b16 %v767
        %v2374 = vunpack.c.l.b16 %v768
        %v2375 = vunpack.c.h.b16 %v768
        %v2376 = vunpack.c.l.b16 %v769
        %v2377 = vunpack.c.h.b16 %v769
        %v2378 = vunpack.c.l.b16 %v770
        %v2379 = vunpack.c.h.b16 %v770
        %v2380 = vunpack.c.l.b16 %v771
        %v2381 = vunpack.c.h.b16 %v771
        %v2382 = vunpack.c.l.b16 %v772
        %v2383 = vunpack.c.h.b16 %v772
        %v2384 = vunpack.c.l.b16 %v773
        %v2385 = vunpack.c.h.b16 %v773
        %v2386 = vunpack.c.l.b16 %v774
        %v2387 = vunpack.c.h.b16 %v774
        %v2388 = vunpack.c.l.b16 %v775
        %v2389 = vunpack.c.h.b16 %v775
        %v2390 = vunpack.c.l.b16 %v776
        %v2391 = vunpack.c.h.b16 %v776
        %v2392 = vunpack.c.l.b16 %v777
        %v2393 = vunpack.c.h.b16 %v777
        %v2394 = vunpack.c.l.b16 %v778
        %v2395 = vunpack.c.h.b16 %v778
        %v2396 = vunpack.c.l.b16 %v779
        %v2397 = vunpack.c.h.b16 %v779
        %v2398 = vunpack.c.l.b16 %v780
        %v2399 = vunpack.c.h.b16 %v780
        %v2400 = vunpack.c.l.b16 %v781
        %v2401 = vunpack.c.h.b16 %v781
        %v2402 = vunpack.c.l.b16 %v782
        %v2403 = vunpack.c.h.b16 %v782
        %v2404 = vunpack.c.l.b16 %v783
        %v2405 = vunpack.c.h.b16 %v783
        %v2406 = vunpack.c.l.b16 %v784
        %v2407 = vunpack.c.h.b16 %v784
        %v2408 = vunpack.c.l.b16 %v785
        %v2409 = vunpack.c.h.b16 %v785
        %v2410 = vunpack.c.l.b16 %v786
        %v2411 = vunpack.c.h.b16 %v786
        %v2412 = vunpack.c.l.b16 %v787
        %v2413 = vunpack.c.h.b16 %v787
        %v2414 = vunpack.c.l.b16 %v788
        %v2415 = vunpack.c.h.b16 %v788
        %v2416 = vunpack.c.l.b16 %v789
        %v2417 = vunpack.c.h.b16 %v789
        %v2418 = vunpack.c.l.b16 %v790
        %v2419 = vunpack.c.h.b16 %v790
        %v2420 = vunpack.c.l.b16 %v791
        %v2421 = vunpack.c.h.b16 %v791
        %v2422 = vunpack.c.l.b16 %v792
        %v2423 = vunpack.c.h.b16 %v792
        %v2424 = vunpack.c.l.b16 %v793
        %v2425 = vunpack.c.h.b16 %v793
        %v2426 = vunpack.c.l.b16 %v794
        %v2427 = vunpack.c.h.b16 %v794
        %v2428 = vunpack.c.l.b16 %v795
        %v2429 = vunpack.c.h.b16 %v795
        %v2430 = vunpack.c.l.b16 %v796
        %v2431 = vunpack.c.h.b16 %v796
        %v2432 = vunpack.c.l.b16 %v797
        %v2433 = vunpack.c.h.b16 %v797
        %v2434 = vunpack.c.l.b16 %v798
        %v2435 = vunpack.c.h.b16 %v798
        %v2436 = vunpack.c.l.b16 %v799
        %v2437 = vunpack.c.h.b16 %v799
        %v2438 = vunpack.c.l.b16 %v800
        %v2439 = vunpack.c.h.b16 %v800
        %v2440 = vunpack.c.l.b16 %v801
        %v2441 = vunpack.c.h.b16 %v801
        %v2442 = vunpack.c.l.b16 %v802
        %v2443 = vunpack.c.h.b16 %v802
        %v2444 = vunpack.c.l.b16 %v803
        %v2445 = vunpack.c.h.b16 %v803
        %v2446 = vunpack.c.l.b16 %v804
        %v2447 = vunpack.c.h.b16 %v804
        %v2448 = vunpack.c.l.b16 %v805
        %v2449 = vunpack.c.h.b16 %v805
        %v2450 = vunpack.c.l.b16 %v806
        %v2451 = vunpack.c.h.b16 %v806
        %v2452 = vunpack.c.l.b16 %v807
        %v2453 = vunpack.c.h.b16 %v807
        %v2454 = vunpack.c.l.b16 %v808
        %v2455 = vunpack.c.h.b16 %v808
        %v2456 = vunpack.c.l.b16 %v809
        %v2457 = vunpack.c.h.b16 %v809
        %v2458 = vunpack.c.l.b16 %v810
        %v2459 = vunpack.c.h.b16 %v810
        %v2460 = vunpack.c.l.b16 %v811
        %v2461 = vunpack.c.h.b16 %v811
        %v2462 = vunpack.c.l.b16 %v812
        %v2463 = vunpack.c.h.b16 %v812
        %v2464 = vunpack.c.l.b16 %v813
        %v2465 = vunpack.c.h.b16 %v813
        %v2466 = vunpack.c.l.b16 %v814
        %v2467 = vunpack.c.h.b16 %v814
        %v2468 = vunpack.c.l.b16 %v815
        %v2469 = vunpack.c.h.b16 %v815
        %v2470 = vunpack.c.l.b16 %v816
        %v2471 = vunpack.c.h.b16 %v816
        %v2472 = vunpack.c.l.b16 %v817
        %v2473 = vunpack.c.h.b16 %v817
        %v2474 = vunpack.c.l.b16 %v818
        %v2475 = vunpack.c.h.b16 %v818
        %v2476 = vunpack.c.l.b16 %v819
        %v2477 = vunpack.c.h.b16 %v819
        %v2478 = vunpack.c.l.b16 %v820
        %v2479 = vunpack.c.h.b16 %v820
        %v2480 = vunpack.c.l.b16 %v821
        %v2481 = vunpack.c.h.b16 %v821
        %v2482 = vunpack.c.l.b16 %v822
        %v2483 = vunpack.c.h.b16 %v822
        %v2484 = vunpack.c.l.b16 %v823
        %v2485 = vunpack.c.h.b16 %v823
        %v2486 = vunpack.c.l.b16 %v824
        %v2487 = vunpack.c.h.b16 %v824
        %v2488 = vunpack.c.l.b16 %v825
        %v2489 = vunpack.c.h.b16 %v825
        %v2490 = vunpack.c.l.b16 %v826
        %v2491 = vunpack.c.h.b16 %v826
        %v2492 = vunpack.c.l.b16 %v827
        %v2493 = vunpack.c.h.b16 %v827
        %v2494 = vunpack.c.l.b16 %v828
        %v2495 = vunpack.c.h.b16 %v828
        %v2496 = vunpack.c.l.b16 %v829
        %v2497 = vunpack.c.h.b16 %v829
        %v2498 = vunpack.c.l.b16 %v830
        %v2499 = vunpack.c.h.b16 %v830
        %v2500 = vunpack.c.l.b16 %v831
        %v2501 = vunpack.c.h.b16 %v831
        %v2502 = vunpack.c.l.b16 %v832
        %v2503 = vunpack.c.h.b16 %v832
        %v2504 = vunpack.c.l.b16 %v833
        %v2505 = vunpack.c.h.b16 %v833
        %v2506 = vunpack.c.l.b16 %v834
        %v2507 = vunpack.c.h.b16 %v834
        %v2508 = vunpack.c.l.b16 %v835
        %v2509 = vunpack.c.h.b16 %v835
        %v2510 = vunpack.c.l.b16 %v836
        %v2511 = vunpack.c.h.b16 %v836
        %v2512 = vunpack.c.l.b16 %v837
        %v2513 = vunpack.c.h.b16 %v837
        %v2514 = vunpack.c.l.b16 %v838
        %v2515 = vunpack.c.h.b16 %v838
        %v2516 = vunpack.c.l.b16 %v839
        %v2517 = vunpack.c.h.b16 %v839
        %v2518 = vunpack.c.l.b16 %v840
        %v2519 = vunpack.c.h.b16 %v840
        %v2520 = vunpack.c.l.b16 %v841
        %v2521 = vunpack.c.h.b16 %v841
        %v2522 = vunpack.c.l.b16 %v842
        %v2523 = vunpack.c.h.b16 %v842
        %v2524 = vunpack.c.l.b16 %v843
        %v2525 = vunpack.c.h.b16 %v843
        %v2526 = vunpack.c.l.b16 %v844
        %v2527 = vunpack.c.h.b16 %v844
        %v2528 = vunpack.c.l.b16 %v845
        %v2529 = vunpack.c.h.b16 %v845
        %v2530 = vunpack.c.l.b16 %v846
        %v2531 = vunpack.c.h.b16 %v846
        %v2532 = vunpack.c.l.b16 %v847
        %v2533 = vunpack.c.h.b16 %v847
        %v2534 = vunpack.c.l.b16 %v848
        %v2535 = vunpack.c.h.b16 %v848
        %v2536 = vunpack.c.l.b16 %v849
        %v2537 = vunpack.c.h.b16 %v849
        %v2538 = vunpack.c.l.b16 %v850
        %v2539 = vunpack.c.h.b16 %v850
        %v2540 = vunpack.c.l.b16 %v851
        %v2541 = vunpack.c.h.b16 %v851
        %v2542 = vunpack.c.l.b16 %v852
        %v2543 = vunpack.c.h.b16 %v852
        %v2544 = vunpack.c.l.b16 %v853
        %v2545 = vunpack.c.h.b16 %v853
        %v2546 = vunpack.c.l.b16 %v854
        %v2547 = vunpack.c.h.b16 %v854
        %v2548 = vunpack.c.l.b16 %v855
        %v2549 = vunpack.c.h.b16 %v855
        %v2550 = vunpack.c.l.b16 %v856
        %v2551 = vunpack.c.h.b16 %v856
        %v2552 = vunpack.c.l.b16 %v857
        %v2553 = vunpack.c.h.b16 %v857
        %v2554 = vpack.c.b16 %v1534, %v1530
        %v2555 = vpack.c.b16 %v1535, %v1531
        %v2556 = vpack.c.b16 %v1536, %v1532
        %v2557 = vpack.c.b16 %v1537, %v1533
        %v2558 = vpack.c.b16 %v1542, %v1538
        %v2559 = vpack.c.b16 %v1543, %v1539
        %v2560 = vpack.c.b16 %v1544, %v1540
        %v2561 = vpack.c.b16 %v1545, %v1541
        %v2562 = vpack.c.b16 %v1550, %v1546
        %v2563 = vpack.c.b16 %v1551, %v1547
        %v2564 = vpack.c.b16 %v1552, %v1548
        %v2565 = vpack.c.b16 %v1553, %v1549
        %v2566 = vpack.c.b16 %v1558, %v1554
        %v2567 = vpack.c.b16 %v1559, %v1555
        %v2568 = vpack.c.b16 %v1560, %v1556
        %v2569 = vpack.c.b16 %v1561, %v1557
        %v2570 = vpack.c.b16 %v1566, %v1562
        %v2571 = vpack.c.b16 %v1567, %v1563
        %v2572 = vpack.c.b16 %v1568, %v1564
        %v2573 = vpack.c.b16 %v1569, %v1565
        %v2574 = vpack.c.b16 %v1574, %v1570
        %v2575 = vpack.c.b16 %v1575, %v1571
        %v2576 = vpack.c.b16 %v1576, %v1572
        %v2577 = vpack.c.b16 %v1577, %v1573
        %v2578 = vpack.c.b16 %v1582, %v1578
        %v2579 = vpack.c.b16 %v1583, %v1579
        %v2580 = vpack.c.b16 %v1584, %v1580
        %v2581 = vpack.c.b16 %v1585, %v1581
        %v2582 = vpack.c.b16 %v1590, %v1586
        %v2583 = vpack.c.b16 %v1591, %v1587
        %v2584 = vpack.c.b16 %v1592, %v1588
        %v2585 = vpack.c.b16 %v1593, %v1589
        %v2586 = vpack.c.b16 %v1598, %v1594
        %v2587 = vpack.c.b16 %v1599, %v1595
        %v2588 = vpack.c.b16 %v1600, %v1596
        %v2589 = vpack.c.b16 %v1601, %v1597
        %v2590 = vpack.c.b16 %v1606, %v1602
        %v2591 = vpack.c.b16 %v1607, %v1603
        %v2592 = vpack.c.b16 %v1608, %v1604
        %v2593 = vpack.c.b16 %v1609, %v1605
        %v2594 = vpack.c.b16 %v1614, %v1610
        %v2595 = vpack.c.b16 %v1615, %v1611
        %v2596 = vpack.c.b16 %v1616, %v1612
        %v2597 = vpack.c.b16 %v1617, %v1613
        %v2598 = vpack.c.b16 %v1622, %v1618
        %v2599 = vpack.c.b16 %v1623, %v1619
        %v2600 = vpack.c.b16 %v1624, %v1620
        %v2601 = vpack.c.b16 %v1625, %v1621
        %v2602 = vpack.c.b16 %v1630, %v1626
        %v2603 = vpack.c.b16 %v1631, %v1627
        %v2604 = vpack.c.b16 %v1632, %v1628
        %v2605 = vpack.c.b16 %v1633, %v1629
        %v2606 = vpack.c.b16 %v1638, %v1634
        %v2607 = vpack.c.b16 %v1639, %v1635
        %v2608 = vpack.c.b16 %v1640, %v1636
        %v2609 = vpack.c.b16 %v1641, %v1637
        %v2610 = vpack.c.b16 %v1646, %v1642
        %v2611 = vpack.c.b16 %v1647, %v1643
        %v2612 = vpack.c.b16 %v1648, %v1644
        %v2613 = vpack.c.b16 %v1649, %v1645
        %v2614 = vpack.c.b16 %v1654, %v1650
        %v2615 = vpack.c.b16 %v1655, %v1651
        %v2616 = vpack.c.b16 %v1656, %v1652
        %v2617 = vpack.c.b16 %v1657, %v1653
        %v2618 = vpack.c.b16 %v1662, %v1658
        %v2619 = vpack.c.b16 %v1663, %v1659
        %v2620 = vpack.c.b16 %v1664, %v1660
        %v2621 = vpack.c.b16 %v1665, %v1661
        %v2622 = vpack.c.b16 %v1670, %v1666
        %v2623 = vpack.c.b16 %v1671, %v1667
        %v2624 = vpack.c.b16 %v1672, %v1668
        %v2625 = vpack.c.b16 %v1673, %v1669
        %v2626 = vpack.c.b16 %v1678, %v1674
        %v2627 = vpack.c.b16 %v1679, %v1675
        %v2628 = vpack.c.b16 %v1680, %v1676
        %v2629 = vpack.c.b16 %v1681, %v1677
        %v2630 = vpack.c.b16 %v1686, %v1682
        %v2631 = vpack.c.b16 %v1687, %v1683
        %v2632 = vpack.c.b16 %v1688, %v1684
        %v2633 = vpack.c.b16 %v1689, %v1685
        %v2634 = vpack.c.b16 %v1694, %v1690
        %v2635 = vpack.c.b16 %v1695, %v1691
        %v2636 = vpack.c.b16 %v1696, %v1692
        %v2637 = vpack.c.b16 %v1697, %v1693
        %v2638 = vpack.c.b16 %v1702, %v1698
        %v2639 = vpack.c.b16 %v1703, %v1699
        %v2640 = vpack.c.b16 %v1704, %v1700
        %v2641 = vpack.c.b16 %v1705, %v1701
        %v2642 = vpack.c.b16 %v1710, %v1706
        %v2643 = vpack.c.b16 %v1711, %v1707
        %v2644 = vpack.c.b16 %v1712, %v1708
        %v2645 = vpack.c.b16 %v1713, %v1709
        %v2646 = vpack.c.b16 %v1718, %v1714
        %v2647 = vpack.c.b16 %v1719, %v1715
        %v2648 = vpack.c.b16 %v1720, %v1716
        %v2649 = vpack.c.b16 %v1721, %v1717
        %v2650 = vpack.c.b16 %v1726, %v1722
        %v2651 = vpack.c.b16 %v1727, %v1723
        %v2652 = vpack.c.b16 %v1728, %v1724
        %v2653 = vpack.c.b16 %v1729, %v1725
        %v2654 = vpack.c.b16 %v1734, %v1730
        %v2655 = vpack.c.b16 %v1735, %v1731
        %v2656 = vpack.c.b16 %v1736, %v1732
        %v2657 = vpack.c.b16 %v1737, %v1733
        %v2658 = vpack.c.b16 %v1742, %v1738
        %v2659 = vpack.c.b16 %v1743, %v1739
        %v2660 = vpack.c.b16 %v1744, %v1740
        %v2661 = vpack.c.b16 %v1745, %v1741
        %v2662 = vpack.c.b16 %v1750, %v1746
        %v2663 = vpack.c.b16 %v1751, %v1747
        %v2664 = vpack.c.b16 %v1752, %v1748
        %v2665 = vpack.c.b16 %v1753, %v1749
        %v2666 = vpack.c.b16 %v1758, %v1754
        %v2667 = vpack.c.b16 %v1759, %v1755
        %v2668 = vpack.c.b16 %v1760, %v1756
        %v2669 = vpack.c.b16 %v1761, %v1757
        %v2670 = vpack.c.b16 %v1766, %v1762
        %v2671 = vpack.c.b16 %v1767, %v1763
        %v2672 = vpack.c.b16 %v1768, %v1764
        %v2673 = vpack.c.b16 %v1769, %v1765
        %v2674 = vpack.c.b16 %v1774, %v1770
        %v2675 = vpack.c.b16 %v1775, %v1771
        %v2676 = vpack.c.b16 %v1776, %v1772
        %v2677 = vpack.c.b16 %v1777, %v1773
        %v2678 = vpack.c.b16 %v1782, %v1778
        %v2679 = vpack.c.b16 %v1783, %v1779
        %v2680 = vpack.c.b16 %v1784, %v1780
        %v2681 = vpack.c.b16 %v1785, %v1781
        %v2682 = vpack.c.b16 %v1790, %v1786
        %v2683 = vpack.c.b16 %v1791, %v1787
        %v2684 = vpack.c.b16 %v1792, %v1788
        %v2685 = vpack.c.b16 %v1793, %v1789
        %v2686 = vpack.c.b16 %v1798, %v1794
        %v2687 = vpack.c.b16 %v1799, %v1795
        %v2688 = vpack.c.b16 %v1800, %v1796
        %v2689 = vpack.c.b16 %v1801, %v1797
        %v2690 = vpack.c.b16 %v1806, %v1802
        %v2691 = vpack.c.b16 %v1807, %v1803
        %v2692 = vpack.c.b16 %v1808, %v1804
        %v2693 = vpack.c.b16 %v1809, %v1805
        %v2694 = vpack.c.b16 %v1814, %v1810
        %v2695 = vpack.c.b16 %v1815, %v1811
        %v2696 = vpack.c.b16 %v1816, %v1812
        %v2697 = vpack.c.b16 %v1817, %v1813
        %v2698 = vpack.c.b16 %v1822, %v1818
        %v2699 = vpack.c.b16 %v1823, %v1819
        %v2700 = vpack.c.b16 %v1824, %v1820
        %v2701 = vpack.c.b16 %v1825, %v1821
        %v2702 = vpack.c.b16 %v1830, %v1826
        %v2703 = vpack.c.b16 %v1831, %v1827
        %v2704 = vpack.c.b16 %v1832, %v1828
        %v2705 = vpack.c.b16 %v1833, %v1829
        %v2706 = vpack.c.b16 %v1838, %v1834
        %v2707 = vpack.c.b16 %v1839, %v1835
        %v2708 = vpack.c.b16 %v1840, %v1836
        %v2709 = vpack.c.b16 %v1841, %v1837
        %v2710 = vpack.c.b16 %v1846, %v1842
        %v2711 = vpack.c.b16 %v1847, %v1843
        %v2712 = vpack.c.b16 %v1848, %v1844
        %v2713 = vpack.c.b16 %v1849, %v1845
        %v2714 = vpack.c.b16 %v1854, %v1850
        %v2715 = vpack.c.b16 %v1855, %v1851
        %v2716 = vpack.c.b16 %v1856, %v1852
        %v2717 = vpack.c.b16 %v1857, %v1853
        %v2718 = vpack.c.b16 %v1862, %v1858
        %v2719 = vpack.c.b16 %v1863, %v1859
        %v2720 = vpack.c.b16 %v1864, %v1860
        %v2721 = vpack.c.b16 %v1865, %v1861
        %v2722 = vpack.c.b16 %v1870, %v1866
        %v2723 = vpack.c.b16 %v1871, %v1867
        %v2724 = vpack.c.b16 %v1872, %v1868
        %v2725 = vpack.c.b16 %v1873, %v1869
        %v2726 = vpack.c.b16 %v1878, %v1874
        %v2727 = vpack.c.b16 %v1879, %v1875
        %v2728 = vpack.c.b16 %v1880, %v1876
        %v2729 = vpack.c.b16 %v1881, %v1877
        %v2730 = vpack.c.b16 %v1886, %v1882
        %v2731 = vpack.c.b16 %v1887, %v1883
        %v2732 = vpack.c.b16 %v1888, %v1884
        %v2733 = vpack.c.b16 %v1889, %v1885
        %v2734 = vpack.c.b16 %v1894, %v1890
        %v2735 = vpack.c.b16 %v1895, %v1891
        %v2736 = vpack.c.b16 %v1896, %v1892
        %v2737 = vpack.c.b16 %v1897, %v1893
        %v2738 = vpack.c.b16 %v1902, %v1898
        %v2739 = vpack.c.b16 %v1903, %v1899
        %v2740 = vpack.c.b16 %v1904, %v1900
        %v2741 = vpack.c.b16 %v1905, %v1901
        %v2742 = vpack.c.b16 %v1910, %v1906
        %v2743 = vpack.c.b16 %v1911, %v1907
        %v2744 = vpack.c.b16 %v1912, %v1908
        %v2745 = vpack.c.b16 %v1913, %v1909
        %v2746 = vpack.c.b16 %v1918, %v1914
        %v2747 = vpack.c.b16 %v1919, %v1915
        %v2748 = vpack.c.b16 %v1920, %v1916
        %v2749 = vpack.c.b16 %v1921, %v1917
        %v2750 = vpack.c.b16 %v1926, %v1922
        %v2751 = vpack.c.b16 %v1927, %v1923
        %v2752 = vpack.c.b16 %v1928, %v1924
        %v2753 = vpack.c.b16 %v1929, %v1925
        %v2754 = vpack.c.b16 %v1934, %v1930
        %v2755 = vpack.c.b16 %v1935, %v1931
        %v2756 = vpack.c.b16 %v1936, %v1932
        %v2757 = vpack.c.b16 %v1937, %v1933
        %v2758 = vpack.c.b16 %v1942, %v1938
        %v2759 = vpack.c.b16 %v1943, %v1939
        %v2760 = vpack.c.b16 %v1944, %v1940
        %v2761 = vpack.c.b16 %v1945, %v1941
        %v2762 = vpack.c.b16 %v1950, %v1946
        %v2763 = vpack.c.b16 %v1951, %v1947
        %v2764 = vpack.c.b16 %v1952, %v1948
        %v2765 = vpack.c.b16 %v1953, %v1949
        %v2766 = vpack.c.b16 %v1958, %v1954
        %v2767 = vpack.c.b16 %v1959, %v1955
        %v2768 = vpack.c.b16 %v1960, %v1956
        %v2769 = vpack.c.b16 %v1961, %v1957
        %v2770 = vpack.c.b16 %v1966, %v1962
        %v2771 = vpack.c.b16 %v1967, %v1963
        %v2772 = vpack.c.b16 %v1968, %v1964
        %v2773 = vpack.c.b16 %v1969, %v1965
        %v2774 = vpack.c.b16 %v1974, %v1970
        %v2775 = vpack.c.b16 %v1975, %v1971
        %v2776 = vpack.c.b16 %v1976, %v1972
        %v2777 = vpack.c.b16 %v1977, %v1973
        %v2778 = vpack.c.b16 %v1982, %v1978
        %v2779 = vpack.c.b16 %v1983, %v1979
        %v2780 = vpack.c.b16 %v1984, %v1980
        %v2781 = vpack.c.b16 %v1985, %v1981
        %v2782 = vpack.c.b16 %v1990, %v1986
        %v2783 = vpack.c.b16 %v1991, %v1987
        %v2784 = vpack.c.b16 %v1992, %v1988
        %v2785 = vpack.c.b16 %v1993, %v1989
        %v2786 = vpack.c.b16 %v1998, %v1994
        %v2787 = vpack.c.b16 %v1999, %v1995
        %v2788 = vpack.c.b16 %v2000, %v1996
        %v2789 = vpack.c.b16 %v2001, %v1997
        %v2790 = vpack.c.b16 %v2006, %v2002
        %v2791 = vpack.c.b16 %v2007, %v2003
        %v2792 = vpack.c.b16 %v2008, %v2004
        %v2793 = vpack.c.b16 %v2009, %v2005
        %v2794 = vpack.c.b16 %v2014, %v2010
        %v2795 = vpack.c.b16 %v2015, %v2011
        %v2796 = vpack.c.b16 %v2016, %v2012
        %v2797 = vpack.c.b16 %v2017, %v2013
        %v2798 = vpack.c.b16 %v2022, %v2018
        %v2799 = vpack.c.b16 %v2023, %v2019
        %v2800 = vpack.c.b16 %v2024, %v2020
        %v2801 = vpack.c.b16 %v2025, %v2021
        %v2802 = vpack.c.b16 %v2030, %v2026
        %v2803 = vpack.c.b16 %v2031, %v2027
        %v2804 = vpack.c.b16 %v2032, %v2028
        %v2805 = vpack.c.b16 %v2033, %v2029
        %v2806 = vpack.c.b16 %v2038, %v2034
        %v2807 = vpack.c.b16 %v2039, %v2035
        %v2808 = vpack.c.b16 %v2040, %v2036
        %v2809 = vpack.c.b16 %v2041, %v2037
        %v2810 = vpack.c.b16 %v2046, %v2042
        %v2811 = vpack.c.b16 %v2047, %v2043
        %v2812 = vpack.c.b16 %v2048, %v2044
        %v2813 = vpack.c.b16 %v2049, %v2045
        %v2814 = vpack.c.b16 %v2054, %v2050
        %v2815 = vpack.c.b16 %v2055, %v2051
        %v2816 = vpack.c.b16 %v2056, %v2052
        %v2817 = vpack.c.b16 %v2057, %v2053
        %v2818 = vpack.c.b16 %v2062, %v2058
        %v2819 = vpack.c.b16 %v2063, %v2059
        %v2820 = vpack.c.b16 %v2064, %v2060
        %v2821 = vpack.c.b16 %v2065, %v2061
        %v2822 = vpack.c.b16 %v2070, %v2066
        %v2823 = vpack.c.b16 %v2071, %v2067
        %v2824 = vpack.c.b16 %v2072, %v2068
        %v2825 = vpack.c.b16 %v2073, %v2069
        %v2826 = vpack.c.b16 %v2078, %v2074
        %v2827 = vpack.c.b16 %v2079, %v2075
        %v2828 = vpack.c.b16 %v2080, %v2076
        %v2829 = vpack.c.b16 %v2081, %v2077
        %v2830 = vpack.c.b16 %v2086, %v2082
        %v2831 = vpack.c.b16 %v2087, %v2083
        %v2832 = vpack.c.b16 %v2088, %v2084
        %v2833 = vpack.c.b16 %v2089, %v2085
        %v2834 = vpack.c.b16 %v2094, %v2090
        %v2835 = vpack.c.b16 %v2095, %v2091
        %v2836 = vpack.c.b16 %v2096, %v2092
        %v2837 = vpack.c.b16 %v2097, %v2093
        %v2838 = vpack.c.b16 %v2102, %v2098
        %v2839 = vpack.c.b16 %v2103, %v2099
        %v2840 = vpack.c.b16 %v2104, %v2100
        %v2841 = vpack.c.b16 %v2105, %v2101
        %v2842 = vpack.c.b16 %v2110, %v2106
        %v2843 = vpack.c.b16 %v2111, %v2107
        %v2844 = vpack.c.b16 %v2112, %v2108
        %v2845 = vpack.c.b16 %v2113, %v2109
        %v2846 = vpack.c.b16 %v2118, %v2114
        %v2847 = vpack.c.b16 %v2119, %v2115
        %v2848 = vpack.c.b16 %v2120, %v2116
        %v2849 = vpack.c.b16 %v2121, %v2117
        %v2850 = vpack.c.b16 %v2126, %v2122
        %v2851 = vpack.c.b16 %v2127, %v2123
        %v2852 = vpack.c.b16 %v2128, %v2124
        %v2853 = vpack.c.b16 %v2129, %v2125
        %v2854 = vpack.c.b16 %v2134, %v2130
        %v2855 = vpack.c.b16 %v2135, %v2131
        %v2856 = vpack.c.b16 %v2136, %v2132
        %v2857 = vpack.c.b16 %v2137, %v2133
        %v2858 = vpack.c.b16 %v2142, %v2138
        %v2859 = vpack.c.b16 %v2143, %v2139
        %v2860 = vpack.c.b16 %v2144, %v2140
        %v2861 = vpack.c.b16 %v2145, %v2141
        %v2862 = vpack.c.b16 %v2150, %v2146
        %v2863 = vpack.c.b16 %v2151, %v2147
        %v2864 = vpack.c.b16 %v2152, %v2148
        %v2865 = vpack.c.b16 %v2153, %v2149
        %v2866 = vpack.c.b16 %v2158, %v2154
        %v2867 = vpack.c.b16 %v2159, %v2155
        %v2868 = vpack.c.b16 %v2160, %v2156
        %v2869 = vpack.c.b16 %v2161, %v2157
        %v2870 = vpack.c.b16 %v2166, %v2162
        %v2871 = vpack.c.b16 %v2167, %v2163
        %v2872 = vpack.c.b16 %v2168, %v2164
        %v2873 = vpack.c.b16 %v2169, %v2165
        %v2874 = vpack.c.b16 %v2174, %v2170
        %v2875 = vpack.c.b16 %v2175, %v2171
        %v2876 = vpack.c.b16 %v2176, %v2172
        %v2877 = vpack.c.b16 %v2177, %v2173
        %v2878 = vpack.c.b16 %v2182, %v2178
        %v2879 = vpack.c.b16 %v2183, %v2179
        %v2880 = vpack.c.b16 %v2184, %v2180
        %v2881 = vpack.c.b16 %v2185, %v2181
        %v2882 = vpack.c.b16 %v2190, %v2186
        %v2883 = vpack.c.b16 %v2191, %v2187
        %v2884 = vpack.c.b16 %v2192, %v2188
        %v2885 = vpack.c.b16 %v2193, %v2189
        %v2886 = vpack.c.b16 %v2198, %v2194
        %v2887 = vpack.c.b16 %v2199, %v2195
        %v2888 = vpack.c.b16 %v2200, %v2196
        %v2889 = vpack.c.b16 %v2201, %v2197
        %v2890 = vpack.c.b16 %v2206, %v2202
        %v2891 = vpack.c.b16 %v2207, %v2203
        %v2892 = vpack.c.b16 %v2208, %v2204
        %v2893 = vpack.c.b16 %v2209, %v2205
        %v2894 = vpack.c.b16 %v2214, %v2210
        %v2895 = vpack.c.b16 %v2215, %v2211
        %v2896 = vpack.c.b16 %v2216, %v2212
        %v2897 = vpack.c.b16 %v2217, %v2213
        %v2898 = vpack.c.b16 %v2222, %v2218
        %v2899 = vpack.c.b16 %v2223, %v2219
        %v2900 = vpack.c.b16 %v2224, %v2220
        %v2901 = vpack.c.b16 %v2225, %v2221
        %v2902 = vpack.c.b16 %v2230, %v2226
        %v2903 = vpack.c.b16 %v2231, %v2227
        %v2904 = vpack.c.b16 %v2232, %v2228
        %v2905 = vpack.c.b16 %v2233, %v2229
        %v2906 = vpack.c.b16 %v2238, %v2234
        %v2907 = vpack.c.b16 %v2239, %v2235
        %v2908 = vpack.c.b16 %v2240, %v2236
        %v2909 = vpack.c.b16 %v2241, %v2237
        %v2910 = vpack.c.b16 %v2246, %v2242
        %v2911 = vpack.c.b16 %v2247, %v2243
        %v2912 = vpack.c.b16 %v2248, %v2244
        %v2913 = vpack.c.b16 %v2249, %v2245
        %v2914 = vpack.c.b16 %v2254, %v2250
        %v2915 = vpack.c.b16 %v2255, %v2251
        %v2916 = vpack.c.b16 %v2256, %v2252
        %v2917 = vpack.c.b16 %v2257, %v2253
        %v2918 = vpack.c.b16 %v2262, %v2258
        %v2919 = vpack.c.b16 %v2263, %v2259
        %v2920 = vpack.c.b16 %v2264, %v2260
        %v2921 = vpack.c.b16 %v2265, %v2261
        %v2922 = vpack.c.b16 %v2270, %v2266
        %v2923 = vpack.c.b16 %v2271, %v2267
        %v2924 = vpack.c.b16 %v2272, %v2268
        %v2925 = vpack.c.b16 %v2273, %v2269
        %v2926 = vpack.c.b16 %v2278, %v2274
        %v2927 = vpack.c.b16 %v2279, %v2275
        %v2928 = vpack.c.b16 %v2280, %v2276
        %v2929 = vpack.c.b16 %v2281, %v2277
        %v2930 = vpack.c.b16 %v2286, %v2282
        %v2931 = vpack.c.b16 %v2287, %v2283
        %v2932 = vpack.c.b16 %v2288, %v2284
        %v2933 = vpack.c.b16 %v2289, %v2285
        %v2934 = vpack.c.b16 %v2294, %v2290
        %v2935 = vpack.c.b16 %v2295, %v2291
        %v2936 = vpack.c.b16 %v2296, %v2292
        %v2937 = vpack.c.b16 %v2297, %v2293
        %v2938 = vpack.c.b16 %v2302, %v2298
        %v2939 = vpack.c.b16 %v2303, %v2299
        %v2940 = vpack.c.b16 %v2304, %v2300
        %v2941 = vpack.c.b16 %v2305, %v2301
        %v2942 = vpack.c.b16 %v2310, %v2306
        %v2943 = vpack.c.b16 %v2311, %v2307
        %v2944 = vpack.c.b16 %v2312, %v2308
        %v2945 = vpack.c.b16 %v2313, %v2309
        %v2946 = vpack.c.b16 %v2318, %v2314
        %v2947 = vpack.c.b16 %v2319, %v2315
        %v2948 = vpack.c.b16 %v2320, %v2316
        %v2949 = vpack.c.b16 %v2321, %v2317
        %v2950 = vpack.c.b16 %v2326, %v2322
        %v2951 = vpack.c.b16 %v2327, %v2323
        %v2952 = vpack.c.b16 %v2328, %v2324
        %v2953 = vpack.c.b16 %v2329, %v2325
        %v2954 = vpack.c.b16 %v2334, %v2330
        %v2955 = vpack.c.b16 %v2335, %v2331
        %v2956 = vpack.c.b16 %v2336, %v2332
        %v2957 = vpack.c.b16 %v2337, %v2333
        %v2958 = vpack.c.b16 %v2342, %v2338
        %v2959 = vpack.c.b16 %v2343, %v2339
        %v2960 = vpack.c.b16 %v2344, %v2340
        %v2961 = vpack.c.b16 %v2345, %v2341
        %v2962 = vpack.c.b16 %v2350, %v2346
        %v2963 = vpack.c.b16 %v2351, %v2347
        %v2964 = vpack.c.b16 %v2352, %v2348
        %v2965 = vpack.c.b16 %v2353, %v2349
        %v2966 = vpack.c.b16 %v2358, %v2354
        %v2967 = vpack.c.b16 %v2359, %v2355
        %v2968 = vpack.c.b16 %v2360, %v2356
        %v2969 = vpack.c.b16 %v2361, %v2357
        %v2970 = vpack.c.b16 %v2366, %v2362
        %v2971 = vpack.c.b16 %v2367, %v2363
        %v2972 = vpack.c.b16 %v2368, %v2364
        %v2973 = vpack.c.b16 %v2369, %v2365
        %v2974 = vpack.c.b16 %v2374, %v2370
        %v2975 = vpack.c.b16 %v2375, %v2371
        %v2976 = vpack.c.b16 %v2376, %v2372
        %v2977 = vpack.c.b16 %v2377, %v2373
        %v2978 = vpack.c.b16 %v2382, %v2378
        %v2979 = vpack.c.b16 %v2383, %v2379
        %v2980 = vpack.c.b16 %v2384, %v2380
        %v2981 = vpack.c.b16 %v2385, %v2381
        %v2982 = vpack.c.b16 %v2390, %v2386
        %v2983 = vpack.c.b16 %v2391, %v2387
        %v2984 = vpack.c.b16 %v2392, %v2388
        %v2985 = vpack.c.b16 %v2393, %v2389
        %v2986 = vpack.c.b16 %v2398, %v2394
        %v2987 = vpack.c.b16 %v2399, %v2395
        %v2988 = vpack.c.b16 %v2400, %v2396
        %v2989 = vpack.c.b16 %v2401, %v2397
        %v2990 = vpack.c.b16 %v2406, %v2402
        %v2991 = vpack.c.b16 %v2407, %v2403
        %v2992 = vpack.c.b16 %v2408, %v2404
        %v2993 = vpack.c.b16 %v2409, %v2405
        %v2994 = vpack.c.b16 %v2414, %v2410
        %v2995 = vpack.c.b16 %v2415, %v2411
        %v2996 = vpack.c.b16 %v2416, %v2412
        %v2997 = vpack.c.b16 %v2417, %v2413
        %v2998 = vpack.c.b16 %v2422, %v2418
        %v2999 = vpack.c.b16 %v2423, %v2419
        %v3000 = vpack.c.b16 %v2424, %v2420
        %v3001 = vpack.c.b16 %v2425, %v2421
        %v3002 = vpack.c.b16 %v2430, %v2426
        %v3003 = vpack.c.b16 %v2431, %v2427
        %v3004 = vpack.c.b16 %v2432, %v2428
        %v3005 = vpack.c.b16 %v2433, %v2429
        %v3006 = vpack.c.b16 %v2438, %v2434
        %v3007 = vpack.c.b16 %v2439, %v2435
        %v3008 = vpack.c.b16 %v2440, %v2436
        %v3009 = vpack.c.b16 %v2441, %v2437
        %v3010 = vpack.c.b16 %v2446, %v2442
        %v3011 = vpack.c.b16 %v2447, %v2443
        %v3012 = vpack.c.b16 %v2448, %v2444
        %v3013 = vpack.c.b16 %v2449, %v2445
        %v3014 = vpack.c.b16 %v2454, %v2450
        %v3015 = vpack.c.b16 %v2455, %v2451
        %v3016 = vpack.c.b16 %v2456, %v2452
        %v3017 = vpack.c.b16 %v2457, %v2453
        %v3018 = vpack.c.b16 %v2462, %v2458
        %v3019 = vpack.c.b16 %v2463, %v2459
        %v3020 = vpack.c.b16 %v2464, %v2460
        %v3021 = vpack.c.b16 %v2465, %v2461
        %v3022 = vpack.c.b16 %v2470, %v2466
        %v3023 = vpack.c.b16 %v2471, %v2467
        %v3024 = vpack.c.b16 %v2472, %v2468
        %v3025 = vpack.c.b16 %v2473, %v2469
        %v3026 = vpack.c.b16 %v2478, %v2474
        %v3027 = vpack.c.b16 %v2479, %v2475
        %v3028 = vpack.c.b16 %v2480, %v2476
        %v3029 = vpack.c.b16 %v2481, %v2477
        %v3030 = vpack.c.b16 %v2486, %v2482
        %v3031 = vpack.c.b16 %v2487, %v2483
        %v3032 = vpack.c.b16 %v2488, %v2484
        %v3033 = vpack.c.b16 %v2489, %v2485
        %v3034 = vpack.c.b16 %v2494, %v2490
        %v3035 = vpack.c.b16 %v2495, %v2491
        %v3036 = vpack.c.b16 %v2496, %v2492
        %v3037 = vpack.c.b16 %v2497, %v2493
        %v3038 = vpack.c.b16 %v2502, %v2498
        %v3039 = vpack.c.b16 %v2503, %v2499
        %v3040 = vpack.c.b16 %v2504, %v2500
        %v3041 = vpack.c.b16 %v2505, %v2501
        %v3042 = vpack.c.b16 %v2510, %v2506
        %v3043 = vpack.c.b16 %v2511, %v2507
        %v3044 = vpack.c.b16 %v2512, %v2508
        %v3045 = vpack.c.b16 %v2513, %v2509
        %v3046 = vpack.c.b16 %v2518, %v2514
        %v3047 = vpack.c.b16 %v2519, %v2515
        %v3048 = vpack.c.b16 %v2520, %v2516
        %v3049 = vpack.c.b16 %v2521, %v2517
        %v3050 = vpack.c.b16 %v2526, %v2522
        %v3051 = vpack.c.b16 %v2527, %v2523
        %v3052 = vpack.c.b16 %v2528, %v2524
        %v3053 = vpack.c.b16 %v2529, %v2525
        %v3054 = vpack.c.b16 %v2534, %v2530
        %v3055 = vpack.c.b16 %v2535, %v2531
        %v3056 = vpack.c.b16 %v2536, %v2532
        %v3057 = vpack.c.b16 %v2537, %v2533
        %v3058 = vpack.c.b16 %v2542, %v2538
        %v3059 = vpack.c.b16 %v2543, %v2539
        %v3060 = vpack.c.b16 %v2544, %v2540
        %v3061 = vpack.c.b16 %v2545, %v2541
        %v3062 = vpack.c.b16 %v2550, %v2546
        %v3063 = vpack.c.b16 %v2551, %v2547
        %v3064 = vpack.c.b16 %v2552, %v2548
        %v3065 = vpack.c.b16 %v2553, %v2549
        %3578 = vmatpush.bf16.msra.mxu0 %v2582
        %3579 = vmatpush.bf16.msra.mxu0 %v2578
        %3580 = vmatpush.bf16.msra.mxu0 %v2574
        %3581 = vmatpush.bf16.msra.mxu0 %v2570
        %3582 = vmatpush.bf16.msra.mxu0 %v2566
        %3583 = vmatpush.bf16.msra.mxu0 %v2562
        %3584 = vmatpush.bf16.msra.mxu0 %v2558
        %3585 = vmatpush.bf16.msra.mxu0 %v2554
        %3586 = vmatmul.bf16.gmra.mxu0 %v954
        %v3587 = vpop.f32.mrf.mxu0
        %v3588 = vadd.f32 0.0, %v3587
        %v3589 = vpop.f32.mrf.mxu0
        %v3590 = vadd.f32 0.0, %v3589
        %3591 = vmatmul.bf16.gmra.mxu0 %v970
        %v3592 = vpop.f32.mrf.mxu0
        %v3593 = vadd.f32 0.0, %v3592
        %v3594 = vpop.f32.mrf.mxu0
        %v3595 = vadd.f32 0.0, %v3594
        %3596 = vdwg.mxu0
        %3597 = vmatpush.bf16.msra.mxu0 %v2614
        %3598 = vmatpush.bf16.msra.mxu0 %v2610
        %3599 = vmatpush.bf16.msra.mxu0 %v2606
        %3600 = vmatpush.bf16.msra.mxu0 %v2602
        %3601 = vmatpush.bf16.msra.mxu0 %v2598
        %3602 = vmatpush.bf16.msra.mxu0 %v2594
        %3603 = vmatpush.bf16.msra.mxu0 %v2590
        %3604 = vmatpush.bf16.msra.mxu0 %v2586
        %3605 = vmatmul.bf16.gmra.mxu0 %v955
        %v3606 = vpop.f32.mrf.mxu0
        %v3607 = vadd.f32 %v3588, %v3606
        %v3608 = vpop.f32.mrf.mxu0
        %v3609 = vadd.f32 %v3590, %v3608
        %3610 = vmatmul.bf16.gmra.mxu0 %v971
        %v3611 = vpop.f32.mrf.mxu0
        %v3612 = vadd.f32 %v3593, %v3611
        %v3613 = vpop.f32.mrf.mxu0
        %v3614 = vadd.f32 %v3595, %v3613
        %3615 = vdwg.mxu0
        %3616 = vmatpush.bf16.msra.mxu0 %v2646
        %3617 = vmatpush.bf16.msra.mxu0 %v2642
        %3618 = vmatpush.bf16.msra.mxu0 %v2638
        %3619 = vmatpush.bf16.msra.mxu0 %v2634
        %3620 = vmatpush.bf16.msra.mxu0 %v2630
        %3621 = vmatpush.bf16.msra.mxu0 %v2626
        %3622 = vmatpush.bf16.msra.mxu0 %v2622
        %3623 = vmatpush.bf16.msra.mxu0 %v2618
        %3624 = vmatmul.bf16.gmra.mxu0 %v956
        %v3625 = vpop.f32.mrf.mxu0
        %v3626 = vadd.f32 %v3607, %v3625
        %v3627 = vpop.f32.mrf.mxu0
        %v3628 = vadd.f32 %v3609, %v3627
        %3629 = vmatmul.bf16.gmra.mxu0 %v972
        %v3630 = vpop.f32.mrf.mxu0
        %v3631 = vadd.f32 %v3612, %v3630
        %v3632 = vpop.f32.mrf.mxu0
        %v3633 = vadd.f32 %v3614, %v3632
        %3634 = vdwg.mxu0
        %3635 = vmatpush.bf16.msra.mxu0 %v2678
        %3636 = vmatpush.bf16.msra.mxu0 %v2674
        %3637 = vmatpush.bf16.msra.mxu0 %v2670
        %3638 = vmatpush.bf16.msra.mxu0 %v2666
        %3639 = vmatpush.bf16.msra.mxu0 %v2662
        %3640 = vmatpush.bf16.msra.mxu0 %v2658
        %3641 = vmatpush.bf16.msra.mxu0 %v2654
        %3642 = vmatpush.bf16.msra.mxu0 %v2650
        %3643 = vmatmul.bf16.gmra.mxu0 %v957
        %v3644 = vpop.f32.mrf.mxu0
        %v3645 = vadd.f32 %v3626, %v3644
        %v3646 = vpop.f32.mrf.mxu0
        %v3647 = vadd.f32 %v3628, %v3646
        %3648 = vmatmul.bf16.gmra.mxu0 %v973
        %v3649 = vpop.f32.mrf.mxu0
        %v3650 = vadd.f32 %v3631, %v3649
        %v3651 = vpop.f32.mrf.mxu0
        %v3652 = vadd.f32 %v3633, %v3651
        %3653 = vdwg.mxu0
        %3654 = vmatpush.bf16.msra.mxu0 %v2710
        %3655 = vmatpush.bf16.msra.mxu0 %v2706
        %3656 = vmatpush.bf16.msra.mxu0 %v2702
        %3657 = vmatpush.bf16.msra.mxu0 %v2698
        %3658 = vmatpush.bf16.msra.mxu0 %v2694
        %3659 = vmatpush.bf16.msra.mxu0 %v2690
        %3660 = vmatpush.bf16.msra.mxu0 %v2686
        %3661 = vmatpush.bf16.msra.mxu0 %v2682
        %3662 = vmatmul.bf16.gmra.mxu0 %v958
        %v3663 = vpop.f32.mrf.mxu0
        %v3664 = vadd.f32 %v3645, %v3663
        %v3665 = vpop.f32.mrf.mxu0
        %v3666 = vadd.f32 %v3647, %v3665
        %3667 = vmatmul.bf16.gmra.mxu0 %v974
        %v3668 = vpop.f32.mrf.mxu0
        %v3669 = vadd.f32 %v3650, %v3668
        %v3670 = vpop.f32.mrf.mxu0
        %v3671 = vadd.f32 %v3652, %v3670
        %3672 = vdwg.mxu0
        %3673 = vmatpush.bf16.msra.mxu0 %v2742
        %3674 = vmatpush.bf16.msra.mxu0 %v2738
        %3675 = vmatpush.bf16.msra.mxu0 %v2734
        %3676 = vmatpush.bf16.msra.mxu0 %v2730
        %3677 = vmatpush.bf16.msra.mxu0 %v2726
        %3678 = vmatpush.bf16.msra.mxu0 %v2722
        %3679 = vmatpush.bf16.msra.mxu0 %v2718
        %3680 = vmatpush.bf16.msra.mxu0 %v2714
        %3681 = vmatmul.bf16.gmra.mxu0 %v959
        %v3682 = vpop.f32.mrf.mxu0
        %v3683 = vadd.f32 %v3664, %v3682
        %v3684 = vpop.f32.mrf.mxu0
        %v3685 = vadd.f32 %v3666, %v3684
        %3686 = vmatmul.bf16.gmra.mxu0 %v975
        %v3687 = vpop.f32.mrf.mxu0
        %v3688 = vadd.f32 %v3669, %v3687
        %v3689 = vpop.f32.mrf.mxu0
        %v3690 = vadd.f32 %v3671, %v3689
        %3691 = vdwg.mxu0
        %3692 = vmatpush.bf16.msra.mxu0 %v2774
        %3693 = vmatpush.bf16.msra.mxu0 %v2770
        %3694 = vmatpush.bf16.msra.mxu0 %v2766
        %3695 = vmatpush.bf16.msra.mxu0 %v2762
        %3696 = vmatpush.bf16.msra.mxu0 %v2758
        %3697 = vmatpush.bf16.msra.mxu0 %v2754
        %3698 = vmatpush.bf16.msra.mxu0 %v2750
        %3699 = vmatpush.bf16.msra.mxu0 %v2746
        %3700 = vmatmul.bf16.gmra.mxu0 %v960
        %v3701 = vpop.f32.mrf.mxu0
        %v3702 = vadd.f32 %v3683, %v3701
        %v3703 = vpop.f32.mrf.mxu0
        %v3704 = vadd.f32 %v3685, %v3703
        %3705 = vmatmul.bf16.gmra.mxu0 %v976
        %v3706 = vpop.f32.mrf.mxu0
        %v3707 = vadd.f32 %v3688, %v3706
        %v3708 = vpop.f32.mrf.mxu0
        %v3709 = vadd.f32 %v3690, %v3708
        %3710 = vdwg.mxu0
        %3711 = vmatpush.bf16.msra.mxu0 %v2806
        %3712 = vmatpush.bf16.msra.mxu0 %v2802
        %3713 = vmatpush.bf16.msra.mxu0 %v2798
        %3714 = vmatpush.bf16.msra.mxu0 %v2794
        %3715 = vmatpush.bf16.msra.mxu0 %v2790
        %3716 = vmatpush.bf16.msra.mxu0 %v2786
        %3717 = vmatpush.bf16.msra.mxu0 %v2782
        %3718 = vmatpush.bf16.msra.mxu0 %v2778
        %3719 = vmatmul.bf16.gmra.mxu0 %v961
        %v3720 = vpop.f32.mrf.mxu0
        %v3721 = vadd.f32 %v3702, %v3720
        %v3722 = vpop.f32.mrf.mxu0
        %v3723 = vadd.f32 %v3704, %v3722
        %3724 = vmatmul.bf16.gmra.mxu0 %v977
        %v3725 = vpop.f32.mrf.mxu0
        %v3726 = vadd.f32 %v3707, %v3725
        %v3727 = vpop.f32.mrf.mxu0
        %v3728 = vadd.f32 %v3709, %v3727
        %3729 = vdwg.mxu0
        %3730 = vmatpush.bf16.msra.mxu0 %v2838
        %3731 = vmatpush.bf16.msra.mxu0 %v2834
        %3732 = vmatpush.bf16.msra.mxu0 %v2830
        %3733 = vmatpush.bf16.msra.mxu0 %v2826
        %3734 = vmatpush.bf16.msra.mxu0 %v2822
        %3735 = vmatpush.bf16.msra.mxu0 %v2818
        %3736 = vmatpush.bf16.msra.mxu0 %v2814
        %3737 = vmatpush.bf16.msra.mxu0 %v2810
        %3738 = vmatmul.bf16.gmra.mxu0 %v962
        %v3739 = vpop.f32.mrf.mxu0
        %v3740 = vadd.f32 %v3721, %v3739
        %v3741 = vpop.f32.mrf.mxu0
        %v3742 = vadd.f32 %v3723, %v3741
        %3743 = vmatmul.bf16.gmra.mxu0 %v978
        %v3744 = vpop.f32.mrf.mxu0
        %v3745 = vadd.f32 %v3726, %v3744
        %v3746 = vpop.f32.mrf.mxu0
        %v3747 = vadd.f32 %v3728, %v3746
        %3748 = vdwg.mxu0
        %3749 = vmatpush.bf16.msra.mxu0 %v2870
        %3750 = vmatpush.bf16.msra.mxu0 %v2866
        %3751 = vmatpush.bf16.msra.mxu0 %v2862
        %3752 = vmatpush.bf16.msra.mxu0 %v2858
        %3753 = vmatpush.bf16.msra.mxu0 %v2854
        %3754 = vmatpush.bf16.msra.mxu0 %v2850
        %3755 = vmatpush.bf16.msra.mxu0 %v2846
        %3756 = vmatpush.bf16.msra.mxu0 %v2842
        %3757 = vmatmul.bf16.gmra.mxu0 %v963
        %v3758 = vpop.f32.mrf.mxu0
        %v3759 = vadd.f32 %v3740, %v3758
        %v3760 = vpop.f32.mrf.mxu0
        %v3761 = vadd.f32 %v3742, %v3760
        %3762 = vmatmul.bf16.gmra.mxu0 %v979
        %v3763 = vpop.f32.mrf.mxu0
        %v3764 = vadd.f32 %v3745, %v3763
        %v3765 = vpop.f32.mrf.mxu0
        %v3766 = vadd.f32 %v3747, %v3765
        %3767 = vdwg.mxu0
        %3768 = vmatpush.bf16.msra.mxu0 %v2902
        %3769 = vmatpush.bf16.msra.mxu0 %v2898
        %3770 = vmatpush.bf16.msra.mxu0 %v2894
        %3771 = vmatpush.bf16.msra.mxu0 %v2890
        %3772 = vmatpush.bf16.msra.mxu0 %v2886
        %3773 = vmatpush.bf16.msra.mxu0 %v2882
        %3774 = vmatpush.bf16.msra.mxu0 %v2878
        %3775 = vmatpush.bf16.msra.mxu0 %v2874
        %3776 = vmatmul.bf16.gmra.mxu0 %v964
        %v3777 = vpop.f32.mrf.mxu0
        %v3778 = vadd.f32 %v3759, %v3777
        %v3779 = vpop.f32.mrf.mxu0
        %v3780 = vadd.f32 %v3761, %v3779
        %3781 = vmatmul.bf16.gmra.mxu0 %v980
        %v3782 = vpop.f32.mrf.mxu0
        %v3783 = vadd.f32 %v3764, %v3782
        %v3784 = vpop.f32.mrf.mxu0
        %v3785 = vadd.f32 %v3766, %v3784
        %3786 = vdwg.mxu0
        %3787 = vmatpush.bf16.msra.mxu0 %v2934
        %3788 = vmatpush.bf16.msra.mxu0 %v2930
        %3789 = vmatpush.bf16.msra.mxu0 %v2926
        %3790 = vmatpush.bf16.msra.mxu0 %v2922
        %3791 = vmatpush.bf16.msra.mxu0 %v2918
        %3792 = vmatpush.bf16.msra.mxu0 %v2914
        %3793 = vmatpush.bf16.msra.mxu0 %v2910
        %3794 = vmatpush.bf16.msra.mxu0 %v2906
        %3795 = vmatmul.bf16.gmra.mxu0 %v965
        %v3796 = vpop.f32.mrf.mxu0
        %v3797 = vadd.f32 %v3778, %v3796
        %v3798 = vpop.f32.mrf.mxu0
        %v3799 = vadd.f32 %v3780, %v3798
        %3800 = vmatmul.bf16.gmra.mxu0 %v981
        %v3801 = vpop.f32.mrf.mxu0
        %v3802 = vadd.f32 %v3783, %v3801
        %v3803 = vpop.f32.mrf.mxu0
        %v3804 = vadd.f32 %v3785, %v3803
        %3805 = vdwg.mxu0
        %3806 = vmatpush.bf16.msra.mxu0 %v2966
        %3807 = vmatpush.bf16.msra.mxu0 %v2962
        %3808 = vmatpush.bf16.msra.mxu0 %v2958
        %3809 = vmatpush.bf16.msra.mxu0 %v2954
        %3810 = vmatpush.bf16.msra.mxu0 %v2950
        %3811 = vmatpush.bf16.msra.mxu0 %v2946
        %3812 = vmatpush.bf16.msra.mxu0 %v2942
        %3813 = vmatpush.bf16.msra.mxu0 %v2938
        %3814 = vmatmul.bf16.gmra.mxu0 %v966
        %v3815 = vpop.f32.mrf.mxu0
        %v3816 = vadd.f32 %v3797, %v3815
        %v3817 = vpop.f32.mrf.mxu0
        %v3818 = vadd.f32 %v3799, %v3817
        %3819 = vmatmul.bf16.gmra.mxu0 %v982
        %v3820 = vpop.f32.mrf.mxu0
        %v3821 = vadd.f32 %v3802, %v3820
        %v3822 = vpop.f32.mrf.mxu0
        %v3823 = vadd.f32 %v3804, %v3822
        %3824 = vdwg.mxu0
        %3825 = vmatpush.bf16.msra.mxu0 %v2998
        %3826 = vmatpush.bf16.msra.mxu0 %v2994
        %3827 = vmatpush.bf16.msra.mxu0 %v2990
        %3828 = vmatpush.bf16.msra.mxu0 %v2986
        %3829 = vmatpush.bf16.msra.mxu0 %v2982
        %3830 = vmatpush.bf16.msra.mxu0 %v2978
        %3831 = vmatpush.bf16.msra.mxu0 %v2974
        %3832 = vmatpush.bf16.msra.mxu0 %v2970
        %3833 = vmatmul.bf16.gmra.mxu0 %v967
        %v3834 = vpop.f32.mrf.mxu0
        %v3835 = vadd.f32 %v3816, %v3834
        %v3836 = vpop.f32.mrf.mxu0
        %v3837 = vadd.f32 %v3818, %v3836
        %3838 = vmatmul.bf16.gmra.mxu0 %v983
        %v3839 = vpop.f32.mrf.mxu0
        %v3840 = vadd.f32 %v3821, %v3839
        %v3841 = vpop.f32.mrf.mxu0
        %v3842 = vadd.f32 %v3823, %v3841
        %3843 = vdwg.mxu0
        %3844 = vmatpush.bf16.msra.mxu0 %v3030
        %3845 = vmatpush.bf16.msra.mxu0 %v3026
        %3846 = vmatpush.bf16.msra.mxu0 %v3022
        %3847 = vmatpush.bf16.msra.mxu0 %v3018
        %3848 = vmatpush.bf16.msra.mxu0 %v3014
        %3849 = vmatpush.bf16.msra.mxu0 %v3010
        %3850 = vmatpush.bf16.msra.mxu0 %v3006
        %3851 = vmatpush.bf16.msra.mxu0 %v3002
        %3852 = vmatmul.bf16.gmra.mxu0 %v968
        %v3853 = vpop.f32.mrf.mxu0
        %v3854 = vadd.f32 %v3835, %v3853
        %v3855 = vpop.f32.mrf.mxu0
        %v3856 = vadd.f32 %v3837, %v3855
        %3857 = vmatmul.bf16.gmra.mxu0 %v984
        %v3858 = vpop.f32.mrf.mxu0
        %v3859 = vadd.f32 %v3840, %v3858
        %v3860 = vpop.f32.mrf.mxu0
        %v3861 = vadd.f32 %v3842, %v3860
        %3862 = vdwg.mxu0
        %3863 = vmatpush.bf16.msra.mxu0 %v3062
        %3864 = vmatpush.bf16.msra.mxu0 %v3058
        %3865 = vmatpush.bf16.msra.mxu0 %v3054
        %3866 = vmatpush.bf16.msra.mxu0 %v3050
        %3867 = vmatpush.bf16.msra.mxu0 %v3046
        %3868 = vmatpush.bf16.msra.mxu0 %v3042
        %3869 = vmatpush.bf16.msra.mxu0 %v3038
        %3870 = vmatpush.bf16.msra.mxu0 %v3034
        %3871 = vmatmul.bf16.gmra.mxu0 %v969
        %v3872 = vpop.f32.mrf.mxu0
        %v3873 = vadd.f32 %v3854, %v3872
        %v3874 = vpop.f32.mrf.mxu0
        %v3875 = vadd.f32 %v3856, %v3874
        %3876 = vmatmul.bf16.gmra.mxu0 %v985
        %v3877 = vpop.f32.mrf.mxu0
        %v3878 = vadd.f32 %v3859, %v3877
        %v3879 = vpop.f32.mrf.mxu0
        %v3880 = vadd.f32 %v3861, %v3879
        %3881 = vdwg.mxu0
        %3882 = vmatpush.bf16.msra.mxu0 %v2583
        %3883 = vmatpush.bf16.msra.mxu0 %v2579
        %3884 = vmatpush.bf16.msra.mxu0 %v2575
        %3885 = vmatpush.bf16.msra.mxu0 %v2571
        %3886 = vmatpush.bf16.msra.mxu0 %v2567
        %3887 = vmatpush.bf16.msra.mxu0 %v2563
        %3888 = vmatpush.bf16.msra.mxu0 %v2559
        %3889 = vmatpush.bf16.msra.mxu0 %v2555
        %3890 = vmatmul.bf16.gmra.mxu0 %v954
        %v3891 = vpop.f32.mrf.mxu0
        %v3892 = vadd.f32 0.0, %v3891
        %v3893 = vpop.f32.mrf.mxu0
        %v3894 = vadd.f32 0.0, %v3893
        %3895 = vmatmul.bf16.gmra.mxu0 %v970
        %v3896 = vpop.f32.mrf.mxu0
        %v3897 = vadd.f32 0.0, %v3896
        %v3898 = vpop.f32.mrf.mxu0
        %v3899 = vadd.f32 0.0, %v3898
        %3900 = vdwg.mxu0
        %3901 = vmatpush.bf16.msra.mxu0 %v2615
        %3902 = vmatpush.bf16.msra.mxu0 %v2611
        %3903 = vmatpush.bf16.msra.mxu0 %v2607
        %3904 = vmatpush.bf16.msra.mxu0 %v2603
        %3905 = vmatpush.bf16.msra.mxu0 %v2599
        %3906 = vmatpush.bf16.msra.mxu0 %v2595
        %3907 = vmatpush.bf16.msra.mxu0 %v2591
        %3908 = vmatpush.bf16.msra.mxu0 %v2587
        %3909 = vmatmul.bf16.gmra.mxu0 %v955
        %v3910 = vpop.f32.mrf.mxu0
        %v3911 = vadd.f32 %v3892, %v3910
        %v3912 = vpop.f32.mrf.mxu0
        %v3913 = vadd.f32 %v3894, %v3912
        %3914 = vmatmul.bf16.gmra.mxu0 %v971
        %v3915 = vpop.f32.mrf.mxu0
        %v3916 = vadd.f32 %v3897, %v3915
        %v3917 = vpop.f32.mrf.mxu0
        %v3918 = vadd.f32 %v3899, %v3917
        %3919 = vdwg.mxu0
        %3920 = vmatpush.bf16.msra.mxu0 %v2647
        %3921 = vmatpush.bf16.msra.mxu0 %v2643
        %3922 = vmatpush.bf16.msra.mxu0 %v2639
        %3923 = vmatpush.bf16.msra.mxu0 %v2635
        %3924 = vmatpush.bf16.msra.mxu0 %v2631
        %3925 = vmatpush.bf16.msra.mxu0 %v2627
        %3926 = vmatpush.bf16.msra.mxu0 %v2623
        %3927 = vmatpush.bf16.msra.mxu0 %v2619
        %3928 = vmatmul.bf16.gmra.mxu0 %v956
        %v3929 = vpop.f32.mrf.mxu0
        %v3930 = vadd.f32 %v3911, %v3929
        %v3931 = vpop.f32.mrf.mxu0
        %v3932 = vadd.f32 %v3913, %v3931
        %3933 = vmatmul.bf16.gmra.mxu0 %v972
        %v3934 = vpop.f32.mrf.mxu0
        %v3935 = vadd.f32 %v3916, %v3934
        %v3936 = vpop.f32.mrf.mxu0
        %v3937 = vadd.f32 %v3918, %v3936
        %3938 = vdwg.mxu0
        %3939 = vmatpush.bf16.msra.mxu0 %v2679
        %3940 = vmatpush.bf16.msra.mxu0 %v2675
        %3941 = vmatpush.bf16.msra.mxu0 %v2671
        %3942 = vmatpush.bf16.msra.mxu0 %v2667
        %3943 = vmatpush.bf16.msra.mxu0 %v2663
        %3944 = vmatpush.bf16.msra.mxu0 %v2659
        %3945 = vmatpush.bf16.msra.mxu0 %v2655
        %3946 = vmatpush.bf16.msra.mxu0 %v2651
        %3947 = vmatmul.bf16.gmra.mxu0 %v957
        %v3948 = vpop.f32.mrf.mxu0
        %v3949 = vadd.f32 %v3930, %v3948
        %v3950 = vpop.f32.mrf.mxu0
        %v3951 = vadd.f32 %v3932, %v3950
        %3952 = vmatmul.bf16.gmra.mxu0 %v973
        %v3953 = vpop.f32.mrf.mxu0
        %v3954 = vadd.f32 %v3935, %v3953
        %v3955 = vpop.f32.mrf.mxu0
        %v3956 = vadd.f32 %v3937, %v3955
        %3957 = vdwg.mxu0
        %3958 = vmatpush.bf16.msra.mxu0 %v2711
        %3959 = vmatpush.bf16.msra.mxu0 %v2707
        %3960 = vmatpush.bf16.msra.mxu0 %v2703
        %3961 = vmatpush.bf16.msra.mxu0 %v2699
        %3962 = vmatpush.bf16.msra.mxu0 %v2695
        %3963 = vmatpush.bf16.msra.mxu0 %v2691
        %3964 = vmatpush.bf16.msra.mxu0 %v2687
        %3965 = vmatpush.bf16.msra.mxu0 %v2683
        %3966 = vmatmul.bf16.gmra.mxu0 %v958
        %v3967 = vpop.f32.mrf.mxu0
        %v3968 = vadd.f32 %v3949, %v3967
        %v3969 = vpop.f32.mrf.mxu0
        %v3970 = vadd.f32 %v3951, %v3969
        %3971 = vmatmul.bf16.gmra.mxu0 %v974
        %v3972 = vpop.f32.mrf.mxu0
        %v3973 = vadd.f32 %v3954, %v3972
        %v3974 = vpop.f32.mrf.mxu0
        %v3975 = vadd.f32 %v3956, %v3974
        %3976 = vdwg.mxu0
        %3977 = vmatpush.bf16.msra.mxu0 %v2743
        %3978 = vmatpush.bf16.msra.mxu0 %v2739
        %3979 = vmatpush.bf16.msra.mxu0 %v2735
        %3980 = vmatpush.bf16.msra.mxu0 %v2731
        %3981 = vmatpush.bf16.msra.mxu0 %v2727
        %3982 = vmatpush.bf16.msra.mxu0 %v2723
        %3983 = vmatpush.bf16.msra.mxu0 %v2719
        %3984 = vmatpush.bf16.msra.mxu0 %v2715
        %3985 = vmatmul.bf16.gmra.mxu0 %v959
        %v3986 = vpop.f32.mrf.mxu0
        %v3987 = vadd.f32 %v3968, %v3986
        %v3988 = vpop.f32.mrf.mxu0
        %v3989 = vadd.f32 %v3970, %v3988
        %3990 = vmatmul.bf16.gmra.mxu0 %v975
        %v3991 = vpop.f32.mrf.mxu0
        %v3992 = vadd.f32 %v3973, %v3991
        %v3993 = vpop.f32.mrf.mxu0
        %v3994 = vadd.f32 %v3975, %v3993
        %3995 = vdwg.mxu0
        %3996 = vmatpush.bf16.msra.mxu0 %v2775
        %3997 = vmatpush.bf16.msra.mxu0 %v2771
        %3998 = vmatpush.bf16.msra.mxu0 %v2767
        %3999 = vmatpush.bf16.msra.mxu0 %v2763
        %4000 = vmatpush.bf16.msra.mxu0 %v2759
        %4001 = vmatpush.bf16.msra.mxu0 %v2755
        %4002 = vmatpush.bf16.msra.mxu0 %v2751
        %4003 = vmatpush.bf16.msra.mxu0 %v2747
        %4004 = vmatmul.bf16.gmra.mxu0 %v960
        %v4005 = vpop.f32.mrf.mxu0
        %v4006 = vadd.f32 %v3987, %v4005
        %v4007 = vpop.f32.mrf.mxu0
        %v4008 = vadd.f32 %v3989, %v4007
        %4009 = vmatmul.bf16.gmra.mxu0 %v976
        %v4010 = vpop.f32.mrf.mxu0
        %v4011 = vadd.f32 %v3992, %v4010
        %v4012 = vpop.f32.mrf.mxu0
        %v4013 = vadd.f32 %v3994, %v4012
        %4014 = vdwg.mxu0
        %4015 = vmatpush.bf16.msra.mxu0 %v2807
        %4016 = vmatpush.bf16.msra.mxu0 %v2803
        %4017 = vmatpush.bf16.msra.mxu0 %v2799
        %4018 = vmatpush.bf16.msra.mxu0 %v2795
        %4019 = vmatpush.bf16.msra.mxu0 %v2791
        %4020 = vmatpush.bf16.msra.mxu0 %v2787
        %4021 = vmatpush.bf16.msra.mxu0 %v2783
        %4022 = vmatpush.bf16.msra.mxu0 %v2779
        %4023 = vmatmul.bf16.gmra.mxu0 %v961
        %v4024 = vpop.f32.mrf.mxu0
        %v4025 = vadd.f32 %v4006, %v4024
        %v4026 = vpop.f32.mrf.mxu0
        %v4027 = vadd.f32 %v4008, %v4026
        %4028 = vmatmul.bf16.gmra.mxu0 %v977
        %v4029 = vpop.f32.mrf.mxu0
        %v4030 = vadd.f32 %v4011, %v4029
        %v4031 = vpop.f32.mrf.mxu0
        %v4032 = vadd.f32 %v4013, %v4031
        %4033 = vdwg.mxu0
        %4034 = vmatpush.bf16.msra.mxu0 %v2839
        %4035 = vmatpush.bf16.msra.mxu0 %v2835
        %4036 = vmatpush.bf16.msra.mxu0 %v2831
        %4037 = vmatpush.bf16.msra.mxu0 %v2827
        %4038 = vmatpush.bf16.msra.mxu0 %v2823
        %4039 = vmatpush.bf16.msra.mxu0 %v2819
        %4040 = vmatpush.bf16.msra.mxu0 %v2815
        %4041 = vmatpush.bf16.msra.mxu0 %v2811
        %4042 = vmatmul.bf16.gmra.mxu0 %v962
        %v4043 = vpop.f32.mrf.mxu0
        %v4044 = vadd.f32 %v4025, %v4043
        %v4045 = vpop.f32.mrf.mxu0
        %v4046 = vadd.f32 %v4027, %v4045
        %4047 = vmatmul.bf16.gmra.mxu0 %v978
        %v4048 = vpop.f32.mrf.mxu0
        %v4049 = vadd.f32 %v4030, %v4048
        %v4050 = vpop.f32.mrf.mxu0
        %v4051 = vadd.f32 %v4032, %v4050
        %4052 = vdwg.mxu0
        %4053 = vmatpush.bf16.msra.mxu0 %v2871
        %4054 = vmatpush.bf16.msra.mxu0 %v2867
        %4055 = vmatpush.bf16.msra.mxu0 %v2863
        %4056 = vmatpush.bf16.msra.mxu0 %v2859
        %4057 = vmatpush.bf16.msra.mxu0 %v2855
        %4058 = vmatpush.bf16.msra.mxu0 %v2851
        %4059 = vmatpush.bf16.msra.mxu0 %v2847
        %4060 = vmatpush.bf16.msra.mxu0 %v2843
        %4061 = vmatmul.bf16.gmra.mxu0 %v963
        %v4062 = vpop.f32.mrf.mxu0
        %v4063 = vadd.f32 %v4044, %v4062
        %v4064 = vpop.f32.mrf.mxu0
        %v4065 = vadd.f32 %v4046, %v4064
        %4066 = vmatmul.bf16.gmra.mxu0 %v979
        %v4067 = vpop.f32.mrf.mxu0
        %v4068 = vadd.f32 %v4049, %v4067
        %v4069 = vpop.f32.mrf.mxu0
        %v4070 = vadd.f32 %v4051, %v4069
        %4071 = vdwg.mxu0
        %4072 = vmatpush.bf16.msra.mxu0 %v2903
        %4073 = vmatpush.bf16.msra.mxu0 %v2899
        %4074 = vmatpush.bf16.msra.mxu0 %v2895
        %4075 = vmatpush.bf16.msra.mxu0 %v2891
        %4076 = vmatpush.bf16.msra.mxu0 %v2887
        %4077 = vmatpush.bf16.msra.mxu0 %v2883
        %4078 = vmatpush.bf16.msra.mxu0 %v2879
        %4079 = vmatpush.bf16.msra.mxu0 %v2875
        %4080 = vmatmul.bf16.gmra.mxu0 %v964
        %v4081 = vpop.f32.mrf.mxu0
        %v4082 = vadd.f32 %v4063, %v4081
        %v4083 = vpop.f32.mrf.mxu0
        %v4084 = vadd.f32 %v4065, %v4083
        %4085 = vmatmul.bf16.gmra.mxu0 %v980
        %v4086 = vpop.f32.mrf.mxu0
        %v4087 = vadd.f32 %v4068, %v4086
        %v4088 = vpop.f32.mrf.mxu0
        %v4089 = vadd.f32 %v4070, %v4088
        %4090 = vdwg.mxu0
        %4091 = vmatpush.bf16.msra.mxu0 %v2935
        %4092 = vmatpush.bf16.msra.mxu0 %v2931
        %4093 = vmatpush.bf16.msra.mxu0 %v2927
        %4094 = vmatpush.bf16.msra.mxu0 %v2923
        %4095 = vmatpush.bf16.msra.mxu0 %v2919
        %4096 = vmatpush.bf16.msra.mxu0 %v2915
        %4097 = vmatpush.bf16.msra.mxu0 %v2911
        %4098 = vmatpush.bf16.msra.mxu0 %v2907
        %4099 = vmatmul.bf16.gmra.mxu0 %v965
        %v4100 = vpop.f32.mrf.mxu0
        %v4101 = vadd.f32 %v4082, %v4100
        %v4102 = vpop.f32.mrf.mxu0
        %v4103 = vadd.f32 %v4084, %v4102
        %4104 = vmatmul.bf16.gmra.mxu0 %v981
        %v4105 = vpop.f32.mrf.mxu0
        %v4106 = vadd.f32 %v4087, %v4105
        %v4107 = vpop.f32.mrf.mxu0
        %v4108 = vadd.f32 %v4089, %v4107
        %4109 = vdwg.mxu0
        %4110 = vmatpush.bf16.msra.mxu0 %v2967
        %4111 = vmatpush.bf16.msra.mxu0 %v2963
        %4112 = vmatpush.bf16.msra.mxu0 %v2959
        %4113 = vmatpush.bf16.msra.mxu0 %v2955
        %4114 = vmatpush.bf16.msra.mxu0 %v2951
        %4115 = vmatpush.bf16.msra.mxu0 %v2947
        %4116 = vmatpush.bf16.msra.mxu0 %v2943
        %4117 = vmatpush.bf16.msra.mxu0 %v2939
        %4118 = vmatmul.bf16.gmra.mxu0 %v966
        %v4119 = vpop.f32.mrf.mxu0
        %v4120 = vadd.f32 %v4101, %v4119
        %v4121 = vpop.f32.mrf.mxu0
        %v4122 = vadd.f32 %v4103, %v4121
        %4123 = vmatmul.bf16.gmra.mxu0 %v982
        %v4124 = vpop.f32.mrf.mxu0
        %v4125 = vadd.f32 %v4106, %v4124
        %v4126 = vpop.f32.mrf.mxu0
        %v4127 = vadd.f32 %v4108, %v4126
        %4128 = vdwg.mxu0
        %4129 = vmatpush.bf16.msra.mxu0 %v2999
        %4130 = vmatpush.bf16.msra.mxu0 %v2995
        %4131 = vmatpush.bf16.msra.mxu0 %v2991
        %4132 = vmatpush.bf16.msra.mxu0 %v2987
        %4133 = vmatpush.bf16.msra.mxu0 %v2983
        %4134 = vmatpush.bf16.msra.mxu0 %v2979
        %4135 = vmatpush.bf16.msra.mxu0 %v2975
        %4136 = vmatpush.bf16.msra.mxu0 %v2971
        %4137 = vmatmul.bf16.gmra.mxu0 %v967
        %v4138 = vpop.f32.mrf.mxu0
        %v4139 = vadd.f32 %v4120, %v4138
        %v4140 = vpop.f32.mrf.mxu0
        %v4141 = vadd.f32 %v4122, %v4140
        %4142 = vmatmul.bf16.gmra.mxu0 %v983
        %v4143 = vpop.f32.mrf.mxu0
        %v4144 = vadd.f32 %v4125, %v4143
        %v4145 = vpop.f32.mrf.mxu0
        %v4146 = vadd.f32 %v4127, %v4145
        %4147 = vdwg.mxu0
        %4148 = vmatpush.bf16.msra.mxu0 %v3031
        %4149 = vmatpush.bf16.msra.mxu0 %v3027
        %4150 = vmatpush.bf16.msra.mxu0 %v3023
        %4151 = vmatpush.bf16.msra.mxu0 %v3019
        %4152 = vmatpush.bf16.msra.mxu0 %v3015
        %4153 = vmatpush.bf16.msra.mxu0 %v3011
        %4154 = vmatpush.bf16.msra.mxu0 %v3007
        %4155 = vmatpush.bf16.msra.mxu0 %v3003
        %4156 = vmatmul.bf16.gmra.mxu0 %v968
        %v4157 = vpop.f32.mrf.mxu0
        %v4158 = vadd.f32 %v4139, %v4157
        %v4159 = vpop.f32.mrf.mxu0
        %v4160 = vadd.f32 %v4141, %v4159
        %4161 = vmatmul.bf16.gmra.mxu0 %v984
        %v4162 = vpop.f32.mrf.mxu0
        %v4163 = vadd.f32 %v4144, %v4162
        %v4164 = vpop.f32.mrf.mxu0
        %v4165 = vadd.f32 %v4146, %v4164
        %4166 = vdwg.mxu0
        %4167 = vmatpush.bf16.msra.mxu0 %v3063
        %4168 = vmatpush.bf16.msra.mxu0 %v3059
        %4169 = vmatpush.bf16.msra.mxu0 %v3055
        %4170 = vmatpush.bf16.msra.mxu0 %v3051
        %4171 = vmatpush.bf16.msra.mxu0 %v3047
        %4172 = vmatpush.bf16.msra.mxu0 %v3043
        %4173 = vmatpush.bf16.msra.mxu0 %v3039
        %4174 = vmatpush.bf16.msra.mxu0 %v3035
        %4175 = vmatmul.bf16.gmra.mxu0 %v969
        %v4176 = vpop.f32.mrf.mxu0
        %v4177 = vadd.f32 %v4158, %v4176
        %v4178 = vpop.f32.mrf.mxu0
        %v4179 = vadd.f32 %v4160, %v4178
        %4180 = vmatmul.bf16.gmra.mxu0 %v985
        %v4181 = vpop.f32.mrf.mxu0
        %v4182 = vadd.f32 %v4163, %v4181
        %v4183 = vpop.f32.mrf.mxu0
        %v4184 = vadd.f32 %v4165, %v4183
        %4185 = vdwg.mxu0
        %4186 = vmatpush.bf16.msra.mxu0 %v2584
        %4187 = vmatpush.bf16.msra.mxu0 %v2580
        %4188 = vmatpush.bf16.msra.mxu0 %v2576
        %4189 = vmatpush.bf16.msra.mxu0 %v2572
        %4190 = vmatpush.bf16.msra.mxu0 %v2568
        %4191 = vmatpush.bf16.msra.mxu0 %v2564
        %4192 = vmatpush.bf16.msra.mxu0 %v2560
        %4193 = vmatpush.bf16.msra.mxu0 %v2556
        %4194 = vmatmul.bf16.gmra.mxu0 %v954
        %v4195 = vpop.f32.mrf.mxu0
        %v4196 = vadd.f32 0.0, %v4195
        %v4197 = vpop.f32.mrf.mxu0
        %v4198 = vadd.f32 0.0, %v4197
        %4199 = vmatmul.bf16.gmra.mxu0 %v970
        %v4200 = vpop.f32.mrf.mxu0
        %v4201 = vadd.f32 0.0, %v4200
        %v4202 = vpop.f32.mrf.mxu0
        %v4203 = vadd.f32 0.0, %v4202
        %4204 = vdwg.mxu0
        %4205 = vmatpush.bf16.msra.mxu0 %v2616
        %4206 = vmatpush.bf16.msra.mxu0 %v2612
        %4207 = vmatpush.bf16.msra.mxu0 %v2608
        %4208 = vmatpush.bf16.msra.mxu0 %v2604
        %4209 = vmatpush.bf16.msra.mxu0 %v2600
        %4210 = vmatpush.bf16.msra.mxu0 %v2596
        %4211 = vmatpush.bf16.msra.mxu0 %v2592
        %4212 = vmatpush.bf16.msra.mxu0 %v2588
        %4213 = vmatmul.bf16.gmra.mxu0 %v955
        %v4214 = vpop.f32.mrf.mxu0
        %v4215 = vadd.f32 %v4196, %v4214
        %v4216 = vpop.f32.mrf.mxu0
        %v4217 = vadd.f32 %v4198, %v4216
        %4218 = vmatmul.bf16.gmra.mxu0 %v971
        %v4219 = vpop.f32.mrf.mxu0
        %v4220 = vadd.f32 %v4201, %v4219
        %v4221 = vpop.f32.mrf.mxu0
        %v4222 = vadd.f32 %v4203, %v4221
        %4223 = vdwg.mxu0
        %4224 = vmatpush.bf16.msra.mxu0 %v2648
        %4225 = vmatpush.bf16.msra.mxu0 %v2644
        %4226 = vmatpush.bf16.msra.mxu0 %v2640
        %4227 = vmatpush.bf16.msra.mxu0 %v2636
        %4228 = vmatpush.bf16.msra.mxu0 %v2632
        %4229 = vmatpush.bf16.msra.mxu0 %v2628
        %4230 = vmatpush.bf16.msra.mxu0 %v2624
        %4231 = vmatpush.bf16.msra.mxu0 %v2620
        %4232 = vmatmul.bf16.gmra.mxu0 %v956
        %v4233 = vpop.f32.mrf.mxu0
        %v4234 = vadd.f32 %v4215, %v4233
        %v4235 = vpop.f32.mrf.mxu0
        %v4236 = vadd.f32 %v4217, %v4235
        %4237 = vmatmul.bf16.gmra.mxu0 %v972
        %v4238 = vpop.f32.mrf.mxu0
        %v4239 = vadd.f32 %v4220, %v4238
        %v4240 = vpop.f32.mrf.mxu0
        %v4241 = vadd.f32 %v4222, %v4240
        %4242 = vdwg.mxu0
        %4243 = vmatpush.bf16.msra.mxu0 %v2680
        %4244 = vmatpush.bf16.msra.mxu0 %v2676
        %4245 = vmatpush.bf16.msra.mxu0 %v2672
        %4246 = vmatpush.bf16.msra.mxu0 %v2668
        %4247 = vmatpush.bf16.msra.mxu0 %v2664
        %4248 = vmatpush.bf16.msra.mxu0 %v2660
        %4249 = vmatpush.bf16.msra.mxu0 %v2656
        %4250 = vmatpush.bf16.msra.mxu0 %v2652
        %4251 = vmatmul.bf16.gmra.mxu0 %v957
        %v4252 = vpop.f32.mrf.mxu0
        %v4253 = vadd.f32 %v4234, %v4252
        %v4254 = vpop.f32.mrf.mxu0
        %v4255 = vadd.f32 %v4236, %v4254
        %4256 = vmatmul.bf16.gmra.mxu0 %v973
        %v4257 = vpop.f32.mrf.mxu0
        %v4258 = vadd.f32 %v4239, %v4257
        %v4259 = vpop.f32.mrf.mxu0
        %v4260 = vadd.f32 %v4241, %v4259
        %4261 = vdwg.mxu0
        %4262 = vmatpush.bf16.msra.mxu0 %v2712
        %4263 = vmatpush.bf16.msra.mxu0 %v2708
        %4264 = vmatpush.bf16.msra.mxu0 %v2704
        %4265 = vmatpush.bf16.msra.mxu0 %v2700
        %4266 = vmatpush.bf16.msra.mxu0 %v2696
        %4267 = vmatpush.bf16.msra.mxu0 %v2692
        %4268 = vmatpush.bf16.msra.mxu0 %v2688
        %4269 = vmatpush.bf16.msra.mxu0 %v2684
        %4270 = vmatmul.bf16.gmra.mxu0 %v958
        %v4271 = vpop.f32.mrf.mxu0
        %v4272 = vadd.f32 %v4253, %v4271
        %v4273 = vpop.f32.mrf.mxu0
        %v4274 = vadd.f32 %v4255, %v4273
        %4275 = vmatmul.bf16.gmra.mxu0 %v974
        %v4276 = vpop.f32.mrf.mxu0
        %v4277 = vadd.f32 %v4258, %v4276
        %v4278 = vpop.f32.mrf.mxu0
        %v4279 = vadd.f32 %v4260, %v4278
        %4280 = vdwg.mxu0
        %4281 = vmatpush.bf16.msra.mxu0 %v2744
        %4282 = vmatpush.bf16.msra.mxu0 %v2740
        %4283 = vmatpush.bf16.msra.mxu0 %v2736
        %4284 = vmatpush.bf16.msra.mxu0 %v2732
        %4285 = vmatpush.bf16.msra.mxu0 %v2728
        %4286 = vmatpush.bf16.msra.mxu0 %v2724
        %4287 = vmatpush.bf16.msra.mxu0 %v2720
        %4288 = vmatpush.bf16.msra.mxu0 %v2716
        %4289 = vmatmul.bf16.gmra.mxu0 %v959
        %v4290 = vpop.f32.mrf.mxu0
        %v4291 = vadd.f32 %v4272, %v4290
        %v4292 = vpop.f32.mrf.mxu0
        %v4293 = vadd.f32 %v4274, %v4292
        %4294 = vmatmul.bf16.gmra.mxu0 %v975
        %v4295 = vpop.f32.mrf.mxu0
        %v4296 = vadd.f32 %v4277, %v4295
        %v4297 = vpop.f32.mrf.mxu0
        %v4298 = vadd.f32 %v4279, %v4297
        %4299 = vdwg.mxu0
        %4300 = vmatpush.bf16.msra.mxu0 %v2776
        %4301 = vmatpush.bf16.msra.mxu0 %v2772
        %4302 = vmatpush.bf16.msra.mxu0 %v2768
        %4303 = vmatpush.bf16.msra.mxu0 %v2764
        %4304 = vmatpush.bf16.msra.mxu0 %v2760
        %4305 = vmatpush.bf16.msra.mxu0 %v2756
        %4306 = vmatpush.bf16.msra.mxu0 %v2752
        %4307 = vmatpush.bf16.msra.mxu0 %v2748
        %4308 = vmatmul.bf16.gmra.mxu0 %v960
        %v4309 = vpop.f32.mrf.mxu0
        %v4310 = vadd.f32 %v4291, %v4309
        %v4311 = vpop.f32.mrf.mxu0
        %v4312 = vadd.f32 %v4293, %v4311
        %4313 = vmatmul.bf16.gmra.mxu0 %v976
        %v4314 = vpop.f32.mrf.mxu0
        %v4315 = vadd.f32 %v4296, %v4314
        %v4316 = vpop.f32.mrf.mxu0
        %v4317 = vadd.f32 %v4298, %v4316
        %4318 = vdwg.mxu0
        %4319 = vmatpush.bf16.msra.mxu0 %v2808
        %4320 = vmatpush.bf16.msra.mxu0 %v2804
        %4321 = vmatpush.bf16.msra.mxu0 %v2800
        %4322 = vmatpush.bf16.msra.mxu0 %v2796
        %4323 = vmatpush.bf16.msra.mxu0 %v2792
        %4324 = vmatpush.bf16.msra.mxu0 %v2788
        %4325 = vmatpush.bf16.msra.mxu0 %v2784
        %4326 = vmatpush.bf16.msra.mxu0 %v2780
        %4327 = vmatmul.bf16.gmra.mxu0 %v961
        %v4328 = vpop.f32.mrf.mxu0
        %v4329 = vadd.f32 %v4310, %v4328
        %v4330 = vpop.f32.mrf.mxu0
        %v4331 = vadd.f32 %v4312, %v4330
        %4332 = vmatmul.bf16.gmra.mxu0 %v977
        %v4333 = vpop.f32.mrf.mxu0
        %v4334 = vadd.f32 %v4315, %v4333
        %v4335 = vpop.f32.mrf.mxu0
        %v4336 = vadd.f32 %v4317, %v4335
        %4337 = vdwg.mxu0
        %4338 = vmatpush.bf16.msra.mxu0 %v2840
        %4339 = vmatpush.bf16.msra.mxu0 %v2836
        %4340 = vmatpush.bf16.msra.mxu0 %v2832
        %4341 = vmatpush.bf16.msra.mxu0 %v2828
        %4342 = vmatpush.bf16.msra.mxu0 %v2824
        %4343 = vmatpush.bf16.msra.mxu0 %v2820
        %4344 = vmatpush.bf16.msra.mxu0 %v2816
        %4345 = vmatpush.bf16.msra.mxu0 %v2812
        %4346 = vmatmul.bf16.gmra.mxu0 %v962
        %v4347 = vpop.f32.mrf.mxu0
        %v4348 = vadd.f32 %v4329, %v4347
        %v4349 = vpop.f32.mrf.mxu0
        %v4350 = vadd.f32 %v4331, %v4349
        %4351 = vmatmul.bf16.gmra.mxu0 %v978
        %v4352 = vpop.f32.mrf.mxu0
        %v4353 = vadd.f32 %v4334, %v4352
        %v4354 = vpop.f32.mrf.mxu0
        %v4355 = vadd.f32 %v4336, %v4354
        %4356 = vdwg.mxu0
        %4357 = vmatpush.bf16.msra.mxu0 %v2872
        %4358 = vmatpush.bf16.msra.mxu0 %v2868
        %4359 = vmatpush.bf16.msra.mxu0 %v2864
        %4360 = vmatpush.bf16.msra.mxu0 %v2860
        %4361 = vmatpush.bf16.msra.mxu0 %v2856
        %4362 = vmatpush.bf16.msra.mxu0 %v2852
        %4363 = vmatpush.bf16.msra.mxu0 %v2848
        %4364 = vmatpush.bf16.msra.mxu0 %v2844
        %4365 = vmatmul.bf16.gmra.mxu0 %v963
        %v4366 = vpop.f32.mrf.mxu0
        %v4367 = vadd.f32 %v4348, %v4366
        %v4368 = vpop.f32.mrf.mxu0
        %v4369 = vadd.f32 %v4350, %v4368
        %4370 = vmatmul.bf16.gmra.mxu0 %v979
        %v4371 = vpop.f32.mrf.mxu0
        %v4372 = vadd.f32 %v4353, %v4371
        %v4373 = vpop.f32.mrf.mxu0
        %v4374 = vadd.f32 %v4355, %v4373
        %4375 = vdwg.mxu0
        %4376 = vmatpush.bf16.msra.mxu0 %v2904
        %4377 = vmatpush.bf16.msra.mxu0 %v2900
        %4378 = vmatpush.bf16.msra.mxu0 %v2896
        %4379 = vmatpush.bf16.msra.mxu0 %v2892
        %4380 = vmatpush.bf16.msra.mxu0 %v2888
        %4381 = vmatpush.bf16.msra.mxu0 %v2884
        %4382 = vmatpush.bf16.msra.mxu0 %v2880
        %4383 = vmatpush.bf16.msra.mxu0 %v2876
        %4384 = vmatmul.bf16.gmra.mxu0 %v964
        %v4385 = vpop.f32.mrf.mxu0
        %v4386 = vadd.f32 %v4367, %v4385
        %v4387 = vpop.f32.mrf.mxu0
        %v4388 = vadd.f32 %v4369, %v4387
        %4389 = vmatmul.bf16.gmra.mxu0 %v980
        %v4390 = vpop.f32.mrf.mxu0
        %v4391 = vadd.f32 %v4372, %v4390
        %v4392 = vpop.f32.mrf.mxu0
        %v4393 = vadd.f32 %v4374, %v4392
        %4394 = vdwg.mxu0
        %4395 = vmatpush.bf16.msra.mxu0 %v2936
        %4396 = vmatpush.bf16.msra.mxu0 %v2932
        %4397 = vmatpush.bf16.msra.mxu0 %v2928
        %4398 = vmatpush.bf16.msra.mxu0 %v2924
        %4399 = vmatpush.bf16.msra.mxu0 %v2920
        %4400 = vmatpush.bf16.msra.mxu0 %v2916
        %4401 = vmatpush.bf16.msra.mxu0 %v2912
        %4402 = vmatpush.bf16.msra.mxu0 %v2908
        %4403 = vmatmul.bf16.gmra.mxu0 %v965
        %v4404 = vpop.f32.mrf.mxu0
        %v4405 = vadd.f32 %v4386, %v4404
        %v4406 = vpop.f32.mrf.mxu0
        %v4407 = vadd.f32 %v4388, %v4406
        %4408 = vmatmul.bf16.gmra.mxu0 %v981
        %v4409 = vpop.f32.mrf.mxu0
        %v4410 = vadd.f32 %v4391, %v4409
        %v4411 = vpop.f32.mrf.mxu0
        %v4412 = vadd.f32 %v4393, %v4411
        %4413 = vdwg.mxu0
        %4414 = vmatpush.bf16.msra.mxu0 %v2968
        %4415 = vmatpush.bf16.msra.mxu0 %v2964
        %4416 = vmatpush.bf16.msra.mxu0 %v2960
        %4417 = vmatpush.bf16.msra.mxu0 %v2956
        %4418 = vmatpush.bf16.msra.mxu0 %v2952
        %4419 = vmatpush.bf16.msra.mxu0 %v2948
        %4420 = vmatpush.bf16.msra.mxu0 %v2944
        %4421 = vmatpush.bf16.msra.mxu0 %v2940
        %4422 = vmatmul.bf16.gmra.mxu0 %v966
        %v4423 = vpop.f32.mrf.mxu0
        %v4424 = vadd.f32 %v4405, %v4423
        %v4425 = vpop.f32.mrf.mxu0
        %v4426 = vadd.f32 %v4407, %v4425
        %4427 = vmatmul.bf16.gmra.mxu0 %v982
        %v4428 = vpop.f32.mrf.mxu0
        %v4429 = vadd.f32 %v4410, %v4428
        %v4430 = vpop.f32.mrf.mxu0
        %v4431 = vadd.f32 %v4412, %v4430
        %4432 = vdwg.mxu0
        %4433 = vmatpush.bf16.msra.mxu0 %v3000
        %4434 = vmatpush.bf16.msra.mxu0 %v2996
        %4435 = vmatpush.bf16.msra.mxu0 %v2992
        %4436 = vmatpush.bf16.msra.mxu0 %v2988
        %4437 = vmatpush.bf16.msra.mxu0 %v2984
        %4438 = vmatpush.bf16.msra.mxu0 %v2980
        %4439 = vmatpush.bf16.msra.mxu0 %v2976
        %4440 = vmatpush.bf16.msra.mxu0 %v2972
        %4441 = vmatmul.bf16.gmra.mxu0 %v967
        %v4442 = vpop.f32.mrf.mxu0
        %v4443 = vadd.f32 %v4424, %v4442
        %v4444 = vpop.f32.mrf.mxu0
        %v4445 = vadd.f32 %v4426, %v4444
        %4446 = vmatmul.bf16.gmra.mxu0 %v983
        %v4447 = vpop.f32.mrf.mxu0
        %v4448 = vadd.f32 %v4429, %v4447
        %v4449 = vpop.f32.mrf.mxu0
        %v4450 = vadd.f32 %v4431, %v4449
        %4451 = vdwg.mxu0
        %4452 = vmatpush.bf16.msra.mxu0 %v3032
        %4453 = vmatpush.bf16.msra.mxu0 %v3028
        %4454 = vmatpush.bf16.msra.mxu0 %v3024
        %4455 = vmatpush.bf16.msra.mxu0 %v3020
        %4456 = vmatpush.bf16.msra.mxu0 %v3016
        %4457 = vmatpush.bf16.msra.mxu0 %v3012
        %4458 = vmatpush.bf16.msra.mxu0 %v3008
        %4459 = vmatpush.bf16.msra.mxu0 %v3004
        %4460 = vmatmul.bf16.gmra.mxu0 %v968
        %v4461 = vpop.f32.mrf.mxu0
        %v4462 = vadd.f32 %v4443, %v4461
        %v4463 = vpop.f32.mrf.mxu0
        %v4464 = vadd.f32 %v4445, %v4463
        %4465 = vmatmul.bf16.gmra.mxu0 %v984
        %v4466 = vpop.f32.mrf.mxu0
        %v4467 = vadd.f32 %v4448, %v4466
        %v4468 = vpop.f32.mrf.mxu0
        %v4469 = vadd.f32 %v4450, %v4468
        %4470 = vdwg.mxu0
        %4471 = vmatpush.bf16.msra.mxu0 %v3064
        %4472 = vmatpush.bf16.msra.mxu0 %v3060
        %4473 = vmatpush.bf16.msra.mxu0 %v3056
        %4474 = vmatpush.bf16.msra.mxu0 %v3052
        %4475 = vmatpush.bf16.msra.mxu0 %v3048
        %4476 = vmatpush.bf16.msra.mxu0 %v3044
        %4477 = vmatpush.bf16.msra.mxu0 %v3040
        %4478 = vmatpush.bf16.msra.mxu0 %v3036
        %4479 = vmatmul.bf16.gmra.mxu0 %v969
        %v4480 = vpop.f32.mrf.mxu0
        %v4481 = vadd.f32 %v4462, %v4480
        %v4482 = vpop.f32.mrf.mxu0
        %v4483 = vadd.f32 %v4464, %v4482
        %4484 = vmatmul.bf16.gmra.mxu0 %v985
        %v4485 = vpop.f32.mrf.mxu0
        %v4486 = vadd.f32 %v4467, %v4485
        %v4487 = vpop.f32.mrf.mxu0
        %v4488 = vadd.f32 %v4469, %v4487
        %4489 = vdwg.mxu0
        %4490 = vmatpush.bf16.msra.mxu0 %v2585
        %4491 = vmatpush.bf16.msra.mxu0 %v2581
        %4492 = vmatpush.bf16.msra.mxu0 %v2577
        %4493 = vmatpush.bf16.msra.mxu0 %v2573
        %4494 = vmatpush.bf16.msra.mxu0 %v2569
        %4495 = vmatpush.bf16.msra.mxu0 %v2565
        %4496 = vmatpush.bf16.msra.mxu0 %v2561
        %4497 = vmatpush.bf16.msra.mxu0 %v2557
        %4498 = vmatmul.bf16.gmra.mxu0 %v954
        %v4499 = vpop.f32.mrf.mxu0
        %v4500 = vadd.f32 0.0, %v4499
        %v4501 = vpop.f32.mrf.mxu0
        %v4502 = vadd.f32 0.0, %v4501
        %4503 = vmatmul.bf16.gmra.mxu0 %v970
        %v4504 = vpop.f32.mrf.mxu0
        %v4505 = vadd.f32 0.0, %v4504
        %v4506 = vpop.f32.mrf.mxu0
        %v4507 = vadd.f32 0.0, %v4506
        %4508 = vdwg.mxu0
        %4509 = vmatpush.bf16.msra.mxu0 %v2617
        %4510 = vmatpush.bf16.msra.mxu0 %v2613
        %4511 = vmatpush.bf16.msra.mxu0 %v2609
        %4512 = vmatpush.bf16.msra.mxu0 %v2605
        %4513 = vmatpush.bf16.msra.mxu0 %v2601
        %4514 = vmatpush.bf16.msra.mxu0 %v2597
        %4515 = vmatpush.bf16.msra.mxu0 %v2593
        %4516 = vmatpush.bf16.msra.mxu0 %v2589
        %4517 = vmatmul.bf16.gmra.mxu0 %v955
        %v4518 = vpop.f32.mrf.mxu0
        %v4519 = vadd.f32 %v4500, %v4518
        %v4520 = vpop.f32.mrf.mxu0
        %v4521 = vadd.f32 %v4502, %v4520
        %4522 = vmatmul.bf16.gmra.mxu0 %v971
        %v4523 = vpop.f32.mrf.mxu0
        %v4524 = vadd.f32 %v4505, %v4523
        %v4525 = vpop.f32.mrf.mxu0
        %v4526 = vadd.f32 %v4507, %v4525
        %4527 = vdwg.mxu0
        %4528 = vmatpush.bf16.msra.mxu0 %v2649
        %4529 = vmatpush.bf16.msra.mxu0 %v2645
        %4530 = vmatpush.bf16.msra.mxu0 %v2641
        %4531 = vmatpush.bf16.msra.mxu0 %v2637
        %4532 = vmatpush.bf16.msra.mxu0 %v2633
        %4533 = vmatpush.bf16.msra.mxu0 %v2629
        %4534 = vmatpush.bf16.msra.mxu0 %v2625
        %4535 = vmatpush.bf16.msra.mxu0 %v2621
        %4536 = vmatmul.bf16.gmra.mxu0 %v956
        %v4537 = vpop.f32.mrf.mxu0
        %v4538 = vadd.f32 %v4519, %v4537
        %v4539 = vpop.f32.mrf.mxu0
        %v4540 = vadd.f32 %v4521, %v4539
        %4541 = vmatmul.bf16.gmra.mxu0 %v972
        %v4542 = vpop.f32.mrf.mxu0
        %v4543 = vadd.f32 %v4524, %v4542
        %v4544 = vpop.f32.mrf.mxu0
        %v4545 = vadd.f32 %v4526, %v4544
        %4546 = vdwg.mxu0
        %4547 = vmatpush.bf16.msra.mxu0 %v2681
        %4548 = vmatpush.bf16.msra.mxu0 %v2677
        %4549 = vmatpush.bf16.msra.mxu0 %v2673
        %4550 = vmatpush.bf16.msra.mxu0 %v2669
        %4551 = vmatpush.bf16.msra.mxu0 %v2665
        %4552 = vmatpush.bf16.msra.mxu0 %v2661
        %4553 = vmatpush.bf16.msra.mxu0 %v2657
        %4554 = vmatpush.bf16.msra.mxu0 %v2653
        %4555 = vmatmul.bf16.gmra.mxu0 %v957
        %v4556 = vpop.f32.mrf.mxu0
        %v4557 = vadd.f32 %v4538, %v4556
        %v4558 = vpop.f32.mrf.mxu0
        %v4559 = vadd.f32 %v4540, %v4558
        %4560 = vmatmul.bf16.gmra.mxu0 %v973
        %v4561 = vpop.f32.mrf.mxu0
        %v4562 = vadd.f32 %v4543, %v4561
        %v4563 = vpop.f32.mrf.mxu0
        %v4564 = vadd.f32 %v4545, %v4563
        %4565 = vdwg.mxu0
        %4566 = vmatpush.bf16.msra.mxu0 %v2713
        %4567 = vmatpush.bf16.msra.mxu0 %v2709
        %4568 = vmatpush.bf16.msra.mxu0 %v2705
        %4569 = vmatpush.bf16.msra.mxu0 %v2701
        %4570 = vmatpush.bf16.msra.mxu0 %v2697
        %4571 = vmatpush.bf16.msra.mxu0 %v2693
        %4572 = vmatpush.bf16.msra.mxu0 %v2689
        %4573 = vmatpush.bf16.msra.mxu0 %v2685
        %4574 = vmatmul.bf16.gmra.mxu0 %v958
        %v4575 = vpop.f32.mrf.mxu0
        %v4576 = vadd.f32 %v4557, %v4575
        %v4577 = vpop.f32.mrf.mxu0
        %v4578 = vadd.f32 %v4559, %v4577
        %4579 = vmatmul.bf16.gmra.mxu0 %v974
        %v4580 = vpop.f32.mrf.mxu0
        %v4581 = vadd.f32 %v4562, %v4580
        %v4582 = vpop.f32.mrf.mxu0
        %v4583 = vadd.f32 %v4564, %v4582
        %4584 = vdwg.mxu0
        %4585 = vmatpush.bf16.msra.mxu0 %v2745
        %4586 = vmatpush.bf16.msra.mxu0 %v2741
        %4587 = vmatpush.bf16.msra.mxu0 %v2737
        %4588 = vmatpush.bf16.msra.mxu0 %v2733
        %4589 = vmatpush.bf16.msra.mxu0 %v2729
        %4590 = vmatpush.bf16.msra.mxu0 %v2725
        %4591 = vmatpush.bf16.msra.mxu0 %v2721
        %4592 = vmatpush.bf16.msra.mxu0 %v2717
        %4593 = vmatmul.bf16.gmra.mxu0 %v959
        %v4594 = vpop.f32.mrf.mxu0
        %v4595 = vadd.f32 %v4576, %v4594
        %v4596 = vpop.f32.mrf.mxu0
        %v4597 = vadd.f32 %v4578, %v4596
        %4598 = vmatmul.bf16.gmra.mxu0 %v975
        %v4599 = vpop.f32.mrf.mxu0
        %v4600 = vadd.f32 %v4581, %v4599
        %v4601 = vpop.f32.mrf.mxu0
        %v4602 = vadd.f32 %v4583, %v4601
        %4603 = vdwg.mxu0
        %4604 = vmatpush.bf16.msra.mxu0 %v2777
        %4605 = vmatpush.bf16.msra.mxu0 %v2773
        %4606 = vmatpush.bf16.msra.mxu0 %v2769
        %4607 = vmatpush.bf16.msra.mxu0 %v2765
        %4608 = vmatpush.bf16.msra.mxu0 %v2761
        %4609 = vmatpush.bf16.msra.mxu0 %v2757
        %4610 = vmatpush.bf16.msra.mxu0 %v2753
        %4611 = vmatpush.bf16.msra.mxu0 %v2749
        %4612 = vmatmul.bf16.gmra.mxu0 %v960
        %v4613 = vpop.f32.mrf.mxu0
        %v4614 = vadd.f32 %v4595, %v4613
        %v4615 = vpop.f32.mrf.mxu0
        %v4616 = vadd.f32 %v4597, %v4615
        %4617 = vmatmul.bf16.gmra.mxu0 %v976
        %v4618 = vpop.f32.mrf.mxu0
        %v4619 = vadd.f32 %v4600, %v4618
        %v4620 = vpop.f32.mrf.mxu0
        %v4621 = vadd.f32 %v4602, %v4620
        %4622 = vdwg.mxu0
        %4623 = vmatpush.bf16.msra.mxu0 %v2809
        %4624 = vmatpush.bf16.msra.mxu0 %v2805
        %4625 = vmatpush.bf16.msra.mxu0 %v2801
        %4626 = vmatpush.bf16.msra.mxu0 %v2797
        %4627 = vmatpush.bf16.msra.mxu0 %v2793
        %4628 = vmatpush.bf16.msra.mxu0 %v2789
        %4629 = vmatpush.bf16.msra.mxu0 %v2785
        %4630 = vmatpush.bf16.msra.mxu0 %v2781
        %4631 = vmatmul.bf16.gmra.mxu0 %v961
        %v4632 = vpop.f32.mrf.mxu0
        %v4633 = vadd.f32 %v4614, %v4632
        %v4634 = vpop.f32.mrf.mxu0
        %v4635 = vadd.f32 %v4616, %v4634
        %4636 = vmatmul.bf16.gmra.mxu0 %v977
        %v4637 = vpop.f32.mrf.mxu0
        %v4638 = vadd.f32 %v4619, %v4637
        %v4639 = vpop.f32.mrf.mxu0
        %v4640 = vadd.f32 %v4621, %v4639
        %4641 = vdwg.mxu0
        %4642 = vmatpush.bf16.msra.mxu0 %v2841
        %4643 = vmatpush.bf16.msra.mxu0 %v2837
        %4644 = vmatpush.bf16.msra.mxu0 %v2833
        %4645 = vmatpush.bf16.msra.mxu0 %v2829
        %4646 = vmatpush.bf16.msra.mxu0 %v2825
        %4647 = vmatpush.bf16.msra.mxu0 %v2821
        %4648 = vmatpush.bf16.msra.mxu0 %v2817
        %4649 = vmatpush.bf16.msra.mxu0 %v2813
        %4650 = vmatmul.bf16.gmra.mxu0 %v962
        %v4651 = vpop.f32.mrf.mxu0
        %v4652 = vadd.f32 %v4633, %v4651
        %v4653 = vpop.f32.mrf.mxu0
        %v4654 = vadd.f32 %v4635, %v4653
        %4655 = vmatmul.bf16.gmra.mxu0 %v978
        %v4656 = vpop.f32.mrf.mxu0
        %v4657 = vadd.f32 %v4638, %v4656
        %v4658 = vpop.f32.mrf.mxu0
        %v4659 = vadd.f32 %v4640, %v4658
        %4660 = vdwg.mxu0
        %4661 = vmatpush.bf16.msra.mxu0 %v2873
        %4662 = vmatpush.bf16.msra.mxu0 %v2869
        %4663 = vmatpush.bf16.msra.mxu0 %v2865
        %4664 = vmatpush.bf16.msra.mxu0 %v2861
        %4665 = vmatpush.bf16.msra.mxu0 %v2857
        %4666 = vmatpush.bf16.msra.mxu0 %v2853
        %4667 = vmatpush.bf16.msra.mxu0 %v2849
        %4668 = vmatpush.bf16.msra.mxu0 %v2845
        %4669 = vmatmul.bf16.gmra.mxu0 %v963
        %v4670 = vpop.f32.mrf.mxu0
        %v4671 = vadd.f32 %v4652, %v4670
        %v4672 = vpop.f32.mrf.mxu0
        %v4673 = vadd.f32 %v4654, %v4672
        %4674 = vmatmul.bf16.gmra.mxu0 %v979
        %v4675 = vpop.f32.mrf.mxu0
        %v4676 = vadd.f32 %v4657, %v4675
        %v4677 = vpop.f32.mrf.mxu0
        %v4678 = vadd.f32 %v4659, %v4677
        %4679 = vdwg.mxu0
        %4680 = vmatpush.bf16.msra.mxu0 %v2905
        %4681 = vmatpush.bf16.msra.mxu0 %v2901
        %4682 = vmatpush.bf16.msra.mxu0 %v2897
        %4683 = vmatpush.bf16.msra.mxu0 %v2893
        %4684 = vmatpush.bf16.msra.mxu0 %v2889
        %4685 = vmatpush.bf16.msra.mxu0 %v2885
        %4686 = vmatpush.bf16.msra.mxu0 %v2881
        %4687 = vmatpush.bf16.msra.mxu0 %v2877
        %4688 = vmatmul.bf16.gmra.mxu0 %v964
        %v4689 = vpop.f32.mrf.mxu0
        %v4690 = vadd.f32 %v4671, %v4689
        %v4691 = vpop.f32.mrf.mxu0
        %v4692 = vadd.f32 %v4673, %v4691
        %4693 = vmatmul.bf16.gmra.mxu0 %v980
        %v4694 = vpop.f32.mrf.mxu0
        %v4695 = vadd.f32 %v4676, %v4694
        %v4696 = vpop.f32.mrf.mxu0
        %v4697 = vadd.f32 %v4678, %v4696
        %4698 = vdwg.mxu0
        %4699 = vmatpush.bf16.msra.mxu0 %v2937
        %4700 = vmatpush.bf16.msra.mxu0 %v2933
        %4701 = vmatpush.bf16.msra.mxu0 %v2929
        %4702 = vmatpush.bf16.msra.mxu0 %v2925
        %4703 = vmatpush.bf16.msra.mxu0 %v2921
        %4704 = vmatpush.bf16.msra.mxu0 %v2917
        %4705 = vmatpush.bf16.msra.mxu0 %v2913
        %4706 = vmatpush.bf16.msra.mxu0 %v2909
        %4707 = vmatmul.bf16.gmra.mxu0 %v965
        %v4708 = vpop.f32.mrf.mxu0
        %v4709 = vadd.f32 %v4690, %v4708
        %v4710 = vpop.f32.mrf.mxu0
        %v4711 = vadd.f32 %v4692, %v4710
        %4712 = vmatmul.bf16.gmra.mxu0 %v981
        %v4713 = vpop.f32.mrf.mxu0
        %v4714 = vadd.f32 %v4695, %v4713
        %v4715 = vpop.f32.mrf.mxu0
        %v4716 = vadd.f32 %v4697, %v4715
        %4717 = vdwg.mxu0
        %4718 = vmatpush.bf16.msra.mxu0 %v2969
        %4719 = vmatpush.bf16.msra.mxu0 %v2965
        %4720 = vmatpush.bf16.msra.mxu0 %v2961
        %4721 = vmatpush.bf16.msra.mxu0 %v2957
        %4722 = vmatpush.bf16.msra.mxu0 %v2953
        %4723 = vmatpush.bf16.msra.mxu0 %v2949
        %4724 = vmatpush.bf16.msra.mxu0 %v2945
        %4725 = vmatpush.bf16.msra.mxu0 %v2941
        %4726 = vmatmul.bf16.gmra.mxu0 %v966
        %v4727 = vpop.f32.mrf.mxu0
        %v4728 = vadd.f32 %v4709, %v4727
        %v4729 = vpop.f32.mrf.mxu0
        %v4730 = vadd.f32 %v4711, %v4729
        %4731 = vmatmul.bf16.gmra.mxu0 %v982
        %v4732 = vpop.f32.mrf.mxu0
        %v4733 = vadd.f32 %v4714, %v4732
        %v4734 = vpop.f32.mrf.mxu0
        %v4735 = vadd.f32 %v4716, %v4734
        %4736 = vdwg.mxu0
        %4737 = vmatpush.bf16.msra.mxu0 %v3001
        %4738 = vmatpush.bf16.msra.mxu0 %v2997
        %4739 = vmatpush.bf16.msra.mxu0 %v2993
        %4740 = vmatpush.bf16.msra.mxu0 %v2989
        %4741 = vmatpush.bf16.msra.mxu0 %v2985
        %4742 = vmatpush.bf16.msra.mxu0 %v2981
        %4743 = vmatpush.bf16.msra.mxu0 %v2977
        %4744 = vmatpush.bf16.msra.mxu0 %v2973
        %4745 = vmatmul.bf16.gmra.mxu0 %v967
        %v4746 = vpop.f32.mrf.mxu0
        %v4747 = vadd.f32 %v4728, %v4746
        %v4748 = vpop.f32.mrf.mxu0
        %v4749 = vadd.f32 %v4730, %v4748
        %4750 = vmatmul.bf16.gmra.mxu0 %v983
        %v4751 = vpop.f32.mrf.mxu0
        %v4752 = vadd.f32 %v4733, %v4751
        %v4753 = vpop.f32.mrf.mxu0
        %v4754 = vadd.f32 %v4735, %v4753
        %4755 = vdwg.mxu0
        %4756 = vmatpush.bf16.msra.mxu0 %v3033
        %4757 = vmatpush.bf16.msra.mxu0 %v3029
        %4758 = vmatpush.bf16.msra.mxu0 %v3025
        %4759 = vmatpush.bf16.msra.mxu0 %v3021
        %4760 = vmatpush.bf16.msra.mxu0 %v3017
        %4761 = vmatpush.bf16.msra.mxu0 %v3013
        %4762 = vmatpush.bf16.msra.mxu0 %v3009
        %4763 = vmatpush.bf16.msra.mxu0 %v3005
        %4764 = vmatmul.bf16.gmra.mxu0 %v968
        %v4765 = vpop.f32.mrf.mxu0
        %v4766 = vadd.f32 %v4747, %v4765
        %v4767 = vpop.f32.mrf.mxu0
        %v4768 = vadd.f32 %v4749, %v4767
        %4769 = vmatmul.bf16.gmra.mxu0 %v984
        %v4770 = vpop.f32.mrf.mxu0
        %v4771 = vadd.f32 %v4752, %v4770
        %v4772 = vpop.f32.mrf.mxu0
        %v4773 = vadd.f32 %v4754, %v4772
        %4774 = vdwg.mxu0
        %4775 = vmatpush.bf16.msra.mxu0 %v3065
        %4776 = vmatpush.bf16.msra.mxu0 %v3061
        %4777 = vmatpush.bf16.msra.mxu0 %v3057
        %4778 = vmatpush.bf16.msra.mxu0 %v3053
        %4779 = vmatpush.bf16.msra.mxu0 %v3049
        %4780 = vmatpush.bf16.msra.mxu0 %v3045
        %4781 = vmatpush.bf16.msra.mxu0 %v3041
        %4782 = vmatpush.bf16.msra.mxu0 %v3037
        %4783 = vmatmul.bf16.gmra.mxu0 %v969
        %v4784 = vpop.f32.mrf.mxu0
        %v4785 = vadd.f32 %v4766, %v4784
        %v4786 = vpop.f32.mrf.mxu0
        %v4787 = vadd.f32 %v4768, %v4786
        %4788 = vmatmul.bf16.gmra.mxu0 %v985
        %v4789 = vpop.f32.mrf.mxu0
        %v4790 = vadd.f32 %v4771, %v4789
        %v4791 = vpop.f32.mrf.mxu0
        %v4792 = vadd.f32 %v4773, %v4791
        %4793 = vdwg.mxu0
        %v4794 = vld [vmem:[%s264] sm:$0xf]
        %v4796 = vperm.slane %v4794, 0
        %v4797 = vperm.slane %v4794, 1
        %v4798 = vperm.slane %v4794, 2
        %v4799 = vperm.slane %v4794, 3
        %v4804 = vmul.f32 %v3873, %v4796
        %v4805 = vmul.f32 %v4177, %v4797
        %v4806 = vmul.f32 %v4481, %v4798
        %v4807 = vmul.f32 %v4785, %v4799
        %v4808 = vmul.f32 %v3875, %v4796
        %v4809 = vmul.f32 %v4179, %v4797
        %v4810 = vmul.f32 %v4483, %v4798
        %v4811 = vmul.f32 %v4787, %v4799
        %v4812 = vmul.f32 %v3878, %v4796
        %v4813 = vmul.f32 %v4182, %v4797
        %v4814 = vmul.f32 %v4486, %v4798
        %v4815 = vmul.f32 %v4790, %v4799
        %v4816 = vmul.f32 %v3880, %v4796
        %v4817 = vmul.f32 %v4184, %v4797
        %v4818 = vmul.f32 %v4488, %v4798
        %v4819 = vmul.f32 %v4792, %v4799
        %v4820 = vld [vmem:[%s274] sm:$0xf]
        %v4822 = vperm.slane %v4820, 0
        %v4823 = vperm.slane %v4820, 1
        %v4824 = vperm.slane %v4820, 2
        %v4825 = vperm.slane %v4820, 3
        %v4830 = vadd.f32 %v4804, %v4822
        %v4831 = vadd.f32 %v4805, %v4823
        %v4832 = vadd.f32 %v4806, %v4824
        %v4833 = vadd.f32 %v4807, %v4825
        %v4834 = vadd.f32 %v4808, %v4822
        %v4835 = vadd.f32 %v4809, %v4823
        %v4836 = vadd.f32 %v4810, %v4824
        %v4837 = vadd.f32 %v4811, %v4825
        %v4838 = vadd.f32 %v4812, %v4822
        %v4839 = vadd.f32 %v4813, %v4823
        %v4840 = vadd.f32 %v4814, %v4824
        %v4841 = vadd.f32 %v4815, %v4825
        %v4842 = vadd.f32 %v4816, %v4822
        %v4843 = vadd.f32 %v4817, %v4823
        %v4844 = vadd.f32 %v4818, %v4824
        %v4845 = vadd.f32 %v4819, %v4825
        %vm4846 = vcmp.ge.f32.partialorder %v4830, 0.0
        %vm4847 = vcmp.ge.f32.partialorder %v4831, 0.0
        %vm4848 = vcmp.ge.f32.partialorder %v4832, 0.0
        %vm4849 = vcmp.ge.f32.partialorder %v4833, 0.0
        %vm4850 = vcmp.ge.f32.partialorder %v4834, 0.0
        %vm4851 = vcmp.ge.f32.partialorder %v4835, 0.0
        %vm4852 = vcmp.ge.f32.partialorder %v4836, 0.0
        %vm4853 = vcmp.ge.f32.partialorder %v4837, 0.0
        %vm4854 = vcmp.ge.f32.partialorder %v4838, 0.0
        %vm4855 = vcmp.ge.f32.partialorder %v4839, 0.0
        %vm4856 = vcmp.ge.f32.partialorder %v4840, 0.0
        %vm4857 = vcmp.ge.f32.partialorder %v4841, 0.0
        %vm4858 = vcmp.ge.f32.partialorder %v4842, 0.0
        %vm4859 = vcmp.ge.f32.partialorder %v4843, 0.0
        %vm4860 = vcmp.ge.f32.partialorder %v4844, 0.0
        %vm4861 = vcmp.ge.f32.partialorder %v4845, 0.0
        %v4862 = vmul.f32 %v4830, 0.01
        %v4863 = vmul.f32 %v4831, 0.01
        %v4864 = vmul.f32 %v4832, 0.01
        %v4865 = vmul.f32 %v4833, 0.01
        %v4866 = vmul.f32 %v4834, 0.01
        %v4867 = vmul.f32 %v4835, 0.01
        %v4868 = vmul.f32 %v4836, 0.01
        %v4869 = vmul.f32 %v4837, 0.01
        %v4870 = vmul.f32 %v4838, 0.01
        %v4871 = vmul.f32 %v4839, 0.01
        %v4872 = vmul.f32 %v4840, 0.01
        %v4873 = vmul.f32 %v4841, 0.01
        %v4874 = vmul.f32 %v4842, 0.01
        %v4875 = vmul.f32 %v4843, 0.01
        %v4876 = vmul.f32 %v4844, 0.01
        %v4877 = vmul.f32 %v4845, 0.01
        %v4878 = vsel %vm4846, %v4830, %v4862
        %v4879 = vsel %vm4847, %v4831, %v4863
        %v4880 = vsel %vm4848, %v4832, %v4864
        %v4881 = vsel %vm4849, %v4833, %v4865
        %v4882 = vsel %vm4850, %v4834, %v4866
        %v4883 = vsel %vm4851, %v4835, %v4867
        %v4884 = vsel %vm4852, %v4836, %v4868
        %v4885 = vsel %vm4853, %v4837, %v4869
        %v4886 = vsel %vm4854, %v4838, %v4870
        %v4887 = vsel %vm4855, %v4839, %v4871
        %v4888 = vsel %vm4856, %v4840, %v4872
        %v4889 = vsel %vm4857, %v4841, %v4873
        %v4890 = vsel %vm4858, %v4842, %v4874
        %v4891 = vsel %vm4859, %v4843, %v4875
        %v4892 = vsel %vm4860, %v4844, %v4876
        %v4893 = vsel %vm4861, %v4845, %v4877
        %v4894 = vpack.c.bf16 %v4879, %v4878
        %v4895 = vpack.c.bf16 %v4881, %v4880
        %v4896 = vpack.c.bf16 %v4883, %v4882
        %v4897 = vpack.c.bf16 %v4885, %v4884
        %v4898 = vpack.c.bf16 %v4887, %v4886
        %v4899 = vpack.c.bf16 %v4889, %v4888
        %v4900 = vpack.c.bf16 %v4891, %v4890
        %v4901 = vpack.c.bf16 %v4893, %v4892
        %4902 = vst [vmem:[%s309] sm:$0xff] %v4894
        %4903 = vst [vmem:[%s309 + $0x8] sm:$0xff] %v4895
        %4904 = vst [vmem:[%s309 + $0x10] sm:$0xff] %v4896
        %4905 = vst [vmem:[%s309 + $0x18] sm:$0xff] %v4897
        %4906 = vst [vmem:[%s309 + $0x20] sm:$0xff] %v4898
        %4907 = vst [vmem:[%s309 + $0x28] sm:$0xff] %v4899
        %4908 = vst [vmem:[%s309 + $0x30] sm:$0xff] %v4900
        %4909 = vst [vmem:[%s309 + $0x38] sm:$0xff] %v4901
        %s4910 = sand.u32 %s132, 1
        %s4911 = scalar_lea.sflag [#allocation4], %s4910
        %s4912 = sand.u32 %s132, 1
        %s4913 = smul.addr %s4912, 64
        %s4914 = scalar_lea.vmem [#allocation10], %s4913
        // Predicated region
        $region53: #{tpu_custom_call.1} parent=35 // pred_check
          %p4915 = pneg %p142
        $region54: #{tpu_custom_call.1} parent=35 // pred_check_branch
          %4917 = sbr.rel (%p4915) target = $region56
        $region55: #{tpu_custom_call.1} parent=35 // pred_region
          %s4918 = smul.u32 4, %s25
          %4920 = vsyncadd %s4911, 0
          %s4921 = smul.addr %s4918, 4
          %s4922 = scalar_lea.hbm %s4, %s4921
          %s4923 = sshll.u32 %s4914, 4
          %s4924 = int_to_ptr.vmem [resolvable:$true] %s4923
          %s4925 = sshll.u32 %s4922, 4
          %s4926 = int_to_ptr.hbm [resolvable:$true] %s4925
          %4931 = dma.vmem_to_hbm [thread:$0]  %s4924, 1024, %s4926, %s4911, 256, 512, 16
        $region56: #{tpu_custom_call.1} parent=35 // pred_fallthru
          _
      $region36: #{tpu_custom_call.1} parent=5 // pred_fallthru
        _
      %p4932 = scmp.le.s32.totalorder 2, %s20
      // Predicated region
      $region57: #{tpu_custom_call.1} parent=5 // pred_check
        %p4933 = pneg %p4932
      $region58: #{tpu_custom_call.1} parent=5 // pred_check_branch
        %4935 = sbr.rel (%p4933) target = $region60
      $region59: #{tpu_custom_call.1} parent=5 // pred_region
        %s4936 = ssub.s32 %s20, 2
        // Predicated region
        $region61: #{tpu_custom_call.1} parent=59 // pred_check
          %p4937 = pneg %p148
        $region62: #{tpu_custom_call.1} parent=59 // pred_check_branch
          %4939 = sbr.rel (%p4937) target = $region64
        $region63: #{tpu_custom_call.1} parent=59 // pred_region
          %s4940 = sand.u32 %s133, 1
          %s4941 = scalar_lea.sflag [#allocation4], %s4940
          %s4942 = sand.u32 %s133, 1
          %s4943 = smul.addr %s4942, 64
          %s4944 = scalar_lea.vmem [#allocation10], %s4943
          %4946 = dma.done %s4941, 1024
        $region64: #{tpu_custom_call.1} parent=59 // pred_fallthru
          _
      $region60: #{tpu_custom_call.1} parent=5 // pred_fallthru
        _
    $region6: #{tpu_custom_call.1} parent=1 // loop_footer
      %s24 = sadd.s32 1, %s20
    $region7: #{tpu_custom_call.1} parent=1 // loop_footer_branch
      %19 = sbr.rel target = $region3
    $region8: #{tpu_custom_call.1} parent=1 // loop_exit
      _
    %4947 = vsyncpa [#allocation3], 1
    %s4948 = scalar_lea.sflag [#allocation3], 1
    %4949 = vsyncpa %s4948, 1
    %4950 = vsyncpa [#allocation6], 1
    %s4951 = scalar_lea.sflag [#allocation6], 1
    %4952 = vsyncpa %s4951, 1
    %4953 = vsyncpa [#allocation9], 1
    %s4954 = scalar_lea.sflag [#allocation9], 1
    %4955 = vsyncpa %s4954, 1
    %4956 = vsyncpa [#allocation4], 1
    %s4957 = scalar_lea.sflag [#allocation4], 1
    %4958 = vsyncpa %s4957, 1

</llo_original>
